<compile_context>
chip_gen: v5e
topology: v5e:2x2
jax: 0.10.0
libtpu: 0.0.40
codegen_flags: <defaults>
</compile_context>

<pallas_src>
import functools
import math

import jax
import jax.numpy as jnp
from jax.experimental import pallas as pl
from jax.experimental.pallas import tpu as pltpu


# ----------------------------------------------------------------------------
# helpers
# ----------------------------------------------------------------------------
def _gelu(x):
    # tanh-approximate GELU (see TODO above); jnp.tanh uses the EUP slot.
    c = math.sqrt(2.0 / math.pi)
    return 0.5 * x * (1.0 + jnp.tanh(c * (x + 0.044715 * x * x * x)))


def _pick_row_tile(ho, max_rows=32):
    """Largest divisor of `ho` that is <= max_rows (whole image if none)."""
    if ho <= max_rows:
        return ho
    for th in range(max_rows, 7, -1):
        if ho % th == 0:
            return th
    return ho


# ----------------------------------------------------------------------------
# Fused kernel: 3x3 / stride-2 conv (single K=9*Cin matmul) + BN shift + GELU
# ----------------------------------------------------------------------------
def _stem_conv_kernel(p00_ref, p01_ref, p10_ref, p11_ref, w_ref, b_ref, o_ref,
                      *, th, wo, cin, act):
    # p{r}{c}_ref : (1, Ho+1, Wo8+1, Cin) bf16 even/odd phase planes of the padded
    #               input (index map constant in the row axis -> resident per image)
    # w_ref       : (9*Cin, Cout) bf16, BN scale folded in
    # b_ref       : (1, Cout) f32, folded shift (conv bias * BN scale)
    # o_ref       : (1, th*wo, Cout)
    r = pl.program_id(1)
    row0 = pl.multiple_of(r * th, th)
    phases = ((p00_ref, p01_ref), (p10_ref, p11_ref))

    taps = []
    for kh in range(3):
        for kw in range(3):
            # tap (kh,kw) of output (i,j) reads padded pixel (2i+kh, 2j+kw), i.e.
            # phase[kh%2][kw%2] at (i + kh//2, j + kw//2) -> plain unstrided slice.
            src = phases[kh % 2][kw % 2]
            oh, ow = kh // 2, kw // 2
            taps.append(src[0, pl.ds(row0 + oh, th), ow:ow + wo, :])

    lhs = jnp.concatenate(taps, axis=-1)            # (th, wo, 9*cin) bf16
    lhs = lhs.reshape(th * wo, 9 * cin)             # single, layout-trivial flatten
    y = jnp.dot(lhs, w_ref[...], preferred_element_type=jnp.float32)
    y = y + b_ref[...]
    if act:
        y = _gelu(y)
    o_ref[0] = y.astype(o_ref.dtype)


def conv3x3_s2_bn_gelu(x, w9, shift, *, out_dtype, act=True):
    """x: (B,H,W,Cin) bf16 NHWC.  w9: (9*Cin, Cout) bf16 (BN scale folded).
    shift: (1, Cout) f32.  Returns (B, Ho, Wo, Cout) in `out_dtype`."""
    B, H, W, Cin = x.shape
    Cout = w9.shape[1]
    Ho, Wo = (H + 1) // 2, (W + 1) // 2
    Wo8 = ((Wo + 7) // 8) * 8            # pad output width to a multiple of 8
    Hp, Wp = 2 * Ho + 2, 2 * Wo8 + 2
    xp = jnp.pad(x, ((0, 0), (1, Hp - 1 - H), (1, Wp - 1 - W), (0, 0)))

    # Even/odd phase decomposition (same total bytes as xp): every stride-2 tap
    # becomes an unstrided in-VMEM slice.  bf16 -> half the HBM traffic.
    p00 = xp[:, 0::2, 0::2, :]
    p01 = xp[:, 0::2, 1::2, :]
    p10 = xp[:, 1::2, 0::2, :]
    p11 = xp[:, 1::2, 1::2, :]
    Hq, Wq = Ho + 1, Wo8 + 1

    TH = _pick_row_tile(Ho)
    R = Ho // TH

    # Phase planes: index map constant in r -> DMA'd once per image, reused across
    # the row tiles of that image.
    phase_spec = pl.BlockSpec((1, Hq, Wq, Cin), lambda b, r: (b, 0, 0, 0))
    out = pl.pallas_call(
        functools.partial(_stem_conv_kernel, th=TH, wo=Wo8, cin=Cin, act=act),
        grid=(B, R),
        in_specs=[phase_spec, phase_spec, phase_spec, phase_spec,
                  pl.BlockSpec((9 * Cin, Cout), lambda b, r: (0, 0)),
                  pl.BlockSpec((1, Cout), lambda b, r: (0, 0))],
        out_specs=pl.BlockSpec((1, TH * Wo8, Cout), lambda b, r: (b, r, 0)),
        out_shape=jax.ShapeDtypeStruct((B, Ho * Wo8, Cout), out_dtype),
        compiler_params=pltpu.CompilerParams(
            dimension_semantics=("parallel", "parallel")),
    )(p00, p01, p10, p11, w9, shift)

    out = out.reshape(B, Ho, Wo8, Cout)   # free row-major reshape in XLA
    if Wo8 != Wo:
        out = out[:, :, :Wo, :]
    return out


# ----------------------------------------------------------------------------
# Parameters: PyTorch-default conv init, BN folded into weights/shift
# ----------------------------------------------------------------------------
def init_stem_params(key, in_dim, out_dim, eps=1e-5):
    c1 = out_dim // 2
    kw1, kb1, kw2, kb2 = jax.random.split(key, 4)

    def conv_init(k_w, k_b, cin, cout):
        # PyTorch Conv2d default: kaiming_uniform(a=sqrt(5)) -> U(+-1/sqrt(fan_in))
        bound = 1.0 / math.sqrt(9 * cin)
        w = jax.random.uniform(k_w, (3, 3, cin, cout), jnp.float32, -bound, bound)
        b = jax.random.uniform(k_b, (cout,), jnp.float32, -bound, bound)
        return w, b

    def fold(w, b):
        # BN inference form with fresh stats (mean=0, var=1, gamma=1, beta=0).
        # TODO(synk): generalize to per-channel gamma/beta/mean/var for checkpoints.
        scale = 1.0 / math.sqrt(1.0 + eps)
        cin, cout = w.shape[2], w.shape[3]
        w9 = (w * scale).reshape(9 * cin, cout).astype(jnp.bfloat16)
        shift = (b * scale).reshape(1, cout).astype(jnp.float32)
        return w9, shift

    w1, b1 = conv_init(kw1, kb1, in_dim, c1)
    w2, b2 = conv_init(kw2, kb2, c1, out_dim)
    w1f, s1 = fold(w1, b1)
    w2f, s2 = fold(w2, b2)
    return dict(w1=w1f, b1=s1, w2=w2f, b2=s2,
                w1_raw=w1, b1_raw=b1, w2_raw=w2, b2_raw=b2)


def stem_forward(params, x_nchw):
    # PyTorch layout is NCHW; compute internally in NHWC bf16, return NCHW f32.
    x = jnp.transpose(x_nchw, (0, 2, 3, 1)).astype(jnp.bfloat16)
    x = conv3x3_s2_bn_gelu(x, params["w1"], params["b1"], out_dtype=jnp.bfloat16)
    x = conv3x3_s2_bn_gelu(x, params["w2"], params["b2"], out_dtype=jnp.float32)
    return jnp.transpose(x, (0, 3, 1, 2))


# ----------------------------------------------------------------------------
# Pure-JAX reference (raw f32 weights, explicit conv + BN + GELU)
# ----------------------------------------------------------------------------
def stem_reference(params, x_nchw, eps=1e-5):
    x = jnp.transpose(x_nchw, (0, 2, 3, 1)).astype(jnp.float32)
    for w, b in ((params["w1_raw"], params["b1_raw"]),
                 (params["w2_raw"], params["b2_raw"])):
        y = jax.lax.conv_general_dilated(
            x, w, window_strides=(2, 2), padding=((1, 1), (1, 1)),
            dimension_numbers=("NHWC", "HWIO", "NHWC"))
        y = (y + b) / jnp.sqrt(1.0 + eps)   # BN: gamma=1, beta=0, mean=0, var=1
        x = _gelu(y)
    return jnp.transpose(x, (0, 3, 1, 2))


# ----------------------------------------------------------------------------
if __name__ == "__main__":
    IN_DIM, OUT_DIM = 3, 32
    B, H, W = 2, 32, 32

    key = jax.random.PRNGKey(0)
    pkey, xkey = jax.random.split(key)
    params = init_stem_params(pkey, IN_DIM, OUT_DIM)
    x = jax.random.normal(xkey, (B, IN_DIM, H, W), jnp.float32)

    out = jax.jit(stem_forward)(params, x)
    out = jax.block_until_ready(out)

    assert out.shape == (B, OUT_DIM, H // 4, W // 4), out.shape
    assert bool(jnp.all(jnp.isfinite(out)))

    ref = stem_reference(params, x)
    err = float(jnp.max(jnp.abs(out - ref)) / (jnp.max(jnp.abs(ref)) + 1e-6))
    assert err < 5e-2, f"mismatch vs reference: rel-max err {err}"

    print("KERNEL_OK")
</pallas_src>

<mosaic_0001>
module attributes {stable_mosaic.version = 11 : i64} {
  func.func @_stem_conv_kernel(%arg0: i32, %arg1: i32, %arg2: memref<1x17x17x3xbf16, #tpu.memory_space<vmem>>, %arg3: memref<1x17x17x3xbf16, #tpu.memory_space<vmem>>, %arg4: memref<1x17x17x3xbf16, #tpu.memory_space<vmem>>, %arg5: memref<1x17x17x3xbf16, #tpu.memory_space<vmem>>, %arg6: memref<27x16xbf16, #tpu.memory_space<vmem>>, %arg7: memref<1x16xf32, #tpu.memory_space<vmem>>, %arg8: memref<1x256x16xbf16, #tpu.memory_space<vmem>>) attributes {dimension_semantics = [#tpu.dimension_semantics<parallel>, #tpu.dimension_semantics<parallel>], iteration_bounds = array<i64: 2, 1>, scalar_prefetch = 0 : i64, scratch_operands = 0 : i64, tpu.core_type = #tpu.core_type<tc>, window_params = [{transform_indices = @transform_0, window_bounds = array<i64: 1, 17, 17, 3>}, {transform_indices = @transform_1, window_bounds = array<i64: 1, 17, 17, 3>}, {transform_indices = @transform_2, window_bounds = array<i64: 1, 17, 17, 3>}, {transform_indices = @transform_3, window_bounds = array<i64: 1, 17, 17, 3>}, {pipeline_mode = #tpu.pipeline_mode<synchronous>, transform_indices = @transform_4, window_bounds = array<i64: 27, 16>}, {pipeline_mode = #tpu.pipeline_mode<synchronous>, transform_indices = @transform_5, window_bounds = array<i64: 1, 16>}, {transform_indices = @transform_6, window_bounds = array<i64: 1, 256, 16>}]} {
    %c16_i32 = arith.constant 16 : i32
    %0 = arith.muli %arg1, %c16_i32 : i32
    %1 = tpu.assume_multiple %0, 16 : i32
    %c0_i32 = arith.constant 0 : i32
    %2 = arith.addi %1, %c0_i32 : i32
    %c0 = arith.constant 0 : index
    %3 = arith.index_cast %2 : i32 to index
    %c0_0 = arith.constant 0 : index
    %c0_1 = arith.constant 0 : index
    %4 = vector.load %arg2[%c0, %3, %c0_0, %c0_1] : memref<1x17x17x3xbf16, #tpu.memory_space<vmem>>, vector<1x16x16x3xbf16>
    %5 = vector.shape_cast %4 : vector<1x16x16x3xbf16> to vector<16x16x3xbf16>
    %c0_i32_2 = arith.constant 0 : i32
    %6 = arith.addi %1, %c0_i32_2 : i32
    %c0_3 = arith.constant 0 : index
    %7 = arith.index_cast %6 : i32 to index
    %c0_4 = arith.constant 0 : index
    %c0_5 = arith.constant 0 : index
    %8 = vector.load %arg3[%c0_3, %7, %c0_4, %c0_5] : memref<1x17x17x3xbf16, #tpu.memory_space<vmem>>, vector<1x16x16x3xbf16>
    %9 = vector.shape_cast %8 : vector<1x16x16x3xbf16> to vector<16x16x3xbf16>
    %c0_i32_6 = arith.constant 0 : i32
    %10 = arith.addi %1, %c0_i32_6 : i32
    %c0_7 = arith.constant 0 : index
    %11 = arith.index_cast %10 : i32 to index
    %c1 = arith.constant 1 : index
    %c0_8 = arith.constant 0 : index
    %12 = vector.load %arg2[%c0_7, %11, %c1, %c0_8] : memref<1x17x17x3xbf16, #tpu.memory_space<vmem>>, vector<1x16x16x3xbf16>
    %13 = vector.shape_cast %12 : vector<1x16x16x3xbf16> to vector<16x16x3xbf16>
    %c0_i32_9 = arith.constant 0 : i32
    %14 = arith.addi %1, %c0_i32_9 : i32
    %c0_10 = arith.constant 0 : index
    %15 = arith.index_cast %14 : i32 to index
    %c0_11 = arith.constant 0 : index
    %c0_12 = arith.constant 0 : index
    %16 = vector.load %arg4[%c0_10, %15, %c0_11, %c0_12] : memref<1x17x17x3xbf16, #tpu.memory_space<vmem>>, vector<1x16x16x3xbf16>
    %17 = vector.shape_cast %16 : vector<1x16x16x3xbf16> to vector<16x16x3xbf16>
    %c0_i32_13 = arith.constant 0 : i32
    %18 = arith.addi %1, %c0_i32_13 : i32
    %c0_14 = arith.constant 0 : index
    %19 = arith.index_cast %18 : i32 to index
    %c0_15 = arith.constant 0 : index
    %c0_16 = arith.constant 0 : index
    %20 = vector.load %arg5[%c0_14, %19, %c0_15, %c0_16] : memref<1x17x17x3xbf16, #tpu.memory_space<vmem>>, vector<1x16x16x3xbf16>
    %21 = vector.shape_cast %20 : vector<1x16x16x3xbf16> to vector<16x16x3xbf16>
    %c0_i32_17 = arith.constant 0 : i32
    %22 = arith.addi %1, %c0_i32_17 : i32
    %c0_18 = arith.constant 0 : index
    %23 = arith.index_cast %22 : i32 to index
    %c1_19 = arith.constant 1 : index
    %c0_20 = arith.constant 0 : index
    %24 = vector.load %arg4[%c0_18, %23, %c1_19, %c0_20] : memref<1x17x17x3xbf16, #tpu.memory_space<vmem>>, vector<1x16x16x3xbf16>
    %25 = vector.shape_cast %24 : vector<1x16x16x3xbf16> to vector<16x16x3xbf16>
    %c1_i32 = arith.constant 1 : i32
    %26 = arith.addi %1, %c1_i32 : i32
    %c0_21 = arith.constant 0 : index
    %27 = arith.index_cast %26 : i32 to index
    %c0_22 = arith.constant 0 : index
    %c0_23 = arith.constant 0 : index
    %28 = vector.load %arg2[%c0_21, %27, %c0_22, %c0_23] : memref<1x17x17x3xbf16, #tpu.memory_space<vmem>>, vector<1x16x16x3xbf16>
    %29 = vector.shape_cast %28 : vector<1x16x16x3xbf16> to vector<16x16x3xbf16>
    %c1_i32_24 = arith.constant 1 : i32
    %30 = arith.addi %1, %c1_i32_24 : i32
    %c0_25 = arith.constant 0 : index
    %31 = arith.index_cast %30 : i32 to index
    %c0_26 = arith.constant 0 : index
    %c0_27 = arith.constant 0 : index
    %32 = vector.load %arg3[%c0_25, %31, %c0_26, %c0_27] : memref<1x17x17x3xbf16, #tpu.memory_space<vmem>>, vector<1x16x16x3xbf16>
    %33 = vector.shape_cast %32 : vector<1x16x16x3xbf16> to vector<16x16x3xbf16>
    %c1_i32_28 = arith.constant 1 : i32
    %34 = arith.addi %1, %c1_i32_28 : i32
    %c0_29 = arith.constant 0 : index
    %35 = arith.index_cast %34 : i32 to index
    %c1_30 = arith.constant 1 : index
    %c0_31 = arith.constant 0 : index
    %36 = vector.load %arg2[%c0_29, %35, %c1_30, %c0_31] : memref<1x17x17x3xbf16, #tpu.memory_space<vmem>>, vector<1x16x16x3xbf16>
    %37 = vector.shape_cast %36 : vector<1x16x16x3xbf16> to vector<16x16x3xbf16>
    %38 = tpu.concatenate %5, %9, %13, %17, %21, %25, %29, %33, %37 in 2 : vector<16x16x3xbf16>, vector<16x16x3xbf16>, vector<16x16x3xbf16>, vector<16x16x3xbf16>, vector<16x16x3xbf16>, vector<16x16x3xbf16>, vector<16x16x3xbf16>, vector<16x16x3xbf16>, vector<16x16x3xbf16> -> vector<16x16x27xbf16>
    %39 = vector.shape_cast %38 : vector<16x16x27xbf16> to vector<256x27xbf16>
    %c0_32 = arith.constant 0 : index
    %c0_33 = arith.constant 0 : index
    %40 = vector.load %arg6[%c0_32, %c0_33] : memref<27x16xbf16, #tpu.memory_space<vmem>>, vector<27x16xbf16>
    %cst = arith.constant dense<0.000000e+00> : vector<256x16xf32>
    %41 = tpu.matmul %39, %40, %cst {dimension_numbers = #tpu.dot_dimension_numbers<[1], [0], [0], [1], [0, 0, 1, 1], [], []>} : vector<256x27xbf16>, vector<27x16xbf16>, vector<256x16xf32> -> vector<256x16xf32>
    %c0_34 = arith.constant 0 : index
    %c0_35 = arith.constant 0 : index
    %42 = vector.load %arg7[%c0_34, %c0_35] : memref<1x16xf32, #tpu.memory_space<vmem>>, vector<1x16xf32>
    %43 = vector.broadcast %42 : vector<1x16xf32> to vector<256x16xf32>
    %44 = arith.addf %41, %43 : vector<256x16xf32>
    %cst_36 = arith.constant 5.000000e-01 : f32
    %45 = vector.broadcast %cst_36 : f32 to vector<256x16xf32>
    %46 = arith.mulf %45, %44 : vector<256x16xf32>
    %cst_37 = arith.constant 4.471500e-02 : f32
    %47 = vector.broadcast %cst_37 : f32 to vector<256x16xf32>
    %48 = arith.mulf %47, %44 : vector<256x16xf32>
    %49 = arith.mulf %48, %44 : vector<256x16xf32>
    %50 = arith.mulf %49, %44 : vector<256x16xf32>
    %51 = arith.addf %44, %50 : vector<256x16xf32>
    %cst_38 = arith.constant 0.797884583 : f32
    %52 = vector.broadcast %cst_38 : f32 to vector<256x16xf32>
    %53 = arith.mulf %52, %51 : vector<256x16xf32>
    %54 = math.tanh %53 : vector<256x16xf32>
    %cst_39 = arith.constant 1.000000e+00 : f32
    %55 = vector.broadcast %cst_39 : f32 to vector<256x16xf32>
    %56 = arith.addf %55, %54 : vector<256x16xf32>
    %57 = arith.mulf %46, %56 : vector<256x16xf32>
    %58 = arith.truncf %57 : vector<256x16xf32> to vector<256x16xbf16>
    %c0_40 = arith.constant 0 : index
    %c0_41 = arith.constant 0 : index
    %c0_42 = arith.constant 0 : index
    %59 = vector.load %arg8[%c0_40, %c0_41, %c0_42] : memref<1x256x16xbf16, #tpu.memory_space<vmem>>, vector<1x256x16xbf16>
    %60 = vector.shape_cast %59 : vector<1x256x16xbf16> to vector<256x16xbf16>
    %61 = vector.shape_cast %58 : vector<256x16xbf16> to vector<1x256x16xbf16>
    tpu.vector_store %arg8[%c0_40, %c0_41, %c0_42], %61 {strides = array<i32>} : memref<1x256x16xbf16, #tpu.memory_space<vmem>>, vector<1x256x16xbf16>,
    return
  }
  func.func @transform_0(%arg0: i32, %arg1: i32) -> (i32, i32, i32, i32) {
    %c0_i32 = arith.constant 0 : i32
    %c0_i32_0 = arith.constant 0 : i32
    %c0_i32_1 = arith.constant 0 : i32
    %c0_i32_2 = arith.constant 0 : i32
    return %arg0, %c0_i32, %c0_i32_0, %c0_i32_1 : i32, i32, i32, i32
  }
  func.func @transform_1(%arg0: i32, %arg1: i32) -> (i32, i32, i32, i32) {
    %c0_i32 = arith.constant 0 : i32
    %c0_i32_0 = arith.constant 0 : i32
    %c0_i32_1 = arith.constant 0 : i32
    %c0_i32_2 = arith.constant 0 : i32
    return %arg0, %c0_i32, %c0_i32_0, %c0_i32_1 : i32, i32, i32, i32
  }
  func.func @transform_2(%arg0: i32, %arg1: i32) -> (i32, i32, i32, i32) {
    %c0_i32 = arith.constant 0 : i32
    %c0_i32_0 = arith.constant 0 : i32
    %c0_i32_1 = arith.constant 0 : i32
    %c0_i32_2 = arith.constant 0 : i32
    return %arg0, %c0_i32, %c0_i32_0, %c0_i32_1 : i32, i32, i32, i32
  }
  func.func @transform_3(%arg0: i32, %arg1: i32) -> (i32, i32, i32, i32) {
    %c0_i32 = arith.constant 0 : i32
    %c0_i32_0 = arith.constant 0 : i32
    %c0_i32_1 = arith.constant 0 : i32
    %c0_i32_2 = arith.constant 0 : i32
    return %arg0, %c0_i32, %c0_i32_0, %c0_i32_1 : i32, i32, i32, i32
  }
  func.func @transform_4(%arg0: i32, %arg1: i32) -> (i32, i32) {
    %c0_i32 = arith.constant 0 : i32
    %c0_i32_0 = arith.constant 0 : i32
    %c0_i32_1 = arith.constant 0 : i32
    return %c0_i32, %c0_i32_0 : i32, i32
  }
  func.func @transform_5(%arg0: i32, %arg1: i32) -> (i32, i32) {
    %c0_i32 = arith.constant 0 : i32
    %c0_i32_0 = arith.constant 0 : i32
    %c0_i32_1 = arith.constant 0 : i32
    return %c0_i32, %c0_i32_0 : i32, i32
  }
  func.func @transform_6(%arg0: i32, %arg1: i32) -> (i32, i32, i32) {
    %c0_i32 = arith.constant 0 : i32
    %c0_i32_0 = arith.constant 0 : i32
    return %arg0, %arg1, %c0_i32 : i32, i32, i32
  }
}

module attributes {stable_mosaic.version = 11 : i64} {
  func.func @_stem_conv_kernel(%arg0: i32, %arg1: i32, %arg2: memref<1x9x9x16xbf16, #tpu.memory_space<vmem>>, %arg3: memref<1x9x9x16xbf16, #tpu.memory_space<vmem>>, %arg4: memref<1x9x9x16xbf16, #tpu.memory_space<vmem>>, %arg5: memref<1x9x9x16xbf16, #tpu.memory_space<vmem>>, %arg6: memref<144x32xbf16, #tpu.memory_space<vmem>>, %arg7: memref<1x32xf32, #tpu.memory_space<vmem>>, %arg8: memref<1x64x32xf32, #tpu.memory_space<vmem>>) attributes {dimension_semantics = [#tpu.dimension_semantics<parallel>, #tpu.dimension_semantics<parallel>], iteration_bounds = array<i64: 2, 1>, scalar_prefetch = 0 : i64, scratch_operands = 0 : i64, tpu.core_type = #tpu.core_type<tc>, window_params = [{transform_indices = @transform_0, window_bounds = array<i64: 1, 9, 9, 16>}, {transform_indices = @transform_1, window_bounds = array<i64: 1, 9, 9, 16>}, {transform_indices = @transform_2, window_bounds = array<i64: 1, 9, 9, 16>}, {transform_indices = @transform_3, window_bounds = array<i64: 1, 9, 9, 16>}, {pipeline_mode = #tpu.pipeline_mode<synchronous>, transform_indices = @transform_4, window_bounds = array<i64: 144, 32>}, {pipeline_mode = #tpu.pipeline_mode<synchronous>, transform_indices = @transform_5, window_bounds = array<i64: 1, 32>}, {transform_indices = @transform_6, window_bounds = array<i64: 1, 64, 32>}]} {
    %c8_i32 = arith.constant 8 : i32
    %0 = arith.muli %arg1, %c8_i32 : i32
    %1 = tpu.assume_multiple %0, 8 : i32
    %c0_i32 = arith.constant 0 : i32
    %2 = arith.addi %1, %c0_i32 : i32
    %c0 = arith.constant 0 : index
    %3 = arith.index_cast %2 : i32 to index
    %c0_0 = arith.constant 0 : index
    %c0_1 = arith.constant 0 : index
    %4 = vector.load %arg2[%c0, %3, %c0_0, %c0_1] : memref<1x9x9x16xbf16, #tpu.memory_space<vmem>>, vector<1x8x8x16xbf16>
    %5 = vector.shape_cast %4 : vector<1x8x8x16xbf16> to vector<8x8x16xbf16>
    %c0_i32_2 = arith.constant 0 : i32
    %6 = arith.addi %1, %c0_i32_2 : i32
    %c0_3 = arith.constant 0 : index
    %7 = arith.index_cast %6 : i32 to index
    %c0_4 = arith.constant 0 : index
    %c0_5 = arith.constant 0 : index
    %8 = vector.load %arg3[%c0_3, %7, %c0_4, %c0_5] : memref<1x9x9x16xbf16, #tpu.memory_space<vmem>>, vector<1x8x8x16xbf16>
    %9 = vector.shape_cast %8 : vector<1x8x8x16xbf16> to vector<8x8x16xbf16>
    %c0_i32_6 = arith.constant 0 : i32
    %10 = arith.addi %1, %c0_i32_6 : i32
    %c0_7 = arith.constant 0 : index
    %11 = arith.index_cast %10 : i32 to index
    %c1 = arith.constant 1 : index
    %c0_8 = arith.constant 0 : index
    %12 = vector.load %arg2[%c0_7, %11, %c1, %c0_8] : memref<1x9x9x16xbf16, #tpu.memory_space<vmem>>, vector<1x8x8x16xbf16>
    %13 = vector.shape_cast %12 : vector<1x8x8x16xbf16> to vector<8x8x16xbf16>
    %c0_i32_9 = arith.constant 0 : i32
    %14 = arith.addi %1, %c0_i32_9 : i32
    %c0_10 = arith.constant 0 : index
    %15 = arith.index_cast %14 : i32 to index
    %c0_11 = arith.constant 0 : index
    %c0_12 = arith.constant 0 : index
    %16 = vector.load %arg4[%c0_10, %15, %c0_11, %c0_12] : memref<1x9x9x16xbf16, #tpu.memory_space<vmem>>, vector<1x8x8x16xbf16>
    %17 = vector.shape_cast %16 : vector<1x8x8x16xbf16> to vector<8x8x16xbf16>
    %c0_i32_13 = arith.constant 0 : i32
    %18 = arith.addi %1, %c0_i32_13 : i32
    %c0_14 = arith.constant 0 : index
    %19 = arith.index_cast %18 : i32 to index
    %c0_15 = arith.constant 0 : index
    %c0_16 = arith.constant 0 : index
    %20 = vector.load %arg5[%c0_14, %19, %c0_15, %c0_16] : memref<1x9x9x16xbf16, #tpu.memory_space<vmem>>, vector<1x8x8x16xbf16>
    %21 = vector.shape_cast %20 : vector<1x8x8x16xbf16> to vector<8x8x16xbf16>
    %c0_i32_17 = arith.constant 0 : i32
    %22 = arith.addi %1, %c0_i32_17 : i32
    %c0_18 = arith.constant 0 : index
    %23 = arith.index_cast %22 : i32 to index
    %c1_19 = arith.constant 1 : index
    %c0_20 = arith.constant 0 : index
    %24 = vector.load %arg4[%c0_18, %23, %c1_19, %c0_20] : memref<1x9x9x16xbf16, #tpu.memory_space<vmem>>, vector<1x8x8x16xbf16>
    %25 = vector.shape_cast %24 : vector<1x8x8x16xbf16> to vector<8x8x16xbf16>
    %c1_i32 = arith.constant 1 : i32
    %26 = arith.addi %1, %c1_i32 : i32
    %c0_21 = arith.constant 0 : index
    %27 = arith.index_cast %26 : i32 to index
    %c0_22 = arith.constant 0 : index
    %c0_23 = arith.constant 0 : index
    %28 = vector.load %arg2[%c0_21, %27, %c0_22, %c0_23] : memref<1x9x9x16xbf16, #tpu.memory_space<vmem>>, vector<1x8x8x16xbf16>
    %29 = vector.shape_cast %28 : vector<1x8x8x16xbf16> to vector<8x8x16xbf16>
    %c1_i32_24 = arith.constant 1 : i32
    %30 = arith.addi %1, %c1_i32_24 : i32
    %c0_25 = arith.constant 0 : index
    %31 = arith.index_cast %30 : i32 to index
    %c0_26 = arith.constant 0 : index
    %c0_27 = arith.constant 0 : index
    %32 = vector.load %arg3[%c0_25, %31, %c0_26, %c0_27] : memref<1x9x9x16xbf16, #tpu.memory_space<vmem>>, vector<1x8x8x16xbf16>
    %33 = vector.shape_cast %32 : vector<1x8x8x16xbf16> to vector<8x8x16xbf16>
    %c1_i32_28 = arith.constant 1 : i32
    %34 = arith.addi %1, %c1_i32_28 : i32
    %c0_29 = arith.constant 0 : index
    %35 = arith.index_cast %34 : i32 to index
    %c1_30 = arith.constant 1 : index
    %c0_31 = arith.constant 0 : index
    %36 = vector.load %arg2[%c0_29, %35, %c1_30, %c0_31] : memref<1x9x9x16xbf16, #tpu.memory_space<vmem>>, vector<1x8x8x16xbf16>
    %37 = vector.shape_cast %36 : vector<1x8x8x16xbf16> to vector<8x8x16xbf16>
    %38 = tpu.concatenate %5, %9, %13, %17, %21, %25, %29, %33, %37 in 2 : vector<8x8x16xbf16>, vector<8x8x16xbf16>, vector<8x8x16xbf16>, vector<8x8x16xbf16>, vector<8x8x16xbf16>, vector<8x8x16xbf16>, vector<8x8x16xbf16>, vector<8x8x16xbf16>, vector<8x8x16xbf16> -> vector<8x8x144xbf16>
    %39 = vector.shape_cast %38 : vector<8x8x144xbf16> to vector<64x144xbf16>
    %c0_32 = arith.constant 0 : index
    %c0_33 = arith.constant 0 : index
    %40 = vector.load %arg6[%c0_32, %c0_33] : memref<144x32xbf16, #tpu.memory_space<vmem>>, vector<144x32xbf16>
    %cst = arith.constant dense<0.000000e+00> : vector<64x32xf32>
    %41 = tpu.matmul %39, %40, %cst {dimension_numbers = #tpu.dot_dimension_numbers<[1], [0], [0], [1], [0, 0, 1, 1], [], []>} : vector<64x144xbf16>, vector<144x32xbf16>, vector<64x32xf32> -> vector<64x32xf32>
    %c0_34 = arith.constant 0 : index
    %c0_35 = arith.constant 0 : index
    %42 = vector.load %arg7[%c0_34, %c0_35] : memref<1x32xf32, #tpu.memory_space<vmem>>, vector<1x32xf32>
    %43 = vector.broadcast %42 : vector<1x32xf32> to vector<64x32xf32>
    %44 = arith.addf %41, %43 : vector<64x32xf32>
    %cst_36 = arith.constant 5.000000e-01 : f32
    %45 = vector.broadcast %cst_36 : f32 to vector<64x32xf32>
    %46 = arith.mulf %45, %44 : vector<64x32xf32>
    %cst_37 = arith.constant 4.471500e-02 : f32
    %47 = vector.broadcast %cst_37 : f32 to vector<64x32xf32>
    %48 = arith.mulf %47, %44 : vector<64x32xf32>
    %49 = arith.mulf %48, %44 : vector<64x32xf32>
    %50 = arith.mulf %49, %44 : vector<64x32xf32>
    %51 = arith.addf %44, %50 : vector<64x32xf32>
    %cst_38 = arith.constant 0.797884583 : f32
    %52 = vector.broadcast %cst_38 : f32 to vector<64x32xf32>
    %53 = arith.mulf %52, %51 : vector<64x32xf32>
    %54 = math.tanh %53 : vector<64x32xf32>
    %cst_39 = arith.constant 1.000000e+00 : f32
    %55 = vector.broadcast %cst_39 : f32 to vector<64x32xf32>
    %56 = arith.addf %55, %54 : vector<64x32xf32>
    %57 = arith.mulf %46, %56 : vector<64x32xf32>
    %c0_40 = arith.constant 0 : index
    %c0_41 = arith.constant 0 : index
    %c0_42 = arith.constant 0 : index
    %58 = vector.load %arg8[%c0_40, %c0_41, %c0_42] : memref<1x64x32xf32, #tpu.memory_space<vmem>>, vector<1x64x32xf32>
    %59 = vector.shape_cast %58 : vector<1x64x32xf32> to vector<64x32xf32>
    %60 = vector.shape_cast %57 : vector<64x32xf32> to vector<1x64x32xf32>
    tpu.vector_store %arg8[%c0_40, %c0_41, %c0_42], %60 {strides = array<i32>} : memref<1x64x32xf32, #tpu.memory_space<vmem>>, vector<1x64x32xf32>,
    return
  }
  func.func @transform_0(%arg0: i32, %arg1: i32) -> (i32, i32, i32, i32) {
    %c0_i32 = arith.constant 0 : i32
    %c0_i32_0 = arith.constant 0 : i32
    %c0_i32_1 = arith.constant 0 : i32
    %c0_i32_2 = arith.constant 0 : i32
    return %arg0, %c0_i32, %c0_i32_0, %c0_i32_1 : i32, i32, i32, i32
  }
  func.func @transform_1(%arg0: i32, %arg1: i32) -> (i32, i32, i32, i32) {
    %c0_i32 = arith.constant 0 : i32
    %c0_i32_0 = arith.constant 0 : i32
    %c0_i32_1 = arith.constant 0 : i32
    %c0_i32_2 = arith.constant 0 : i32
    return %arg0, %c0_i32, %c0_i32_0, %c0_i32_1 : i32, i32, i32, i32
  }
  func.func @transform_2(%arg0: i32, %arg1: i32) -> (i32, i32, i32, i32) {
    %c0_i32 = arith.constant 0 : i32
    %c0_i32_0 = arith.constant 0 : i32
    %c0_i32_1 = arith.constant 0 : i32
    %c0_i32_2 = arith.constant 0 : i32
    return %arg0, %c0_i32, %c0_i32_0, %c0_i32_1 : i32, i32, i32, i32
  }
  func.func @transform_3(%arg0: i32, %arg1: i32) -> (i32, i32, i32, i32) {
    %c0_i32 = arith.constant 0 : i32
    %c0_i32_0 = arith.constant 0 : i32
    %c0_i32_1 = arith.constant 0 : i32
    %c0_i32_2 = arith.constant 0 : i32
    return %arg0, %c0_i32, %c0_i32_0, %c0_i32_1 : i32, i32, i32, i32
  }
  func.func @transform_4(%arg0: i32, %arg1: i32) -> (i32, i32) {
    %c0_i32 = arith.constant 0 : i32
    %c0_i32_0 = arith.constant 0 : i32
    %c0_i32_1 = arith.constant 0 : i32
    return %c0_i32, %c0_i32_0 : i32, i32
  }
  func.func @transform_5(%arg0: i32, %arg1: i32) -> (i32, i32) {
    %c0_i32 = arith.constant 0 : i32
    %c0_i32_0 = arith.constant 0 : i32
    %c0_i32_1 = arith.constant 0 : i32
    return %c0_i32, %c0_i32_0 : i32, i32
  }
  func.func @transform_6(%arg0: i32, %arg1: i32) -> (i32, i32, i32) {
    %c0_i32 = arith.constant 0 : i32
    %c0_i32_0 = arith.constant 0 : i32
    return %arg0, %arg1, %c0_i32 : i32, i32, i32
  }
}

</mosaic_0001>

<llo_original>
// kernel: stem_forward.3
$region0: #{stem_forward.3}
  #allocation0 [shape = 'u32[]', space=smem, size = 0x4, offset = 0x4, fixed_abs, tag = 'smem constant byte address 0x4 - core index']
  #allocation1 [shape = 'u32[72,128]{1,0:T(1,128)}', space=vmem, size = 0x9000, scoped, tag = 'internal scratch']
  %s0 = inlined_call_operand.vmem [shape: bf16[2,9,9,16], index: 0, kind: input, shape index: {}]
  %s1 = inlined_call_operand.vmem [shape: bf16[2,9,9,16], index: 1, kind: input, shape index: {}]
  %s2 = inlined_call_operand.vmem [shape: bf16[2,9,9,16], index: 2, kind: input, shape index: {}]
  %s3 = inlined_call_operand.vmem [shape: bf16[2,9,9,16], index: 3, kind: input, shape index: {}]
  %s4 = inlined_call_operand.vmem [shape: bf16[144,32], index: 4, kind: input, shape index: {}]
  %s5 = inlined_call_operand.vmem [shape: f32[1,32], index: 5, kind: input, shape index: {}]
  %s6 = inlined_call_operand.hbm [shape: f32[2,64,32], index: 6, kind: output, shape index: {}]
  %s7 = sld [smem:[#allocation0]]
  $region57: #{stem_forward.3} parent=0
    _
  %s9 = ssub.s32 1, %s7
  %s10 = scalar_select 0, %s9, %s7
  $region1: #{stem_forward.3} parent=0
    #allocation2 [shape = 'u8[65536]{0}', space=vmem, size = 0x10000, scoped, tag = 'output window, operand 0']
    #allocation3 [shape = 's32[2]{0}', space=sflag, size = 0x8, scoped, tag = 'scoped memory for stem_forward.3']
    %11 = vsyncpa [#allocation3], 0
    %s12 = scalar_lea.sflag [#allocation3], 1
    %13 = vsyncpa %s12, 0
    loop: start=0, step=1, limit=4
    $region2: #{stem_forward.3} parent=1 // loop_pre_header
      _
    $region3: #{stem_forward.3} parent=1 // loop_header
      %s15 = sphi 0, %s19
      %p16 = scmp.ge.s32.totalorder %s15, 4
      %s22 = sphi 0, %s34
      %s23 = sphi 0, %s30
      %s24 = sphi 0, %s22
      %s25 = sphi 0, %s23
      %s26 = sphi 0, %s24
      %s27 = sphi 0, %s25
      %s37 = sphi 0, %s39
      %s40 = sphi 0, %s37
      %s41 = sphi 0, %s40
      %s57 = sphi 0, %s41
      %s63 = sphi 0, %s65
      %s66 = sphi 0, %s63
      %s67 = sphi 0, %s66
      %s83 = sphi 0, %s67
      %s89 = sphi 0, %s91
      %s92 = sphi 0, %s89
      %s93 = sphi 0, %s92
      %s109 = sphi 0, %s93
      %s115 = sphi 0, %s117
      %s118 = sphi 0, %s115
      %s119 = sphi 0, %s118
      %s135 = sphi 0, %s119
      %s139 = sphi 0, %s139
      %s141 = sphi 0, %s139
      %s142 = sphi 0, %s141
      %s156 = sphi 0, %s142
      %s160 = sphi 0, %s160
      %s162 = sphi 0, %s160
      %s163 = sphi 0, %s162
      %s177 = sphi 0, %s163
      %s185 = sphi 0, %s187
      %s188 = sphi 0, %s185
      %s189 = sphi 0, %s188
      %s205 = sphi 0, %s189
    $region4: #{stem_forward.3} parent=1 // loop_header_branch
      %18 = sbr.rel (%p16) target = $region8
    $region5: #{stem_forward.3} parent=1 // loop_body
      %s20 = ssub.s32 %s15, 1
      %s21 = ssub.s32 %s15, 2
      %s28 = sadd.s32 1, %s23
      %p29 = scmp.ge.s32.totalorder %s28, 1
      %s30 = scalar_select %p29, 0, %s28
      %s31 = sadd.s32 1, %s22
      %s32 = scalar_select %p29, %s31, %s22
      %p33 = scmp.ge.s32.totalorder %s32, 2
      %s34 = scalar_select %p33, 0, %s32
      %s35 = ssub.s32 %s22, %s34
      %p36 = scmp.eq.s32.totalorder %s35, 0
      %s38 = sadd.s32 %s37, 1
      %s39 = scalar_select %p36, %s37, %s38
      %p42 = pneg %p36
      %p43 = scmp.eq.s32.totalorder %s15, 1
      %p44 = por %p42, %p43
      %p45 = scmp.ne.s32.totalorder %s37, %s40
      %p46 = scmp.eq.s32.totalorder %s15, 0
      %p47 = por %p45, %p46
      %p48 = scmp.ne.s32.totalorder %s37, %s40
      %p49 = scmp.eq.s32.totalorder %s20, 1
      %p50 = por %p48, %p49
      %p51 = scmp.ne.s32.totalorder %s40, %s41
      %p52 = scmp.eq.s32.totalorder %s20, 0
      %p53 = por %p51, %p52
      %p54 = scmp.ne.s32.totalorder %s40, %s41
      %p55 = scmp.eq.s32.totalorder %s21, 1
      %p56 = por %p54, %p55
      %p58 = scmp.ne.s32.totalorder %s41, %s57
      %p59 = scmp.eq.s32.totalorder %s21, 0
      %p60 = por %p58, %p59
      %s61 = ssub.s32 %s22, %s34
      %p62 = scmp.eq.s32.totalorder %s61, 0
      %s64 = sadd.s32 %s63, 1
      %s65 = scalar_select %p62, %s63, %s64
      %p68 = pneg %p62
      %p69 = scmp.eq.s32.totalorder %s15, 1
      %p70 = por %p68, %p69
      %p71 = scmp.ne.s32.totalorder %s63, %s66
      %p72 = scmp.eq.s32.totalorder %s15, 0
      %p73 = por %p71, %p72
      %p74 = scmp.ne.s32.totalorder %s63, %s66
      %p75 = scmp.eq.s32.totalorder %s20, 1
      %p76 = por %p74, %p75
      %p77 = scmp.ne.s32.totalorder %s66, %s67
      %p78 = scmp.eq.s32.totalorder %s20, 0
      %p79 = por %p77, %p78
      %p80 = scmp.ne.s32.totalorder %s66, %s67
      %p81 = scmp.eq.s32.totalorder %s21, 1
      %p82 = por %p80, %p81
      %p84 = scmp.ne.s32.totalorder %s67, %s83
      %p85 = scmp.eq.s32.totalorder %s21, 0
      %p86 = por %p84, %p85
      %s87 = ssub.s32 %s22, %s34
      %p88 = scmp.eq.s32.totalorder %s87, 0
      %s90 = sadd.s32 %s89, 1
      %s91 = scalar_select %p88, %s89, %s90
      %p94 = pneg %p88
      %p95 = scmp.eq.s32.totalorder %s15, 1
      %p96 = por %p94, %p95
      %p97 = scmp.ne.s32.totalorder %s89, %s92
      %p98 = scmp.eq.s32.totalorder %s15, 0
      %p99 = por %p97, %p98
      %p100 = scmp.ne.s32.totalorder %s89, %s92
      %p101 = scmp.eq.s32.totalorder %s20, 1
      %p102 = por %p100, %p101
      %p103 = scmp.ne.s32.totalorder %s92, %s93
      %p104 = scmp.eq.s32.totalorder %s20, 0
      %p105 = por %p103, %p104
      %p106 = scmp.ne.s32.totalorder %s92, %s93
      %p107 = scmp.eq.s32.totalorder %s21, 1
      %p108 = por %p106, %p107
      %p110 = scmp.ne.s32.totalorder %s93, %s109
      %p111 = scmp.eq.s32.totalorder %s21, 0
      %p112 = por %p110, %p111
      %s113 = ssub.s32 %s22, %s34
      %p114 = scmp.eq.s32.totalorder %s113, 0
      %s116 = sadd.s32 %s115, 1
      %s117 = scalar_select %p114, %s115, %s116
      %p120 = pneg %p114
      %p121 = scmp.eq.s32.totalorder %s15, 1
      %p122 = por %p120, %p121
      %p123 = scmp.ne.s32.totalorder %s115, %s118
      %p124 = scmp.eq.s32.totalorder %s15, 0
      %p125 = por %p123, %p124
      %p126 = scmp.ne.s32.totalorder %s115, %s118
      %p127 = scmp.eq.s32.totalorder %s20, 1
      %p128 = por %p126, %p127
      %p129 = scmp.ne.s32.totalorder %s118, %s119
      %p130 = scmp.eq.s32.totalorder %s20, 0
      %p131 = por %p129, %p130
      %p132 = scmp.ne.s32.totalorder %s118, %s119
      %p133 = scmp.eq.s32.totalorder %s21, 1
      %p134 = por %p132, %p133
      %p136 = scmp.ne.s32.totalorder %s119, %s135
      %p137 = scmp.eq.s32.totalorder %s21, 0
      %p138 = por %p136, %p137
      %s140 = sadd.s32 %s139, 1
      %p143 = scmp.eq.s32.totalorder %s15, 1
      %p144 = scmp.ne.s32.totalorder %s139, %s141
      %p145 = scmp.eq.s32.totalorder %s15, 0
      %p146 = por %p144, %p145
      %p147 = scmp.ne.s32.totalorder %s139, %s141
      %p148 = scmp.eq.s32.totalorder %s20, 1
      %p149 = por %p147, %p148
      %p150 = scmp.ne.s32.totalorder %s141, %s142
      %p151 = scmp.eq.s32.totalorder %s20, 0
      %p152 = por %p150, %p151
      %p153 = scmp.ne.s32.totalorder %s141, %s142
      %p154 = scmp.eq.s32.totalorder %s21, 1
      %p155 = por %p153, %p154
      %p157 = scmp.ne.s32.totalorder %s142, %s156
      %p158 = scmp.eq.s32.totalorder %s21, 0
      %p159 = por %p157, %p158
      %s161 = sadd.s32 %s160, 1
      %p164 = scmp.eq.s32.totalorder %s15, 1
      %p165 = scmp.ne.s32.totalorder %s160, %s162
      %p166 = scmp.eq.s32.totalorder %s15, 0
      %p167 = por %p165, %p166
      %p168 = scmp.ne.s32.totalorder %s160, %s162
      %p169 = scmp.eq.s32.totalorder %s20, 1
      %p170 = por %p168, %p169
      %p171 = scmp.ne.s32.totalorder %s162, %s163
      %p172 = scmp.eq.s32.totalorder %s20, 0
      %p173 = por %p171, %p172
      %p174 = scmp.ne.s32.totalorder %s162, %s163
      %p175 = scmp.eq.s32.totalorder %s21, 1
      %p176 = por %p174, %p175
      %p178 = scmp.ne.s32.totalorder %s163, %s177
      %p179 = scmp.eq.s32.totalorder %s21, 0
      %p180 = por %p178, %p179
      %s181 = ssub.s32 %s22, %s34
      %s182 = ssub.s32 %s23, %s30
      %s183 = sor.u32 %s181, %s182
      %p184 = scmp.eq.s32.totalorder %s183, 0
      %s186 = sadd.s32 %s185, 1
      %s187 = scalar_select %p184, %s185, %s186
      %p190 = pneg %p184
      %p191 = scmp.eq.s32.totalorder %s15, 1
      %p192 = por %p190, %p191
      %p193 = scmp.ne.s32.totalorder %s185, %s188
      %p194 = scmp.eq.s32.totalorder %s15, 0
      %p195 = por %p193, %p194
      %p196 = scmp.ne.s32.totalorder %s185, %s188
      %p197 = scmp.eq.s32.totalorder %s20, 1
      %p198 = por %p196, %p197
      %p199 = scmp.ne.s32.totalorder %s188, %s189
      %p200 = scmp.eq.s32.totalorder %s20, 0
      %p201 = por %p199, %p200
      %p202 = scmp.ne.s32.totalorder %s188, %s189
      %p203 = scmp.eq.s32.totalorder %s21, 1
      %p204 = por %p202, %p203
      %p206 = scmp.ne.s32.totalorder %s189, %s205
      %p207 = scmp.eq.s32.totalorder %s21, 0
      %p208 = por %p206, %p207
      %p209 = scmp.le.s32.totalorder 1, %s15
      %p210 = scmp.lt.s32.totalorder %s15, 3
      %p211 = pnand %p209, %p210
      %p212 = pneg %p211
      // Predicated region
      $region9: #{stem_forward.3} parent=5 // pred_check
        _
      $region10: #{stem_forward.3} parent=5 // pred_check_branch
        %214 = sbr.rel (%p211) target = $region12
      $region11: #{stem_forward.3} parent=5 // pred_region
        %s215 = ssub.s32 %s15, 1
        // Predicated region
        $region13: #{stem_forward.3} parent=11 // pred_check
          %p216 = pneg %p152
        $region14: #{stem_forward.3} parent=11 // pred_check_branch
          %218 = sbr.rel (%p216) target = $region16
        $region15: #{stem_forward.3} parent=11 // pred_region
          _
        $region16: #{stem_forward.3} parent=11 // pred_fallthru
          _
        // Predicated region
        $region17: #{stem_forward.3} parent=11 // pred_check
          %p219 = pneg %p173
        $region18: #{stem_forward.3} parent=11 // pred_check_branch
          %221 = sbr.rel (%p219) target = $region20
        $region19: #{stem_forward.3} parent=11 // pred_region
          _
        $region20: #{stem_forward.3} parent=11 // pred_fallthru
          _
      $region12: #{stem_forward.3} parent=5 // pred_fallthru
        _
      %p222 = scmp.lt.s32.totalorder %s15, 2
      // Predicated region
      $region21: #{stem_forward.3} parent=5 // pred_check
        %p223 = pneg %p222
      $region22: #{stem_forward.3} parent=5 // pred_check_branch
        %225 = sbr.rel (%p223) target = $region24
      $region23: #{stem_forward.3} parent=5 // pred_region
        // Predicated region
        $region25: #{stem_forward.3} parent=23 // pred_check
          %p226 = pneg %p47
        $region26: #{stem_forward.3} parent=23 // pred_check_branch
          %228 = sbr.rel (%p226) target = $region28
        $region27: #{stem_forward.3} parent=23 // pred_region
          %p229 = scmp.lt.s32.totalorder %s22, 1
          %s230 = scalar_select %p229, %s22, 1
          %s231 = smul.addr %s230, 18
          %s232 = smul.addr %s231, 4
          %s233 = scalar_lea.vmem %s0, %s232
        $region28: #{stem_forward.3} parent=23 // pred_fallthru
          _
        // Predicated region
        $region29: #{stem_forward.3} parent=23 // pred_check
          %p234 = pneg %p73
        $region30: #{stem_forward.3} parent=23 // pred_check_branch
          %236 = sbr.rel (%p234) target = $region32
        $region31: #{stem_forward.3} parent=23 // pred_region
          %p237 = scmp.lt.s32.totalorder %s22, 1
          %s238 = scalar_select %p237, %s22, 1
          %s239 = smul.addr %s238, 18
          %s240 = smul.addr %s239, 4
          %s241 = scalar_lea.vmem %s1, %s240
        $region32: #{stem_forward.3} parent=23 // pred_fallthru
          _
        // Predicated region
        $region33: #{stem_forward.3} parent=23 // pred_check
          %p242 = pneg %p99
        $region34: #{stem_forward.3} parent=23 // pred_check_branch
          %244 = sbr.rel (%p242) target = $region36
        $region35: #{stem_forward.3} parent=23 // pred_region
          %p245 = scmp.lt.s32.totalorder %s22, 1
          %s246 = scalar_select %p245, %s22, 1
          %s247 = smul.addr %s246, 18
          %s248 = smul.addr %s247, 4
          %s249 = scalar_lea.vmem %s2, %s248
        $region36: #{stem_forward.3} parent=23 // pred_fallthru
          _
        // Predicated region
        $region37: #{stem_forward.3} parent=23 // pred_check
          %p250 = pneg %p125
        $region38: #{stem_forward.3} parent=23 // pred_check_branch
          %252 = sbr.rel (%p250) target = $region40
        $region39: #{stem_forward.3} parent=23 // pred_region
          %p253 = scmp.lt.s32.totalorder %s22, 1
          %s254 = scalar_select %p253, %s22, 1
          %s255 = smul.addr %s254, 18
          %s256 = smul.addr %s255, 4
          %s257 = scalar_lea.vmem %s3, %s256
        $region40: #{stem_forward.3} parent=23 // pred_fallthru
          _
      $region24: #{stem_forward.3} parent=5 // pred_fallthru
        _
      %p258 = scmp.le.s32.totalorder 1, %s15
      %p259 = scmp.lt.s32.totalorder %s15, 3
      %p260 = pnand %p258, %p259
      %p261 = pneg %p260
      // Predicated region
      $region41: #{stem_forward.3} parent=5 // pred_check
        _
      $region42: #{stem_forward.3} parent=5 // pred_check_branch
        %263 = sbr.rel (%p260) target = $region44
      $region43: #{stem_forward.3} parent=5 // pred_region
        %s264 = ssub.s32 %s15, 1
        %p265 = scmp.lt.s32.totalorder %s24, 1
        %s266 = scalar_select %p265, %s24, 1
        %s267 = smul.addr %s266, 18
        %s268 = smul.addr %s267, 4
        %s269 = scalar_lea.vmem %s0, %s268
        %p270 = pneg %p53
        %p271 = pneg %p50
        %p272 = scmp.lt.s32.totalorder %s24, 1
        %s273 = scalar_select %p272, %s24, 1
        %s274 = smul.addr %s273, 18
        %s275 = smul.addr %s274, 4
        %s276 = scalar_lea.vmem %s1, %s275
        %p277 = pneg %p79
        %p278 = pneg %p76
        %p279 = scmp.lt.s32.totalorder %s24, 1
        %s280 = scalar_select %p279, %s24, 1
        %s281 = smul.addr %s280, 18
        %s282 = smul.addr %s281, 4
        %s283 = scalar_lea.vmem %s2, %s282
        %p284 = pneg %p105
        %p285 = pneg %p102
        %p286 = scmp.lt.s32.totalorder %s24, 1
        %s287 = scalar_select %p286, %s24, 1
        %s288 = smul.addr %s287, 18
        %s289 = smul.addr %s288, 4
        %s290 = scalar_lea.vmem %s3, %s289
        %p291 = pneg %p131
        %p292 = pneg %p128
        %p293 = pneg %p152
        %p294 = pneg %p149
        %p295 = pneg %p173
        %p296 = pneg %p170
        %p297 = pneg %p201
        %p298 = pneg %p198
        %s299 = sand.u32 %s188, 1
        %s300 = scalar_lea.sflag [#allocation3], %s299
        %s301 = sand.u32 %s188, 1
        %s302 = smul.addr %s301, 64
        %s303 = scalar_lea.vmem [#allocation2], %s302
        %p304 = scmp.lt.s32.totalorder %s24, 1
        %s305 = scalar_select %p304, %s24, 1
        %s306 = smul.addr %s305, 18
        %s307 = smul.addr %s306, 4
        %s308 = scalar_lea.vmem %s0, %s307
        %p309 = scmp.lt.s32.totalorder %s24, 1
        %s310 = scalar_select %p309, %s24, 1
        %s311 = smul.addr %s310, 18
        %s312 = smul.addr %s311, 4
        %s313 = scalar_lea.vmem %s1, %s312
        %p314 = scmp.lt.s32.totalorder %s24, 1
        %s315 = scalar_select %p314, %s24, 1
        %s316 = smul.addr %s315, 18
        %s317 = smul.addr %s316, 4
        %s318 = scalar_lea.vmem %s2, %s317
        %p319 = scmp.lt.s32.totalorder %s24, 1
        %s320 = scalar_select %p319, %s24, 1
        %s321 = smul.addr %s320, 18
        %s322 = smul.addr %s321, 4
        %s323 = scalar_lea.vmem %s3, %s322
        %s324 = smul.u32 8, %s25
        %s326 = smul.u32 %s25, 8
        %s327 = smul.u32 %s326, 2
        %s328 = smul.addr %s327, 4
        %s329 = scalar_lea.vmem %s308, %s328
        %v330 = vld [vmem:[%s329] sm:$0xf]
        %v331 = vld [vmem:[%s329 + $0x8] sm:$0xf]
        %v332 = vld [vmem:[%s329 + $0x10] sm:$0xf]
        %v333 = vld [vmem:[%s329 + $0x18] sm:$0xf]
        %v334 = vld [vmem:[%s329 + $0x20] sm:$0xf]
        %v335 = vld [vmem:[%s329 + $0x28] sm:$0xf]
        %v336 = vld [vmem:[%s329 + $0x30] sm:$0xf]
        %v337 = vld [vmem:[%s329 + $0x38] sm:$0xf]
        %s338 = smul.addr %s327, 4
        %s339 = scalar_lea.vmem %s313, %s338
        %v340 = vld [vmem:[%s339] sm:$0xf]
        %v341 = vld [vmem:[%s339 + $0x8] sm:$0xf]
        %v342 = vld [vmem:[%s339 + $0x10] sm:$0xf]
        %v343 = vld [vmem:[%s339 + $0x18] sm:$0xf]
        %v344 = vld [vmem:[%s339 + $0x20] sm:$0xf]
        %v345 = vld [vmem:[%s339 + $0x28] sm:$0xf]
        %v346 = vld [vmem:[%s339 + $0x30] sm:$0xf]
        %v347 = vld [vmem:[%s339 + $0x38] sm:$0xf]
        %v348 = vld [vmem:[%s329 + $0x4] sm:$0x1]
        %v349 = vld [vmem:[%s329 + $0xc] sm:$0x1]
        %v350 = vld [vmem:[%s329 + $0x14] sm:$0x1]
        %v351 = vld [vmem:[%s329 + $0x1c] sm:$0x1]
        %v352 = vld [vmem:[%s329 + $0x24] sm:$0x1]
        %v353 = vld [vmem:[%s329 + $0x2c] sm:$0x1]
        %v354 = vld [vmem:[%s329 + $0x34] sm:$0x1]
        %v355 = vld [vmem:[%s329 + $0x3c] sm:$0x1]
        %s356 = smul.addr %s327, 4
        %s357 = scalar_lea.vmem %s318, %s356
        %v358 = vld [vmem:[%s357] sm:$0xf]
        %v359 = vld [vmem:[%s357 + $0x8] sm:$0xf]
        %v360 = vld [vmem:[%s357 + $0x10] sm:$0xf]
        %v361 = vld [vmem:[%s357 + $0x18] sm:$0xf]
        %v362 = vld [vmem:[%s357 + $0x20] sm:$0xf]
        %v363 = vld [vmem:[%s357 + $0x28] sm:$0xf]
        %v364 = vld [vmem:[%s357 + $0x30] sm:$0xf]
        %v365 = vld [vmem:[%s357 + $0x38] sm:$0xf]
        %s366 = smul.addr %s327, 4
        %s367 = scalar_lea.vmem %s323, %s366
        %v368 = vld [vmem:[%s367] sm:$0xf]
        %v369 = vld [vmem:[%s367 + $0x8] sm:$0xf]
        %v370 = vld [vmem:[%s367 + $0x10] sm:$0xf]
        %v371 = vld [vmem:[%s367 + $0x18] sm:$0xf]
        %v372 = vld [vmem:[%s367 + $0x20] sm:$0xf]
        %v373 = vld [vmem:[%s367 + $0x28] sm:$0xf]
        %v374 = vld [vmem:[%s367 + $0x30] sm:$0xf]
        %v375 = vld [vmem:[%s367 + $0x38] sm:$0xf]
        %v376 = vld [vmem:[%s357 + $0x4] sm:$0x1]
        %v377 = vld [vmem:[%s357 + $0xc] sm:$0x1]
        %v378 = vld [vmem:[%s357 + $0x14] sm:$0x1]
        %v379 = vld [vmem:[%s357 + $0x1c] sm:$0x1]
        %v380 = vld [vmem:[%s357 + $0x24] sm:$0x1]
        %v381 = vld [vmem:[%s357 + $0x2c] sm:$0x1]
        %v382 = vld [vmem:[%s357 + $0x34] sm:$0x1]
        %v383 = vld [vmem:[%s357 + $0x3c] sm:$0x1]
        %s384 = sadd.s32 %s326, 1
        %s385 = smul.u32 %s384, 2
        %s386 = smul.addr %s385, 4
        %s387 = scalar_lea.vmem %s308, %s386
        %v388 = vld [vmem:[%s387] sm:$0xf]
        %v389 = vld [vmem:[%s387 + $0x8] sm:$0xf]
        %v390 = vld [vmem:[%s387 + $0x10] sm:$0xf]
        %v391 = vld [vmem:[%s387 + $0x18] sm:$0xf]
        %v392 = vld [vmem:[%s387 + $0x20] sm:$0xf]
        %v393 = vld [vmem:[%s387 + $0x28] sm:$0xf]
        %v394 = vld [vmem:[%s387 + $0x30] sm:$0xf]
        %v395 = vld [vmem:[%s387 + $0x38] sm:$0xf]
        %s396 = smul.addr %s385, 4
        %s397 = scalar_lea.vmem %s313, %s396
        %v398 = vld [vmem:[%s397] sm:$0xf]
        %v399 = vld [vmem:[%s397 + $0x8] sm:$0xf]
        %v400 = vld [vmem:[%s397 + $0x10] sm:$0xf]
        %v401 = vld [vmem:[%s397 + $0x18] sm:$0xf]
        %v402 = vld [vmem:[%s397 + $0x20] sm:$0xf]
        %v403 = vld [vmem:[%s397 + $0x28] sm:$0xf]
        %v404 = vld [vmem:[%s397 + $0x30] sm:$0xf]
        %v405 = vld [vmem:[%s397 + $0x38] sm:$0xf]
        %v406 = vld [vmem:[%s387 + $0x4] sm:$0x1]
        %v407 = vld [vmem:[%s387 + $0xc] sm:$0x1]
        %v408 = vld [vmem:[%s387 + $0x14] sm:$0x1]
        %v409 = vld [vmem:[%s387 + $0x1c] sm:$0x1]
        %v410 = vld [vmem:[%s387 + $0x24] sm:$0x1]
        %v411 = vld [vmem:[%s387 + $0x2c] sm:$0x1]
        %v412 = vld [vmem:[%s387 + $0x34] sm:$0x1]
        %v413 = vld [vmem:[%s387 + $0x3c] sm:$0x1]
        %v422 = vunpack.c.l.b16 %v340
        %v423 = vunpack.c.l.b16 %v341
        %v424 = vunpack.c.l.b16 %v342
        %v425 = vunpack.c.l.b16 %v343
        %v426 = vunpack.c.l.b16 %v344
        %v427 = vunpack.c.l.b16 %v345
        %v428 = vunpack.c.l.b16 %v346
        %v429 = vunpack.c.l.b16 %v347
        %v430 = vpack.c.b16 %v422, %v422
        %v431 = vpack.c.b16 %v423, %v423
        %v432 = vpack.c.b16 %v424, %v424
        %v433 = vpack.c.b16 %v425, %v425
        %v434 = vpack.c.b16 %v426, %v426
        %v435 = vpack.c.b16 %v427, %v427
        %v436 = vpack.c.b16 %v428, %v428
        %v437 = vpack.c.b16 %v429, %v429
        %438 = vrot.lane.b32.xlu0 %v430, 16
        %v439 = vpop.permute.xlu0 %438
        %440 = vrot.lane.b32.xlu0 %v431, 16
        %v441 = vpop.permute.xlu0 %440
        %442 = vrot.lane.b32.xlu0 %v432, 16
        %v443 = vpop.permute.xlu0 %442
        %444 = vrot.lane.b32.xlu0 %v433, 16
        %v445 = vpop.permute.xlu0 %444
        %446 = vrot.lane.b32.xlu0 %v434, 16
        %v447 = vpop.permute.xlu0 %446
        %448 = vrot.lane.b32.xlu0 %v435, 16
        %v449 = vpop.permute.xlu0 %448
        %450 = vrot.lane.b32.xlu0 %v436, 16
        %v451 = vpop.permute.xlu0 %450
        %452 = vrot.lane.b32.xlu0 %v437, 16
        %v453 = vpop.permute.xlu0 %452
        %v470 = vunpack.c.l.b16 %v330
        %v471 = vunpack.c.l.b16 %v348
        %v472 = vunpack.c.l.b16 %v331
        %v473 = vunpack.c.l.b16 %v349
        %v474 = vunpack.c.l.b16 %v332
        %v475 = vunpack.c.l.b16 %v350
        %v476 = vunpack.c.l.b16 %v333
        %v477 = vunpack.c.l.b16 %v351
        %v478 = vunpack.c.l.b16 %v334
        %v479 = vunpack.c.l.b16 %v352
        %v480 = vunpack.c.l.b16 %v335
        %v481 = vunpack.c.l.b16 %v353
        %v482 = vunpack.c.l.b16 %v336
        %v483 = vunpack.c.l.b16 %v354
        %v484 = vunpack.c.l.b16 %v337
        %v485 = vunpack.c.l.b16 %v355
        %v486 = vpack.c.b16 %v471, %v470
        %v487 = vpack.c.b16 %v473, %v472
        %v488 = vpack.c.b16 %v475, %v474
        %v489 = vpack.c.b16 %v477, %v476
        %v490 = vpack.c.b16 %v479, %v478
        %v491 = vpack.c.b16 %v481, %v480
        %v492 = vpack.c.b16 %v483, %v482
        %v493 = vpack.c.b16 %v485, %v484
        %v495 = vshrl.u32 %v486, 16
        %v497 = vshll.u32 %v486, 16
        %v499 = vrot.slane %v497, 1
        %v500 = vor.u32 %v495, %v499
        %v502 = vshrl.u32 %v487, 16
        %v504 = vshll.u32 %v487, 16
        %v506 = vrot.slane %v504, 1
        %v507 = vor.u32 %v502, %v506
        %v509 = vshrl.u32 %v488, 16
        %v511 = vshll.u32 %v488, 16
        %v513 = vrot.slane %v511, 1
        %v514 = vor.u32 %v509, %v513
        %v516 = vshrl.u32 %v489, 16
        %v518 = vshll.u32 %v489, 16
        %v520 = vrot.slane %v518, 1
        %v521 = vor.u32 %v516, %v520
        %v523 = vshrl.u32 %v490, 16
        %v525 = vshll.u32 %v490, 16
        %v527 = vrot.slane %v525, 1
        %v528 = vor.u32 %v523, %v527
        %v530 = vshrl.u32 %v491, 16
        %v532 = vshll.u32 %v491, 16
        %v534 = vrot.slane %v532, 1
        %v535 = vor.u32 %v530, %v534
        %v537 = vshrl.u32 %v492, 16
        %v539 = vshll.u32 %v492, 16
        %v541 = vrot.slane %v539, 1
        %v542 = vor.u32 %v537, %v541
        %v544 = vshrl.u32 %v493, 16
        %v546 = vshll.u32 %v493, 16
        %v548 = vrot.slane %v546, 1
        %v549 = vor.u32 %v544, %v548
        %550 = vrot.lane.b32.xlu0 %v500, 32
        %v551 = vpop.permute.xlu0 %550
        %552 = vrot.lane.b32.xlu0 %v507, 32
        %v553 = vpop.permute.xlu0 %552
        %554 = vrot.lane.b32.xlu0 %v514, 32
        %v555 = vpop.permute.xlu0 %554
        %556 = vrot.lane.b32.xlu0 %v521, 32
        %v557 = vpop.permute.xlu0 %556
        %558 = vrot.lane.b32.xlu0 %v528, 32
        %v559 = vpop.permute.xlu0 %558
        %560 = vrot.lane.b32.xlu0 %v535, 32
        %v561 = vpop.permute.xlu0 %560
        %562 = vrot.lane.b32.xlu0 %v542, 32
        %v563 = vpop.permute.xlu0 %562
        %564 = vrot.lane.b32.xlu0 %v549, 32
        %v565 = vpop.permute.xlu0 %564
        %v574 = vunpack.c.l.b16 %v358
        %v575 = vunpack.c.l.b16 %v359
        %v576 = vunpack.c.l.b16 %v360
        %v577 = vunpack.c.l.b16 %v361
        %v578 = vunpack.c.l.b16 %v362
        %v579 = vunpack.c.l.b16 %v363
        %v580 = vunpack.c.l.b16 %v364
        %v581 = vunpack.c.l.b16 %v365
        %v582 = vpack.c.b16 %v574, %v574
        %v583 = vpack.c.b16 %v575, %v575
        %v584 = vpack.c.b16 %v576, %v576
        %v585 = vpack.c.b16 %v577, %v577
        %v586 = vpack.c.b16 %v578, %v578
        %v587 = vpack.c.b16 %v579, %v579
        %v588 = vpack.c.b16 %v580, %v580
        %v589 = vpack.c.b16 %v581, %v581
        %590 = vrot.lane.b32.xlu0 %v582, 48
        %v591 = vpop.permute.xlu0 %590
        %592 = vrot.lane.b32.xlu0 %v583, 48
        %v593 = vpop.permute.xlu0 %592
        %594 = vrot.lane.b32.xlu0 %v584, 48
        %v595 = vpop.permute.xlu0 %594
        %596 = vrot.lane.b32.xlu0 %v585, 48
        %v597 = vpop.permute.xlu0 %596
        %598 = vrot.lane.b32.xlu0 %v586, 48
        %v599 = vpop.permute.xlu0 %598
        %600 = vrot.lane.b32.xlu0 %v587, 48
        %v601 = vpop.permute.xlu0 %600
        %602 = vrot.lane.b32.xlu0 %v588, 48
        %v603 = vpop.permute.xlu0 %602
        %604 = vrot.lane.b32.xlu0 %v589, 48
        %v605 = vpop.permute.xlu0 %604
        %v614 = vunpack.c.l.b16 %v368
        %v615 = vunpack.c.l.b16 %v369
        %v616 = vunpack.c.l.b16 %v370
        %v617 = vunpack.c.l.b16 %v371
        %v618 = vunpack.c.l.b16 %v372
        %v619 = vunpack.c.l.b16 %v373
        %v620 = vunpack.c.l.b16 %v374
        %v621 = vunpack.c.l.b16 %v375
        %v622 = vpack.c.b16 %v614, %v614
        %v623 = vpack.c.b16 %v615, %v615
        %v624 = vpack.c.b16 %v616, %v616
        %v625 = vpack.c.b16 %v617, %v617
        %v626 = vpack.c.b16 %v618, %v618
        %v627 = vpack.c.b16 %v619, %v619
        %v628 = vpack.c.b16 %v620, %v620
        %v629 = vpack.c.b16 %v621, %v621
        %630 = vrot.lane.b32.xlu0 %v622, 64
        %v631 = vpop.permute.xlu0 %630
        %632 = vrot.lane.b32.xlu0 %v623, 64
        %v633 = vpop.permute.xlu0 %632
        %634 = vrot.lane.b32.xlu0 %v624, 64
        %v635 = vpop.permute.xlu0 %634
        %636 = vrot.lane.b32.xlu0 %v625, 64
        %v637 = vpop.permute.xlu0 %636
        %638 = vrot.lane.b32.xlu0 %v626, 64
        %v639 = vpop.permute.xlu0 %638
        %640 = vrot.lane.b32.xlu0 %v627, 64
        %v641 = vpop.permute.xlu0 %640
        %642 = vrot.lane.b32.xlu0 %v628, 64
        %v643 = vpop.permute.xlu0 %642
        %644 = vrot.lane.b32.xlu0 %v629, 64
        %v645 = vpop.permute.xlu0 %644
        %v654 = vunpack.c.l.b16 %v376
        %v655 = vunpack.c.l.b16 %v377
        %v656 = vunpack.c.l.b16 %v378
        %v657 = vunpack.c.l.b16 %v379
        %v658 = vunpack.c.l.b16 %v380
        %v659 = vunpack.c.l.b16 %v381
        %v660 = vunpack.c.l.b16 %v382
        %v661 = vunpack.c.l.b16 %v383
        %v662 = vpack.c.b16 %v654, %v574
        %v663 = vpack.c.b16 %v655, %v575
        %v664 = vpack.c.b16 %v656, %v576
        %v665 = vpack.c.b16 %v657, %v577
        %v666 = vpack.c.b16 %v658, %v578
        %v667 = vpack.c.b16 %v659, %v579
        %v668 = vpack.c.b16 %v660, %v580
        %v669 = vpack.c.b16 %v661, %v581
        %v671 = vshrl.u32 %v662, 16
        %v673 = vshll.u32 %v662, 16
        %v675 = vrot.slane %v673, 1
        %v676 = vor.u32 %v671, %v675
        %v678 = vshrl.u32 %v663, 16
        %v680 = vshll.u32 %v663, 16
        %v682 = vrot.slane %v680, 1
        %v683 = vor.u32 %v678, %v682
        %v685 = vshrl.u32 %v664, 16
        %v687 = vshll.u32 %v664, 16
        %v689 = vrot.slane %v687, 1
        %v690 = vor.u32 %v685, %v689
        %v692 = vshrl.u32 %v665, 16
        %v694 = vshll.u32 %v665, 16
        %v696 = vrot.slane %v694, 1
        %v697 = vor.u32 %v692, %v696
        %v699 = vshrl.u32 %v666, 16
        %v701 = vshll.u32 %v666, 16
        %v703 = vrot.slane %v701, 1
        %v704 = vor.u32 %v699, %v703
        %v706 = vshrl.u32 %v667, 16
        %v708 = vshll.u32 %v667, 16
        %v710 = vrot.slane %v708, 1
        %v711 = vor.u32 %v706, %v710
        %v713 = vshrl.u32 %v668, 16
        %v715 = vshll.u32 %v668, 16
        %v717 = vrot.slane %v715, 1
        %v718 = vor.u32 %v713, %v717
        %v720 = vshrl.u32 %v669, 16
        %v722 = vshll.u32 %v669, 16
        %v724 = vrot.slane %v722, 1
        %v725 = vor.u32 %v720, %v724
        %726 = vrot.lane.b32.xlu0 %v676, 80
        %v727 = vpop.permute.xlu0 %726
        %728 = vrot.lane.b32.xlu0 %v683, 80
        %v729 = vpop.permute.xlu0 %728
        %730 = vrot.lane.b32.xlu0 %v690, 80
        %v731 = vpop.permute.xlu0 %730
        %732 = vrot.lane.b32.xlu0 %v697, 80
        %v733 = vpop.permute.xlu0 %732
        %734 = vrot.lane.b32.xlu0 %v704, 80
        %v735 = vpop.permute.xlu0 %734
        %736 = vrot.lane.b32.xlu0 %v711, 80
        %v737 = vpop.permute.xlu0 %736
        %738 = vrot.lane.b32.xlu0 %v718, 80
        %v739 = vpop.permute.xlu0 %738
        %740 = vrot.lane.b32.xlu0 %v725, 80
        %v741 = vpop.permute.xlu0 %740
        %v750 = vunpack.c.l.b16 %v388
        %v751 = vunpack.c.l.b16 %v389
        %v752 = vunpack.c.l.b16 %v390
        %v753 = vunpack.c.l.b16 %v391
        %v754 = vunpack.c.l.b16 %v392
        %v755 = vunpack.c.l.b16 %v393
        %v756 = vunpack.c.l.b16 %v394
        %v757 = vunpack.c.l.b16 %v395
        %v758 = vpack.c.b16 %v750, %v750
        %v759 = vpack.c.b16 %v751, %v751
        %v760 = vpack.c.b16 %v752, %v752
        %v761 = vpack.c.b16 %v753, %v753
        %v762 = vpack.c.b16 %v754, %v754
        %v763 = vpack.c.b16 %v755, %v755
        %v764 = vpack.c.b16 %v756, %v756
        %v765 = vpack.c.b16 %v757, %v757
        %766 = vrot.lane.b32.xlu0 %v758, 96
        %v767 = vpop.permute.xlu0 %766
        %768 = vrot.lane.b32.xlu0 %v759, 96
        %v769 = vpop.permute.xlu0 %768
        %770 = vrot.lane.b32.xlu0 %v760, 96
        %v771 = vpop.permute.xlu0 %770
        %772 = vrot.lane.b32.xlu0 %v761, 96
        %v773 = vpop.permute.xlu0 %772
        %774 = vrot.lane.b32.xlu0 %v762, 96
        %v775 = vpop.permute.xlu0 %774
        %776 = vrot.lane.b32.xlu0 %v763, 96
        %v777 = vpop.permute.xlu0 %776
        %778 = vrot.lane.b32.xlu0 %v764, 96
        %v779 = vpop.permute.xlu0 %778
        %780 = vrot.lane.b32.xlu0 %v765, 96
        %v781 = vpop.permute.xlu0 %780
        %v790 = vunpack.c.l.b16 %v398
        %v791 = vunpack.c.l.b16 %v399
        %v792 = vunpack.c.l.b16 %v400
        %v793 = vunpack.c.l.b16 %v401
        %v794 = vunpack.c.l.b16 %v402
        %v795 = vunpack.c.l.b16 %v403
        %v796 = vunpack.c.l.b16 %v404
        %v797 = vunpack.c.l.b16 %v405
        %v798 = vpack.c.b16 %v790, %v790
        %v799 = vpack.c.b16 %v791, %v791
        %v800 = vpack.c.b16 %v792, %v792
        %v801 = vpack.c.b16 %v793, %v793
        %v802 = vpack.c.b16 %v794, %v794
        %v803 = vpack.c.b16 %v795, %v795
        %v804 = vpack.c.b16 %v796, %v796
        %v805 = vpack.c.b16 %v797, %v797
        %806 = vrot.lane.b32.xlu0 %v798, 112
        %v807 = vpop.permute.xlu0 %806
        %808 = vrot.lane.b32.xlu0 %v799, 112
        %v809 = vpop.permute.xlu0 %808
        %810 = vrot.lane.b32.xlu0 %v800, 112
        %v811 = vpop.permute.xlu0 %810
        %812 = vrot.lane.b32.xlu0 %v801, 112
        %v813 = vpop.permute.xlu0 %812
        %814 = vrot.lane.b32.xlu0 %v802, 112
        %v815 = vpop.permute.xlu0 %814
        %816 = vrot.lane.b32.xlu0 %v803, 112
        %v817 = vpop.permute.xlu0 %816
        %818 = vrot.lane.b32.xlu0 %v804, 112
        %v819 = vpop.permute.xlu0 %818
        %820 = vrot.lane.b32.xlu0 %v805, 112
        %v821 = vpop.permute.xlu0 %820
        %v830 = vunpack.c.l.b16 %v406
        %v831 = vunpack.c.l.b16 %v407
        %v832 = vunpack.c.l.b16 %v408
        %v833 = vunpack.c.l.b16 %v409
        %v834 = vunpack.c.l.b16 %v410
        %v835 = vunpack.c.l.b16 %v411
        %v836 = vunpack.c.l.b16 %v412
        %v837 = vunpack.c.l.b16 %v413
        %v838 = vpack.c.b16 %v830, %v750
        %v839 = vpack.c.b16 %v831, %v751
        %v840 = vpack.c.b16 %v832, %v752
        %v841 = vpack.c.b16 %v833, %v753
        %v842 = vpack.c.b16 %v834, %v754
        %v843 = vpack.c.b16 %v835, %v755
        %v844 = vpack.c.b16 %v836, %v756
        %v845 = vpack.c.b16 %v837, %v757
        %v847 = vshrl.u32 %v838, 16
        %v849 = vshll.u32 %v838, 16
        %v851 = vrot.slane %v849, 1
        %v852 = vor.u32 %v847, %v851
        %v854 = vshrl.u32 %v839, 16
        %v856 = vshll.u32 %v839, 16
        %v858 = vrot.slane %v856, 1
        %v859 = vor.u32 %v854, %v858
        %v861 = vshrl.u32 %v840, 16
        %v863 = vshll.u32 %v840, 16
        %v865 = vrot.slane %v863, 1
        %v866 = vor.u32 %v861, %v865
        %v868 = vshrl.u32 %v841, 16
        %v870 = vshll.u32 %v841, 16
        %v872 = vrot.slane %v870, 1
        %v873 = vor.u32 %v868, %v872
        %v875 = vshrl.u32 %v842, 16
        %v877 = vshll.u32 %v842, 16
        %v879 = vrot.slane %v877, 1
        %v880 = vor.u32 %v875, %v879
        %v882 = vshrl.u32 %v843, 16
        %v884 = vshll.u32 %v843, 16
        %v886 = vrot.slane %v884, 1
        %v887 = vor.u32 %v882, %v886
        %v889 = vshrl.u32 %v844, 16
        %v891 = vshll.u32 %v844, 16
        %v893 = vrot.slane %v891, 1
        %v894 = vor.u32 %v889, %v893
        %v896 = vshrl.u32 %v845, 16
        %v898 = vshll.u32 %v845, 16
        %v900 = vrot.slane %v898, 1
        %v901 = vor.u32 %v896, %v900
        %vm902 = vcmask 130048
        %v905 = vsel %vm902, %v330, %v439
        %v908 = vsel %vm902, %v331, %v441
        %v911 = vsel %vm902, %v332, %v443
        %v914 = vsel %vm902, %v333, %v445
        %v917 = vsel %vm902, %v334, %v447
        %v920 = vsel %vm902, %v335, %v449
        %v923 = vsel %vm902, %v336, %v451
        %v926 = vsel %vm902, %v337, %v453
        %vm927 = vcmask 261120
        %v929 = vsel %vm927, %v905, %v551
        %v931 = vsel %vm927, %v908, %v553
        %v933 = vsel %vm927, %v911, %v555
        %v935 = vsel %vm927, %v914, %v557
        %v937 = vsel %vm927, %v917, %v559
        %v939 = vsel %vm927, %v920, %v561
        %v941 = vsel %vm927, %v923, %v563
        %v943 = vsel %vm927, %v926, %v565
        %vm944 = vcmask 392192
        %v946 = vsel %vm944, %v929, %v591
        %v948 = vsel %vm944, %v931, %v593
        %v950 = vsel %vm944, %v933, %v595
        %v952 = vsel %vm944, %v935, %v597
        %v954 = vsel %vm944, %v937, %v599
        %v956 = vsel %vm944, %v939, %v601
        %v958 = vsel %vm944, %v941, %v603
        %v960 = vsel %vm944, %v943, %v605
        %vm961 = vcmask 523264
        %v963 = vsel %vm961, %v946, %v631
        %v965 = vsel %vm961, %v948, %v633
        %v967 = vsel %vm961, %v950, %v635
        %v969 = vsel %vm961, %v952, %v637
        %v971 = vsel %vm961, %v954, %v639
        %v973 = vsel %vm961, %v956, %v641
        %v975 = vsel %vm961, %v958, %v643
        %v977 = vsel %vm961, %v960, %v645
        %vm978 = vcmask 654336
        %v980 = vsel %vm978, %v963, %v727
        %v982 = vsel %vm978, %v965, %v729
        %v984 = vsel %vm978, %v967, %v731
        %v986 = vsel %vm978, %v969, %v733
        %v988 = vsel %vm978, %v971, %v735
        %v990 = vsel %vm978, %v973, %v737
        %v992 = vsel %vm978, %v975, %v739
        %v994 = vsel %vm978, %v977, %v741
        %vm995 = vcmask 785408
        %v997 = vsel %vm995, %v980, %v767
        %v999 = vsel %vm995, %v982, %v769
        %v1001 = vsel %vm995, %v984, %v771
        %v1003 = vsel %vm995, %v986, %v773
        %v1005 = vsel %vm995, %v988, %v775
        %v1007 = vsel %vm995, %v990, %v777
        %v1009 = vsel %vm995, %v992, %v779
        %v1011 = vsel %vm995, %v994, %v781
        %vm1012 = vcmask 916480
        %v1014 = vsel %vm1012, %v997, %v807
        %v1016 = vsel %vm1012, %v999, %v809
        %v1018 = vsel %vm1012, %v1001, %v811
        %v1020 = vsel %vm1012, %v1003, %v813
        %v1022 = vsel %vm1012, %v1005, %v815
        %v1024 = vsel %vm1012, %v1007, %v817
        %v1026 = vsel %vm1012, %v1009, %v819
        %v1028 = vsel %vm1012, %v1011, %v821
        %v1037 = vunpack.c.l.b16 %v1014
        %v1038 = vunpack.c.l.b16 %v852
        %v1039 = vunpack.c.l.b16 %v1016
        %v1040 = vunpack.c.l.b16 %v859
        %v1041 = vunpack.c.l.b16 %v1018
        %v1042 = vunpack.c.l.b16 %v866
        %v1043 = vunpack.c.l.b16 %v1020
        %v1044 = vunpack.c.l.b16 %v873
        %v1045 = vunpack.c.l.b16 %v1022
        %v1046 = vunpack.c.l.b16 %v880
        %v1047 = vunpack.c.l.b16 %v1024
        %v1048 = vunpack.c.l.b16 %v887
        %v1049 = vunpack.c.l.b16 %v1026
        %v1050 = vunpack.c.l.b16 %v894
        %v1051 = vunpack.c.l.b16 %v1028
        %v1052 = vunpack.c.l.b16 %v901
        %v1053 = vld [vmem:[%s4] sm:$0xf]
        %v1054 = vld [vmem:[%s4 + $0x4] sm:$0xf]
        %v1055 = vld [vmem:[%s4 + $0x8] sm:$0xf]
        %v1056 = vld [vmem:[%s4 + $0xc] sm:$0xf]
        %v1057 = vld [vmem:[%s4 + $0x10] sm:$0xf]
        %v1058 = vld [vmem:[%s4 + $0x14] sm:$0xf]
        %v1059 = vld [vmem:[%s4 + $0x18] sm:$0xf]
        %v1060 = vld [vmem:[%s4 + $0x1c] sm:$0xf]
        %v1061 = vld [vmem:[%s4 + $0x20] sm:$0xf]
        %v1062 = vld [vmem:[%s4 + $0x24] sm:$0xf]
        %v1063 = vld [vmem:[%s4 + $0x28] sm:$0xf]
        %v1064 = vld [vmem:[%s4 + $0x2c] sm:$0xf]
        %v1065 = vld [vmem:[%s4 + $0x30] sm:$0xf]
        %v1066 = vld [vmem:[%s4 + $0x34] sm:$0xf]
        %v1067 = vld [vmem:[%s4 + $0x38] sm:$0xf]
        %v1068 = vld [vmem:[%s4 + $0x3c] sm:$0xf]
        %v1069 = vld [vmem:[%s4 + $0x40] sm:$0xf]
        %v1070 = vld [vmem:[%s4 + $0x44] sm:$0xf]
        %v1071 = vld [vmem:[%s5] sm:$0x1]
        %v1073 = vperm.slane %v1071, 0
        %v1075 = vpack.c.b16 %v1039, %v1037
        %v1076 = vpack.c.b16 %v1040, %v1038
        %v1077 = vpack.c.b16 %v1043, %v1041
        %v1078 = vpack.c.b16 %v1044, %v1042
        %v1079 = vpack.c.b16 %v1047, %v1045
        %v1080 = vpack.c.b16 %v1048, %v1046
        %v1081 = vpack.c.b16 %v1051, %v1049
        %v1082 = vpack.c.b16 %v1052, %v1050
        %v1105 = vunpack.c.l.b16 %v1053
        %v1106 = vunpack.c.l.b16 %v1054
        %v1107 = vunpack.c.l.b16 %v1055
        %v1108 = vunpack.c.l.b16 %v1056
        %v1109 = vunpack.c.l.b16 %v1057
        %v1110 = vunpack.c.l.b16 %v1058
        %v1111 = vunpack.c.l.b16 %v1059
        %v1112 = vunpack.c.l.b16 %v1060
        %v1113 = vunpack.c.l.b16 %v1061
        %v1114 = vunpack.c.l.b16 %v1062
        %v1115 = vunpack.c.l.b16 %v1063
        %v1116 = vunpack.c.l.b16 %v1064
        %v1117 = vunpack.c.l.b16 %v1065
        %v1118 = vunpack.c.l.b16 %v1066
        %v1119 = vunpack.c.l.b16 %v1067
        %v1120 = vunpack.c.l.b16 %v1068
        %v1121 = vunpack.c.l.b16 %v1069
        %v1122 = vunpack.c.l.b16 %v1070
        %v1123 = vpack.c.b16 %v1106, %v1105
        %v1124 = vpack.c.b16 %v1108, %v1107
        %v1125 = vpack.c.b16 %v1110, %v1109
        %v1126 = vpack.c.b16 %v1112, %v1111
        %v1127 = vpack.c.b16 %v1114, %v1113
        %v1128 = vpack.c.b16 %v1116, %v1115
        %v1129 = vpack.c.b16 %v1118, %v1117
        %v1130 = vpack.c.b16 %v1120, %v1119
        %v1131 = vpack.c.b16 %v1122, %v1121
        %v1142 = vsel %vm902, %v1076, 0
        %v1145 = vsel %vm902, %v1078, 0
        %v1148 = vsel %vm902, %v1080, 0
        %v1151 = vsel %vm902, %v1082, 0
        %1153 = vmatpush.bf16.msra.mxu0 %v1130
        %1154 = vmatpush.bf16.msra.mxu0 %v1129
        %1155 = vmatpush.bf16.msra.mxu0 %v1128
        %1156 = vmatpush.bf16.msra.mxu0 %v1127
        %1157 = vmatpush.bf16.msra.mxu0 %v1126
        %1158 = vmatpush.bf16.msra.mxu0 %v1125
        %1159 = vmatpush.bf16.msra.mxu0 %v1124
        %1160 = vmatpush.bf16.msra.mxu0 %v1123
        %1161 = vmatmul.bf16.gmra.mxu0 %v1075
        %v1162 = vpop.f32.mrf.mxu0
        %v1163 = vadd.f32 %v1073, %v1162
        %v1164 = vpop.f32.mrf.mxu0
        %v1165 = vadd.f32 %v1073, %v1164
        %1166 = vmatmul.bf16.gmra.mxu0 %v1077
        %v1167 = vpop.f32.mrf.mxu0
        %v1168 = vadd.f32 %v1073, %v1167
        %v1169 = vpop.f32.mrf.mxu0
        %v1170 = vadd.f32 %v1073, %v1169
        %1171 = vmatmul.bf16.gmra.mxu0 %v1079
        %v1172 = vpop.f32.mrf.mxu0
        %v1173 = vadd.f32 %v1073, %v1172
        %v1174 = vpop.f32.mrf.mxu0
        %v1175 = vadd.f32 %v1073, %v1174
        %1176 = vmatmul.bf16.gmra.mxu0 %v1081
        %v1177 = vpop.f32.mrf.mxu0
        %v1178 = vadd.f32 %v1073, %v1177
        %v1179 = vpop.f32.mrf.mxu0
        %v1180 = vadd.f32 %v1073, %v1179
        %1181 = vdwg.mxu0
        %1182 = vmatpush.bf16.msra.mxu0 0
        %1183 = vmatpush.bf16.msra.mxu0 0
        %1184 = vmatpush.bf16.msra.mxu0 0
        %1185 = vmatpush.bf16.msra.mxu0 0
        %1186 = vmatpush.bf16.msra.mxu0 0
        %1187 = vmatpush.bf16.msra.mxu0 0
        %1188 = vmatpush.bf16.msra.mxu0 0
        %1189 = vmatpush.bf16.msra.mxu0 %v1131
        %1190 = vmatmul.bf16.gmra.mxu0 %v1142
        %v1191 = vpop.f32.mrf.mxu0
        %v1192 = vadd.f32 %v1163, %v1191
        %v1193 = vpop.f32.mrf.mxu0
        %v1194 = vadd.f32 %v1165, %v1193
        %1195 = vmatmul.bf16.gmra.mxu0 %v1145
        %v1196 = vpop.f32.mrf.mxu0
        %v1197 = vadd.f32 %v1168, %v1196
        %v1198 = vpop.f32.mrf.mxu0
        %v1199 = vadd.f32 %v1170, %v1198
        %1200 = vmatmul.bf16.gmra.mxu0 %v1148
        %v1201 = vpop.f32.mrf.mxu0
        %v1202 = vadd.f32 %v1173, %v1201
        %v1203 = vpop.f32.mrf.mxu0
        %v1204 = vadd.f32 %v1175, %v1203
        %1205 = vmatmul.bf16.gmra.mxu0 %v1151
        %v1206 = vpop.f32.mrf.mxu0
        %v1207 = vadd.f32 %v1178, %v1206
        %v1208 = vpop.f32.mrf.mxu0
        %v1209 = vadd.f32 %v1180, %v1208
        %1210 = vdwg.mxu0
        %v1211 = vmul.f32 %v1192, 0.5
        %v1212 = vmul.f32 %v1194, 0.5
        %v1213 = vmul.f32 %v1197, 0.5
        %v1214 = vmul.f32 %v1199, 0.5
        %v1215 = vmul.f32 %v1202, 0.5
        %v1216 = vmul.f32 %v1204, 0.5
        %v1217 = vmul.f32 %v1207, 0.5
        %v1218 = vmul.f32 %v1209, 0.5
        %v1219 = vmul.f32 %v1192, 0.044715
        %v1220 = vmul.f32 %v1194, 0.044715
        %v1221 = vmul.f32 %v1197, 0.044715
        %v1222 = vmul.f32 %v1199, 0.044715
        %v1223 = vmul.f32 %v1202, 0.044715
        %v1224 = vmul.f32 %v1204, 0.044715
        %v1225 = vmul.f32 %v1207, 0.044715
        %v1226 = vmul.f32 %v1209, 0.044715
        %v1227 = vmul.f32 %v1219, %v1192
        %v1228 = vmul.f32 %v1220, %v1194
        %v1229 = vmul.f32 %v1221, %v1197
        %v1230 = vmul.f32 %v1222, %v1199
        %v1231 = vmul.f32 %v1223, %v1202
        %v1232 = vmul.f32 %v1224, %v1204
        %v1233 = vmul.f32 %v1225, %v1207
        %v1234 = vmul.f32 %v1226, %v1209
        %v1235 = vmul.f32 %v1227, %v1192
        %v1236 = vmul.f32 %v1228, %v1194
        %v1237 = vmul.f32 %v1229, %v1197
        %v1238 = vmul.f32 %v1230, %v1199
        %v1239 = vmul.f32 %v1231, %v1202
        %v1240 = vmul.f32 %v1232, %v1204
        %v1241 = vmul.f32 %v1233, %v1207
        %v1242 = vmul.f32 %v1234, %v1209
        %v1243 = vadd.f32 %v1192, %v1235
        %v1244 = vadd.f32 %v1194, %v1236
        %v1245 = vadd.f32 %v1197, %v1237
        %v1246 = vadd.f32 %v1199, %v1238
        %v1247 = vadd.f32 %v1202, %v1239
        %v1248 = vadd.f32 %v1204, %v1240
        %v1249 = vadd.f32 %v1207, %v1241
        %v1250 = vadd.f32 %v1209, %v1242
        %v1251 = vmul.f32 %v1243, 0.7978846
        %v1252 = vmul.f32 %v1244, 0.7978846
        %v1253 = vmul.f32 %v1245, 0.7978846
        %v1254 = vmul.f32 %v1246, 0.7978846
        %v1255 = vmul.f32 %v1247, 0.7978846
        %v1256 = vmul.f32 %v1248, 0.7978846
        %v1257 = vmul.f32 %v1249, 0.7978846
        %v1258 = vmul.f32 %v1250, 0.7978846
        %v1259 = vtanh.pop %v1251
        %v1260 = vtanh.pop %v1252
        %v1261 = vtanh.pop %v1253
        %v1262 = vtanh.pop %v1254
        %v1263 = vtanh.pop %v1255
        %v1264 = vtanh.pop %v1256
        %v1265 = vtanh.pop %v1257
        %v1266 = vtanh.pop %v1258
        %v1267 = vadd.f32 %v1259, 1.0
        %v1268 = vadd.f32 %v1260, 1.0
        %v1269 = vadd.f32 %v1261, 1.0
        %v1270 = vadd.f32 %v1262, 1.0
        %v1271 = vadd.f32 %v1263, 1.0
        %v1272 = vadd.f32 %v1264, 1.0
        %v1273 = vadd.f32 %v1265, 1.0
        %v1274 = vadd.f32 %v1266, 1.0
        %v1275 = vmul.f32 %v1211, %v1267
        %v1276 = vmul.f32 %v1212, %v1268
        %v1277 = vmul.f32 %v1213, %v1269
        %v1278 = vmul.f32 %v1214, %v1270
        %v1279 = vmul.f32 %v1215, %v1271
        %v1280 = vmul.f32 %v1216, %v1272
        %v1281 = vmul.f32 %v1217, %v1273
        %v1282 = vmul.f32 %v1218, %v1274
        %1283 = vst.msk [vmem:[%s303] sm:$0xff] %vm927, %v1275
        %1284 = vst.msk [vmem:[%s303 + $0x8] sm:$0xff] %vm927, %v1276
        %1285 = vst.msk [vmem:[%s303 + $0x10] sm:$0xff] %vm927, %v1277
        %1286 = vst.msk [vmem:[%s303 + $0x18] sm:$0xff] %vm927, %v1278
        %1287 = vst.msk [vmem:[%s303 + $0x20] sm:$0xff] %vm927, %v1279
        %1288 = vst.msk [vmem:[%s303 + $0x28] sm:$0xff] %vm927, %v1280
        %1289 = vst.msk [vmem:[%s303 + $0x30] sm:$0xff] %vm927, %v1281
        %1290 = vst.msk [vmem:[%s303 + $0x38] sm:$0xff] %vm927, %v1282
        %s1291 = sand.u32 %s188, 1
        %s1292 = scalar_lea.sflag [#allocation3], %s1291
        %s1293 = sand.u32 %s188, 1
        %s1294 = smul.addr %s1293, 64
        %s1295 = scalar_lea.vmem [#allocation2], %s1294
        // Predicated region
        $region45: #{stem_forward.3} parent=43 // pred_check
          %p1296 = pneg %p198
        $region46: #{stem_forward.3} parent=43 // pred_check_branch
          %1298 = sbr.rel (%p1296) target = $region48
        $region47: #{stem_forward.3} parent=43 // pred_region
          %s1299 = smul.u32 8, %s25
          %1301 = vsyncadd %s1292, 0
          %s1302 = smul.addr %s24, 8
          %s1303 = sadd.s32 %s1299, %s1302
          %s1304 = smul.addr %s1303, 8
          %s1305 = scalar_lea.hbm %s6, %s1304
          %s1306 = sshll.u32 %s1295, 4
          %s1307 = int_to_ptr.vmem [resolvable:$true] %s1306
          %s1308 = sshll.u32 %s1305, 4
          %s1309 = int_to_ptr.hbm [resolvable:$true] %s1308
          %1314 = dma.vmem_to_hbm [thread:$0]  %s1307, 1024, %s1309, %s1292, 128, 128, 8
        $region48: #{stem_forward.3} parent=43 // pred_fallthru
          _
      $region44: #{stem_forward.3} parent=5 // pred_fallthru
        _
      %p1315 = scmp.le.s32.totalorder 2, %s15
      // Predicated region
      $region49: #{stem_forward.3} parent=5 // pred_check
        %p1316 = pneg %p1315
      $region50: #{stem_forward.3} parent=5 // pred_check_branch
        %1318 = sbr.rel (%p1316) target = $region52
      $region51: #{stem_forward.3} parent=5 // pred_region
        %s1319 = ssub.s32 %s15, 2
        // Predicated region
        $region53: #{stem_forward.3} parent=51 // pred_check
          %p1320 = pneg %p204
        $region54: #{stem_forward.3} parent=51 // pred_check_branch
          %1322 = sbr.rel (%p1320) target = $region56
        $region55: #{stem_forward.3} parent=51 // pred_region
          %s1323 = sand.u32 %s189, 1
          %s1324 = scalar_lea.sflag [#allocation3], %s1323
          %s1325 = sand.u32 %s189, 1
          %s1326 = smul.addr %s1325, 64
          %s1327 = scalar_lea.vmem [#allocation2], %s1326
          %1329 = dma.done %s1324, 1024
        $region56: #{stem_forward.3} parent=51 // pred_fallthru
          _
      $region52: #{stem_forward.3} parent=5 // pred_fallthru
        _
    $region6: #{stem_forward.3} parent=1 // loop_footer
      %s19 = sadd.s32 1, %s15
    $region7: #{stem_forward.3} parent=1 // loop_footer_branch
      %14 = sbr.rel target = $region3
    $region8: #{stem_forward.3} parent=1 // loop_exit
      _
    %1330 = vsyncpa [#allocation3], 1
    %s1331 = scalar_lea.sflag [#allocation3], 1
    %1332 = vsyncpa %s1331, 1

// kernel: stem_forward.2
$region0: #{stem_forward.2}
  #allocation0 [shape = 'u32[]', space=smem, size = 0x4, offset = 0x4, fixed_abs, tag = 'smem constant byte address 0x4 - core index']
  #allocation1 [shape = 'u32[72,128]{1,0:T(1,128)}', space=vmem, size = 0x9000, scoped, tag = 'internal scratch']
  %s0 = inlined_call_operand.vmem [shape: bf16[2,17,17,3], index: 0, kind: input, shape index: {}]
  %s1 = inlined_call_operand.vmem [shape: bf16[2,17,17,3], index: 1, kind: input, shape index: {}]
  %s2 = inlined_call_operand.vmem [shape: bf16[2,17,17,3], index: 2, kind: input, shape index: {}]
  %s3 = inlined_call_operand.vmem [shape: bf16[2,17,17,3], index: 3, kind: input, shape index: {}]
  %s4 = inlined_call_operand.vmem [shape: bf16[27,16], index: 4, kind: input, shape index: {}]
  %s5 = inlined_call_operand.vmem [shape: f32[1,16], index: 5, kind: input, shape index: {}]
  %s6 = inlined_call_operand.vmem [shape: bf16[2,256,16], index: 6, kind: output, shape index: {}]
  %s7 = sld [smem:[#allocation0]]
  $region57: #{stem_forward.2} parent=0
    _
  %s9 = ssub.s32 1, %s7
  %s10 = scalar_select 0, %s9, %s7
  loop: start=0, step=1, limit=4
  $region2: #{stem_forward.2} parent=0 // loop_pre_header
    _
  $region3: #{stem_forward.2} parent=0 // loop_header
    %s12 = sphi 0, %s16
    %p13 = scmp.ge.s32.totalorder %s12, 4
    %s19 = sphi 0, %s31
    %s20 = sphi 0, %s27
    %s21 = sphi 0, %s19
    %s22 = sphi 0, %s20
    %s23 = sphi 0, %s21
    %s24 = sphi 0, %s22
    %s34 = sphi 0, %s36
    %s37 = sphi 0, %s34
    %s38 = sphi 0, %s37
    %s54 = sphi 0, %s38
    %s60 = sphi 0, %s62
    %s63 = sphi 0, %s60
    %s64 = sphi 0, %s63
    %s80 = sphi 0, %s64
    %s86 = sphi 0, %s88
    %s89 = sphi 0, %s86
    %s90 = sphi 0, %s89
    %s106 = sphi 0, %s90
    %s112 = sphi 0, %s114
    %s115 = sphi 0, %s112
    %s116 = sphi 0, %s115
    %s132 = sphi 0, %s116
    %s136 = sphi 0, %s136
    %s138 = sphi 0, %s136
    %s139 = sphi 0, %s138
    %s153 = sphi 0, %s139
    %s157 = sphi 0, %s157
    %s159 = sphi 0, %s157
    %s160 = sphi 0, %s159
    %s174 = sphi 0, %s160
    %s182 = sphi 0, %s184
    %s185 = sphi 0, %s182
    %s186 = sphi 0, %s185
    %s202 = sphi 0, %s186
  $region4: #{stem_forward.2} parent=0 // loop_header_branch
    %15 = sbr.rel (%p13) target = $region8
  $region5: #{stem_forward.2} parent=0 // loop_body
    %s17 = ssub.s32 %s12, 1
    %s18 = ssub.s32 %s12, 2
    %s25 = sadd.s32 1, %s20
    %p26 = scmp.ge.s32.totalorder %s25, 1
    %s27 = scalar_select %p26, 0, %s25
    %s28 = sadd.s32 1, %s19
    %s29 = scalar_select %p26, %s28, %s19
    %p30 = scmp.ge.s32.totalorder %s29, 2
    %s31 = scalar_select %p30, 0, %s29
    %s32 = ssub.s32 %s19, %s31
    %p33 = scmp.eq.s32.totalorder %s32, 0
    %s35 = sadd.s32 %s34, 1
    %s36 = scalar_select %p33, %s34, %s35
    %p39 = pneg %p33
    %p40 = scmp.eq.s32.totalorder %s12, 1
    %p41 = por %p39, %p40
    %p42 = scmp.ne.s32.totalorder %s34, %s37
    %p43 = scmp.eq.s32.totalorder %s12, 0
    %p44 = por %p42, %p43
    %p45 = scmp.ne.s32.totalorder %s34, %s37
    %p46 = scmp.eq.s32.totalorder %s17, 1
    %p47 = por %p45, %p46
    %p48 = scmp.ne.s32.totalorder %s37, %s38
    %p49 = scmp.eq.s32.totalorder %s17, 0
    %p50 = por %p48, %p49
    %p51 = scmp.ne.s32.totalorder %s37, %s38
    %p52 = scmp.eq.s32.totalorder %s18, 1
    %p53 = por %p51, %p52
    %p55 = scmp.ne.s32.totalorder %s38, %s54
    %p56 = scmp.eq.s32.totalorder %s18, 0
    %p57 = por %p55, %p56
    %s58 = ssub.s32 %s19, %s31
    %p59 = scmp.eq.s32.totalorder %s58, 0
    %s61 = sadd.s32 %s60, 1
    %s62 = scalar_select %p59, %s60, %s61
    %p65 = pneg %p59
    %p66 = scmp.eq.s32.totalorder %s12, 1
    %p67 = por %p65, %p66
    %p68 = scmp.ne.s32.totalorder %s60, %s63
    %p69 = scmp.eq.s32.totalorder %s12, 0
    %p70 = por %p68, %p69
    %p71 = scmp.ne.s32.totalorder %s60, %s63
    %p72 = scmp.eq.s32.totalorder %s17, 1
    %p73 = por %p71, %p72
    %p74 = scmp.ne.s32.totalorder %s63, %s64
    %p75 = scmp.eq.s32.totalorder %s17, 0
    %p76 = por %p74, %p75
    %p77 = scmp.ne.s32.totalorder %s63, %s64
    %p78 = scmp.eq.s32.totalorder %s18, 1
    %p79 = por %p77, %p78
    %p81 = scmp.ne.s32.totalorder %s64, %s80
    %p82 = scmp.eq.s32.totalorder %s18, 0
    %p83 = por %p81, %p82
    %s84 = ssub.s32 %s19, %s31
    %p85 = scmp.eq.s32.totalorder %s84, 0
    %s87 = sadd.s32 %s86, 1
    %s88 = scalar_select %p85, %s86, %s87
    %p91 = pneg %p85
    %p92 = scmp.eq.s32.totalorder %s12, 1
    %p93 = por %p91, %p92
    %p94 = scmp.ne.s32.totalorder %s86, %s89
    %p95 = scmp.eq.s32.totalorder %s12, 0
    %p96 = por %p94, %p95
    %p97 = scmp.ne.s32.totalorder %s86, %s89
    %p98 = scmp.eq.s32.totalorder %s17, 1
    %p99 = por %p97, %p98
    %p100 = scmp.ne.s32.totalorder %s89, %s90
    %p101 = scmp.eq.s32.totalorder %s17, 0
    %p102 = por %p100, %p101
    %p103 = scmp.ne.s32.totalorder %s89, %s90
    %p104 = scmp.eq.s32.totalorder %s18, 1
    %p105 = por %p103, %p104
    %p107 = scmp.ne.s32.totalorder %s90, %s106
    %p108 = scmp.eq.s32.totalorder %s18, 0
    %p109 = por %p107, %p108
    %s110 = ssub.s32 %s19, %s31
    %p111 = scmp.eq.s32.totalorder %s110, 0
    %s113 = sadd.s32 %s112, 1
    %s114 = scalar_select %p111, %s112, %s113
    %p117 = pneg %p111
    %p118 = scmp.eq.s32.totalorder %s12, 1
    %p119 = por %p117, %p118
    %p120 = scmp.ne.s32.totalorder %s112, %s115
    %p121 = scmp.eq.s32.totalorder %s12, 0
    %p122 = por %p120, %p121
    %p123 = scmp.ne.s32.totalorder %s112, %s115
    %p124 = scmp.eq.s32.totalorder %s17, 1
    %p125 = por %p123, %p124
    %p126 = scmp.ne.s32.totalorder %s115, %s116
    %p127 = scmp.eq.s32.totalorder %s17, 0
    %p128 = por %p126, %p127
    %p129 = scmp.ne.s32.totalorder %s115, %s116
    %p130 = scmp.eq.s32.totalorder %s18, 1
    %p131 = por %p129, %p130
    %p133 = scmp.ne.s32.totalorder %s116, %s132
    %p134 = scmp.eq.s32.totalorder %s18, 0
    %p135 = por %p133, %p134
    %s137 = sadd.s32 %s136, 1
    %p140 = scmp.eq.s32.totalorder %s12, 1
    %p141 = scmp.ne.s32.totalorder %s136, %s138
    %p142 = scmp.eq.s32.totalorder %s12, 0
    %p143 = por %p141, %p142
    %p144 = scmp.ne.s32.totalorder %s136, %s138
    %p145 = scmp.eq.s32.totalorder %s17, 1
    %p146 = por %p144, %p145
    %p147 = scmp.ne.s32.totalorder %s138, %s139
    %p148 = scmp.eq.s32.totalorder %s17, 0
    %p149 = por %p147, %p148
    %p150 = scmp.ne.s32.totalorder %s138, %s139
    %p151 = scmp.eq.s32.totalorder %s18, 1
    %p152 = por %p150, %p151
    %p154 = scmp.ne.s32.totalorder %s139, %s153
    %p155 = scmp.eq.s32.totalorder %s18, 0
    %p156 = por %p154, %p155
    %s158 = sadd.s32 %s157, 1
    %p161 = scmp.eq.s32.totalorder %s12, 1
    %p162 = scmp.ne.s32.totalorder %s157, %s159
    %p163 = scmp.eq.s32.totalorder %s12, 0
    %p164 = por %p162, %p163
    %p165 = scmp.ne.s32.totalorder %s157, %s159
    %p166 = scmp.eq.s32.totalorder %s17, 1
    %p167 = por %p165, %p166
    %p168 = scmp.ne.s32.totalorder %s159, %s160
    %p169 = scmp.eq.s32.totalorder %s17, 0
    %p170 = por %p168, %p169
    %p171 = scmp.ne.s32.totalorder %s159, %s160
    %p172 = scmp.eq.s32.totalorder %s18, 1
    %p173 = por %p171, %p172
    %p175 = scmp.ne.s32.totalorder %s160, %s174
    %p176 = scmp.eq.s32.totalorder %s18, 0
    %p177 = por %p175, %p176
    %s178 = ssub.s32 %s19, %s31
    %s179 = ssub.s32 %s20, %s27
    %s180 = sor.u32 %s178, %s179
    %p181 = scmp.eq.s32.totalorder %s180, 0
    %s183 = sadd.s32 %s182, 1
    %s184 = scalar_select %p181, %s182, %s183
    %p187 = pneg %p181
    %p188 = scmp.eq.s32.totalorder %s12, 1
    %p189 = por %p187, %p188
    %p190 = scmp.ne.s32.totalorder %s182, %s185
    %p191 = scmp.eq.s32.totalorder %s12, 0
    %p192 = por %p190, %p191
    %p193 = scmp.ne.s32.totalorder %s182, %s185
    %p194 = scmp.eq.s32.totalorder %s17, 1
    %p195 = por %p193, %p194
    %p196 = scmp.ne.s32.totalorder %s185, %s186
    %p197 = scmp.eq.s32.totalorder %s17, 0
    %p198 = por %p196, %p197
    %p199 = scmp.ne.s32.totalorder %s185, %s186
    %p200 = scmp.eq.s32.totalorder %s18, 1
    %p201 = por %p199, %p200
    %p203 = scmp.ne.s32.totalorder %s186, %s202
    %p204 = scmp.eq.s32.totalorder %s18, 0
    %p205 = por %p203, %p204
    %p206 = scmp.le.s32.totalorder 1, %s12
    %p207 = scmp.lt.s32.totalorder %s12, 3
    %p208 = pnand %p206, %p207
    %p209 = pneg %p208
    // Predicated region
    $region9: #{stem_forward.2} parent=5 // pred_check
      _
    $region10: #{stem_forward.2} parent=5 // pred_check_branch
      %211 = sbr.rel (%p208) target = $region12
    $region11: #{stem_forward.2} parent=5 // pred_region
      %s212 = ssub.s32 %s12, 1
      // Predicated region
      $region13: #{stem_forward.2} parent=11 // pred_check
        %p213 = pneg %p149
      $region14: #{stem_forward.2} parent=11 // pred_check_branch
        %215 = sbr.rel (%p213) target = $region16
      $region15: #{stem_forward.2} parent=11 // pred_region
        _
      $region16: #{stem_forward.2} parent=11 // pred_fallthru
        _
      // Predicated region
      $region17: #{stem_forward.2} parent=11 // pred_check
        %p216 = pneg %p170
      $region18: #{stem_forward.2} parent=11 // pred_check_branch
        %218 = sbr.rel (%p216) target = $region20
      $region19: #{stem_forward.2} parent=11 // pred_region
        _
      $region20: #{stem_forward.2} parent=11 // pred_fallthru
        _
    $region12: #{stem_forward.2} parent=5 // pred_fallthru
      _
    %p219 = scmp.lt.s32.totalorder %s12, 2
    // Predicated region
    $region21: #{stem_forward.2} parent=5 // pred_check
      %p220 = pneg %p219
    $region22: #{stem_forward.2} parent=5 // pred_check_branch
      %222 = sbr.rel (%p220) target = $region24
    $region23: #{stem_forward.2} parent=5 // pred_region
      // Predicated region
      $region25: #{stem_forward.2} parent=23 // pred_check
        %p223 = pneg %p44
      $region26: #{stem_forward.2} parent=23 // pred_check_branch
        %225 = sbr.rel (%p223) target = $region28
      $region27: #{stem_forward.2} parent=23 // pred_region
        %p226 = scmp.lt.s32.totalorder %s19, 1
        %s227 = scalar_select %p226, %s19, 1
        %s228 = smul.addr %s227, 51
        %s229 = smul.addr %s228, 4
        %s230 = scalar_lea.vmem %s0, %s229
      $region28: #{stem_forward.2} parent=23 // pred_fallthru
        _
      // Predicated region
      $region29: #{stem_forward.2} parent=23 // pred_check
        %p231 = pneg %p70
      $region30: #{stem_forward.2} parent=23 // pred_check_branch
        %233 = sbr.rel (%p231) target = $region32
      $region31: #{stem_forward.2} parent=23 // pred_region
        %p234 = scmp.lt.s32.totalorder %s19, 1
        %s235 = scalar_select %p234, %s19, 1
        %s236 = smul.addr %s235, 51
        %s237 = smul.addr %s236, 4
        %s238 = scalar_lea.vmem %s1, %s237
      $region32: #{stem_forward.2} parent=23 // pred_fallthru
        _
      // Predicated region
      $region33: #{stem_forward.2} parent=23 // pred_check
        %p239 = pneg %p96
      $region34: #{stem_forward.2} parent=23 // pred_check_branch
        %241 = sbr.rel (%p239) target = $region36
      $region35: #{stem_forward.2} parent=23 // pred_region
        %p242 = scmp.lt.s32.totalorder %s19, 1
        %s243 = scalar_select %p242, %s19, 1
        %s244 = smul.addr %s243, 51
        %s245 = smul.addr %s244, 4
        %s246 = scalar_lea.vmem %s2, %s245
      $region36: #{stem_forward.2} parent=23 // pred_fallthru
        _
      // Predicated region
      $region37: #{stem_forward.2} parent=23 // pred_check
        %p247 = pneg %p122
      $region38: #{stem_forward.2} parent=23 // pred_check_branch
        %249 = sbr.rel (%p247) target = $region40
      $region39: #{stem_forward.2} parent=23 // pred_region
        %p250 = scmp.lt.s32.totalorder %s19, 1
        %s251 = scalar_select %p250, %s19, 1
        %s252 = smul.addr %s251, 51
        %s253 = smul.addr %s252, 4
        %s254 = scalar_lea.vmem %s3, %s253
      $region40: #{stem_forward.2} parent=23 // pred_fallthru
        _
    $region24: #{stem_forward.2} parent=5 // pred_fallthru
      _
    %p255 = scmp.le.s32.totalorder 1, %s12
    %p256 = scmp.lt.s32.totalorder %s12, 3
    %p257 = pnand %p255, %p256
    %p258 = pneg %p257
    // Predicated region
    $region41: #{stem_forward.2} parent=5 // pred_check
      _
    $region42: #{stem_forward.2} parent=5 // pred_check_branch
      %260 = sbr.rel (%p257) target = $region44
    $region43: #{stem_forward.2} parent=5 // pred_region
      %s261 = ssub.s32 %s12, 1
      %p262 = scmp.lt.s32.totalorder %s21, 1
      %s263 = scalar_select %p262, %s21, 1
      %s264 = smul.addr %s263, 51
      %s265 = smul.addr %s264, 4
      %s266 = scalar_lea.vmem %s0, %s265
      %p267 = pneg %p50
      %p268 = pneg %p47
      %p269 = scmp.lt.s32.totalorder %s21, 1
      %s270 = scalar_select %p269, %s21, 1
      %s271 = smul.addr %s270, 51
      %s272 = smul.addr %s271, 4
      %s273 = scalar_lea.vmem %s1, %s272
      %p274 = pneg %p76
      %p275 = pneg %p73
      %p276 = scmp.lt.s32.totalorder %s21, 1
      %s277 = scalar_select %p276, %s21, 1
      %s278 = smul.addr %s277, 51
      %s279 = smul.addr %s278, 4
      %s280 = scalar_lea.vmem %s2, %s279
      %p281 = pneg %p102
      %p282 = pneg %p99
      %p283 = scmp.lt.s32.totalorder %s21, 1
      %s284 = scalar_select %p283, %s21, 1
      %s285 = smul.addr %s284, 51
      %s286 = smul.addr %s285, 4
      %s287 = scalar_lea.vmem %s3, %s286
      %p288 = pneg %p128
      %p289 = pneg %p125
      %p290 = pneg %p149
      %p291 = pneg %p146
      %p292 = pneg %p170
      %p293 = pneg %p167
      %p294 = pneg %p198
      %p295 = pneg %p195
      %s296 = smul.u32 32, %s22
      %p297 = scmp.lt.s32.totalorder %s21, 1
      %s298 = scalar_select %p297, %s21, 1
      %p299 = scmp.lt.s32.totalorder %s296, 31
      %s300 = scalar_select %p299, %s296, 31
      %s301 = smul.addr %s298, 32
      %s302 = sadd.s32 %s300, %s301
      %s303 = smul.addr %s302, 4
      %s304 = scalar_lea.vmem %s6, %s303
      %p305 = scmp.lt.s32.totalorder %s21, 1
      %s306 = scalar_select %p305, %s21, 1
      %s307 = smul.addr %s306, 51
      %s308 = smul.addr %s307, 4
      %s309 = scalar_lea.vmem %s0, %s308
      %p310 = scmp.lt.s32.totalorder %s21, 1
      %s311 = scalar_select %p310, %s21, 1
      %s312 = smul.addr %s311, 51
      %s313 = smul.addr %s312, 4
      %s314 = scalar_lea.vmem %s1, %s313
      %p315 = scmp.lt.s32.totalorder %s21, 1
      %s316 = scalar_select %p315, %s21, 1
      %s317 = smul.addr %s316, 51
      %s318 = smul.addr %s317, 4
      %s319 = scalar_lea.vmem %s2, %s318
      %p320 = scmp.lt.s32.totalorder %s21, 1
      %s321 = scalar_select %p320, %s21, 1
      %s322 = smul.addr %s321, 51
      %s323 = smul.addr %s322, 4
      %s324 = scalar_lea.vmem %s3, %s323
      %s325 = smul.u32 32, %s22
      %p326 = scmp.lt.s32.totalorder %s21, 1
      %s327 = scalar_select %p326, %s21, 1
      %p328 = scmp.lt.s32.totalorder %s325, 31
      %s329 = scalar_select %p328, %s325, 31
      %s330 = smul.addr %s327, 32
      %s331 = sadd.s32 %s329, %s330
      %s332 = smul.addr %s331, 4
      %s333 = scalar_lea.vmem %s6, %s332
      %s334 = smul.u32 32, %s22
      %s336 = smul.u32 %s22, 16
      %s337 = smul.u32 %s336, 3
      %s338 = smul.addr %s337, 4
      %s339 = scalar_lea.vmem %s309, %s338
      %v340 = vld [vmem:[%s339] sm:$0xf]
      %v341 = vld [vmem:[%s339 + $0x4] sm:$0xf]
      %v342 = vld [vmem:[%s339 + $0xc] sm:$0xf]
      %v343 = vld [vmem:[%s339 + $0x10] sm:$0xf]
      %v344 = vld [vmem:[%s339 + $0x18] sm:$0xf]
      %v345 = vld [vmem:[%s339 + $0x1c] sm:$0xf]
      %v346 = vld [vmem:[%s339 + $0x24] sm:$0xf]
      %v347 = vld [vmem:[%s339 + $0x28] sm:$0xf]
      %v348 = vld [vmem:[%s339 + $0x30] sm:$0xf]
      %v349 = vld [vmem:[%s339 + $0x34] sm:$0xf]
      %v350 = vld [vmem:[%s339 + $0x3c] sm:$0xf]
      %v351 = vld [vmem:[%s339 + $0x40] sm:$0xf]
      %v352 = vld [vmem:[%s339 + $0x48] sm:$0xf]
      %v353 = vld [vmem:[%s339 + $0x4c] sm:$0xf]
      %v354 = vld [vmem:[%s339 + $0x54] sm:$0xf]
      %v355 = vld [vmem:[%s339 + $0x58] sm:$0xf]
      %v356 = vld [vmem:[%s339 + $0x60] sm:$0xf]
      %v357 = vld [vmem:[%s339 + $0x64] sm:$0xf]
      %v358 = vld [vmem:[%s339 + $0x6c] sm:$0xf]
      %v359 = vld [vmem:[%s339 + $0x70] sm:$0xf]
      %v360 = vld [vmem:[%s339 + $0x78] sm:$0xf]
      %v361 = vld [vmem:[%s339 + $0x7c] sm:$0xf]
      %v362 = vld [vmem:[%s339 + $0x84] sm:$0xf]
      %v363 = vld [vmem:[%s339 + $0x88] sm:$0xf]
      %v364 = vld [vmem:[%s339 + $0x90] sm:$0xf]
      %v365 = vld [vmem:[%s339 + $0x94] sm:$0xf]
      %v366 = vld [vmem:[%s339 + $0x9c] sm:$0xf]
      %v367 = vld [vmem:[%s339 + $0xa0] sm:$0xf]
      %v368 = vld [vmem:[%s339 + $0xa8] sm:$0xf]
      %v369 = vld [vmem:[%s339 + $0xac] sm:$0xf]
      %v370 = vld [vmem:[%s339 + $0xb4] sm:$0xf]
      %v371 = vld [vmem:[%s339 + $0xb8] sm:$0xf]
      %s372 = smul.addr %s337, 4
      %s373 = scalar_lea.vmem %s314, %s372
      %v374 = vld [vmem:[%s373] sm:$0xf]
      %v375 = vld [vmem:[%s373 + $0x4] sm:$0xf]
      %v376 = vld [vmem:[%s373 + $0xc] sm:$0xf]
      %v377 = vld [vmem:[%s373 + $0x10] sm:$0xf]
      %v378 = vld [vmem:[%s373 + $0x18] sm:$0xf]
      %v379 = vld [vmem:[%s373 + $0x1c] sm:$0xf]
      %v380 = vld [vmem:[%s373 + $0x24] sm:$0xf]
      %v381 = vld [vmem:[%s373 + $0x28] sm:$0xf]
      %v382 = vld [vmem:[%s373 + $0x30] sm:$0xf]
      %v383 = vld [vmem:[%s373 + $0x34] sm:$0xf]
      %v384 = vld [vmem:[%s373 + $0x3c] sm:$0xf]
      %v385 = vld [vmem:[%s373 + $0x40] sm:$0xf]
      %v386 = vld [vmem:[%s373 + $0x48] sm:$0xf]
      %v387 = vld [vmem:[%s373 + $0x4c] sm:$0xf]
      %v388 = vld [vmem:[%s373 + $0x54] sm:$0xf]
      %v389 = vld [vmem:[%s373 + $0x58] sm:$0xf]
      %v390 = vld [vmem:[%s373 + $0x60] sm:$0xf]
      %v391 = vld [vmem:[%s373 + $0x64] sm:$0xf]
      %v392 = vld [vmem:[%s373 + $0x6c] sm:$0xf]
      %v393 = vld [vmem:[%s373 + $0x70] sm:$0xf]
      %v394 = vld [vmem:[%s373 + $0x78] sm:$0xf]
      %v395 = vld [vmem:[%s373 + $0x7c] sm:$0xf]
      %v396 = vld [vmem:[%s373 + $0x84] sm:$0xf]
      %v397 = vld [vmem:[%s373 + $0x88] sm:$0xf]
      %v398 = vld [vmem:[%s373 + $0x90] sm:$0xf]
      %v399 = vld [vmem:[%s373 + $0x94] sm:$0xf]
      %v400 = vld [vmem:[%s373 + $0x9c] sm:$0xf]
      %v401 = vld [vmem:[%s373 + $0xa0] sm:$0xf]
      %v402 = vld [vmem:[%s373 + $0xa8] sm:$0xf]
      %v403 = vld [vmem:[%s373 + $0xac] sm:$0xf]
      %v404 = vld [vmem:[%s373 + $0xb4] sm:$0xf]
      %v405 = vld [vmem:[%s373 + $0xb8] sm:$0xf]
      %v406 = vld [vmem:[%s339 + $0x8] sm:$0x1]
      %v407 = vld [vmem:[%s339 + $0x14] sm:$0x1]
      %v408 = vld [vmem:[%s339 + $0x20] sm:$0x1]
      %v409 = vld [vmem:[%s339 + $0x2c] sm:$0x1]
      %v410 = vld [vmem:[%s339 + $0x38] sm:$0x1]
      %v411 = vld [vmem:[%s339 + $0x44] sm:$0x1]
      %v412 = vld [vmem:[%s339 + $0x50] sm:$0x1]
      %v413 = vld [vmem:[%s339 + $0x5c] sm:$0x1]
      %v414 = vld [vmem:[%s339 + $0x68] sm:$0x1]
      %v415 = vld [vmem:[%s339 + $0x74] sm:$0x1]
      %v416 = vld [vmem:[%s339 + $0x80] sm:$0x1]
      %v417 = vld [vmem:[%s339 + $0x8c] sm:$0x1]
      %v418 = vld [vmem:[%s339 + $0x98] sm:$0x1]
      %v419 = vld [vmem:[%s339 + $0xa4] sm:$0x1]
      %v420 = vld [vmem:[%s339 + $0xb0] sm:$0x1]
      %v421 = vld [vmem:[%s339 + $0xbc] sm:$0x1]
      %s422 = smul.addr %s337, 4
      %s423 = scalar_lea.vmem %s319, %s422
      %v424 = vld [vmem:[%s423] sm:$0xf]
      %v425 = vld [vmem:[%s423 + $0x4] sm:$0xf]
      %v426 = vld [vmem:[%s423 + $0xc] sm:$0xf]
      %v427 = vld [vmem:[%s423 + $0x10] sm:$0xf]
      %v428 = vld [vmem:[%s423 + $0x18] sm:$0xf]
      %v429 = vld [vmem:[%s423 + $0x1c] sm:$0xf]
      %v430 = vld [vmem:[%s423 + $0x24] sm:$0xf]
      %v431 = vld [vmem:[%s423 + $0x28] sm:$0xf]
      %v432 = vld [vmem:[%s423 + $0x30] sm:$0xf]
      %v433 = vld [vmem:[%s423 + $0x34] sm:$0xf]
      %v434 = vld [vmem:[%s423 + $0x3c] sm:$0xf]
      %v435 = vld [vmem:[%s423 + $0x40] sm:$0xf]
      %v436 = vld [vmem:[%s423 + $0x48] sm:$0xf]
      %v437 = vld [vmem:[%s423 + $0x4c] sm:$0xf]
      %v438 = vld [vmem:[%s423 + $0x54] sm:$0xf]
      %v439 = vld [vmem:[%s423 + $0x58] sm:$0xf]
      %v440 = vld [vmem:[%s423 + $0x60] sm:$0xf]
      %v441 = vld [vmem:[%s423 + $0x64] sm:$0xf]
      %v442 = vld [vmem:[%s423 + $0x6c] sm:$0xf]
      %v443 = vld [vmem:[%s423 + $0x70] sm:$0xf]
      %v444 = vld [vmem:[%s423 + $0x78] sm:$0xf]
      %v445 = vld [vmem:[%s423 + $0x7c] sm:$0xf]
      %v446 = vld [vmem:[%s423 + $0x84] sm:$0xf]
      %v447 = vld [vmem:[%s423 + $0x88] sm:$0xf]
      %v448 = vld [vmem:[%s423 + $0x90] sm:$0xf]
      %v449 = vld [vmem:[%s423 + $0x94] sm:$0xf]
      %v450 = vld [vmem:[%s423 + $0x9c] sm:$0xf]
      %v451 = vld [vmem:[%s423 + $0xa0] sm:$0xf]
      %v452 = vld [vmem:[%s423 + $0xa8] sm:$0xf]
      %v453 = vld [vmem:[%s423 + $0xac] sm:$0xf]
      %v454 = vld [vmem:[%s423 + $0xb4] sm:$0xf]
      %v455 = vld [vmem:[%s423 + $0xb8] sm:$0xf]
      %s456 = smul.addr %s337, 4
      %s457 = scalar_lea.vmem %s324, %s456
      %v458 = vld [vmem:[%s457] sm:$0xf]
      %v459 = vld [vmem:[%s457 + $0x4] sm:$0xf]
      %v460 = vld [vmem:[%s457 + $0xc] sm:$0xf]
      %v461 = vld [vmem:[%s457 + $0x10] sm:$0xf]
      %v462 = vld [vmem:[%s457 + $0x18] sm:$0xf]
      %v463 = vld [vmem:[%s457 + $0x1c] sm:$0xf]
      %v464 = vld [vmem:[%s457 + $0x24] sm:$0xf]
      %v465 = vld [vmem:[%s457 + $0x28] sm:$0xf]
      %v466 = vld [vmem:[%s457 + $0x30] sm:$0xf]
      %v467 = vld [vmem:[%s457 + $0x34] sm:$0xf]
      %v468 = vld [vmem:[%s457 + $0x3c] sm:$0xf]
      %v469 = vld [vmem:[%s457 + $0x40] sm:$0xf]
      %v470 = vld [vmem:[%s457 + $0x48] sm:$0xf]
      %v471 = vld [vmem:[%s457 + $0x4c] sm:$0xf]
      %v472 = vld [vmem:[%s457 + $0x54] sm:$0xf]
      %v473 = vld [vmem:[%s457 + $0x58] sm:$0xf]
      %v474 = vld [vmem:[%s457 + $0x60] sm:$0xf]
      %v475 = vld [vmem:[%s457 + $0x64] sm:$0xf]
      %v476 = vld [vmem:[%s457 + $0x6c] sm:$0xf]
      %v477 = vld [vmem:[%s457 + $0x70] sm:$0xf]
      %v478 = vld [vmem:[%s457 + $0x78] sm:$0xf]
      %v479 = vld [vmem:[%s457 + $0x7c] sm:$0xf]
      %v480 = vld [vmem:[%s457 + $0x84] sm:$0xf]
      %v481 = vld [vmem:[%s457 + $0x88] sm:$0xf]
      %v482 = vld [vmem:[%s457 + $0x90] sm:$0xf]
      %v483 = vld [vmem:[%s457 + $0x94] sm:$0xf]
      %v484 = vld [vmem:[%s457 + $0x9c] sm:$0xf]
      %v485 = vld [vmem:[%s457 + $0xa0] sm:$0xf]
      %v486 = vld [vmem:[%s457 + $0xa8] sm:$0xf]
      %v487 = vld [vmem:[%s457 + $0xac] sm:$0xf]
      %v488 = vld [vmem:[%s457 + $0xb4] sm:$0xf]
      %v489 = vld [vmem:[%s457 + $0xb8] sm:$0xf]
      %v490 = vld [vmem:[%s423 + $0x8] sm:$0x1]
      %v491 = vld [vmem:[%s423 + $0x14] sm:$0x1]
      %v492 = vld [vmem:[%s423 + $0x20] sm:$0x1]
      %v493 = vld [vmem:[%s423 + $0x2c] sm:$0x1]
      %v494 = vld [vmem:[%s423 + $0x38] sm:$0x1]
      %v495 = vld [vmem:[%s423 + $0x44] sm:$0x1]
      %v496 = vld [vmem:[%s423 + $0x50] sm:$0x1]
      %v497 = vld [vmem:[%s423 + $0x5c] sm:$0x1]
      %v498 = vld [vmem:[%s423 + $0x68] sm:$0x1]
      %v499 = vld [vmem:[%s423 + $0x74] sm:$0x1]
      %v500 = vld [vmem:[%s423 + $0x80] sm:$0x1]
      %v501 = vld [vmem:[%s423 + $0x8c] sm:$0x1]
      %v502 = vld [vmem:[%s423 + $0x98] sm:$0x1]
      %v503 = vld [vmem:[%s423 + $0xa4] sm:$0x1]
      %v504 = vld [vmem:[%s423 + $0xb0] sm:$0x1]
      %v505 = vld [vmem:[%s423 + $0xbc] sm:$0x1]
      %s506 = sadd.s32 %s336, 1
      %s507 = smul.u32 %s506, 3
      %s508 = smul.addr %s507, 4
      %s509 = scalar_lea.vmem %s309, %s508
      %v510 = vld [vmem:[%s509] sm:$0xf]
      %v511 = vld [vmem:[%s509 + $0x4] sm:$0xf]
      %v512 = vld [vmem:[%s509 + $0xc] sm:$0xf]
      %v513 = vld [vmem:[%s509 + $0x10] sm:$0xf]
      %v514 = vld [vmem:[%s509 + $0x18] sm:$0xf]
      %v515 = vld [vmem:[%s509 + $0x1c] sm:$0xf]
      %v516 = vld [vmem:[%s509 + $0x24] sm:$0xf]
      %v517 = vld [vmem:[%s509 + $0x28] sm:$0xf]
      %v518 = vld [vmem:[%s509 + $0x30] sm:$0xf]
      %v519 = vld [vmem:[%s509 + $0x34] sm:$0xf]
      %v520 = vld [vmem:[%s509 + $0x3c] sm:$0xf]
      %v521 = vld [vmem:[%s509 + $0x40] sm:$0xf]
      %v522 = vld [vmem:[%s509 + $0x48] sm:$0xf]
      %v523 = vld [vmem:[%s509 + $0x4c] sm:$0xf]
      %v524 = vld [vmem:[%s509 + $0x54] sm:$0xf]
      %v525 = vld [vmem:[%s509 + $0x58] sm:$0xf]
      %v526 = vld [vmem:[%s509 + $0x60] sm:$0xf]
      %v527 = vld [vmem:[%s509 + $0x64] sm:$0xf]
      %v528 = vld [vmem:[%s509 + $0x6c] sm:$0xf]
      %v529 = vld [vmem:[%s509 + $0x70] sm:$0xf]
      %v530 = vld [vmem:[%s509 + $0x78] sm:$0xf]
      %v531 = vld [vmem:[%s509 + $0x7c] sm:$0xf]
      %v532 = vld [vmem:[%s509 + $0x84] sm:$0xf]
      %v533 = vld [vmem:[%s509 + $0x88] sm:$0xf]
      %v534 = vld [vmem:[%s509 + $0x90] sm:$0xf]
      %v535 = vld [vmem:[%s509 + $0x94] sm:$0xf]
      %v536 = vld [vmem:[%s509 + $0x9c] sm:$0xf]
      %v537 = vld [vmem:[%s509 + $0xa0] sm:$0xf]
      %v538 = vld [vmem:[%s509 + $0xa8] sm:$0xf]
      %v539 = vld [vmem:[%s509 + $0xac] sm:$0xf]
      %v540 = vld [vmem:[%s509 + $0xb4] sm:$0xf]
      %v541 = vld [vmem:[%s509 + $0xb8] sm:$0xf]
      %s542 = smul.addr %s507, 4
      %s543 = scalar_lea.vmem %s314, %s542
      %v544 = vld [vmem:[%s543] sm:$0xf]
      %v545 = vld [vmem:[%s543 + $0x4] sm:$0xf]
      %v546 = vld [vmem:[%s543 + $0xc] sm:$0xf]
      %v547 = vld [vmem:[%s543 + $0x10] sm:$0xf]
      %v548 = vld [vmem:[%s543 + $0x18] sm:$0xf]
      %v549 = vld [vmem:[%s543 + $0x1c] sm:$0xf]
      %v550 = vld [vmem:[%s543 + $0x24] sm:$0xf]
      %v551 = vld [vmem:[%s543 + $0x28] sm:$0xf]
      %v552 = vld [vmem:[%s543 + $0x30] sm:$0xf]
      %v553 = vld [vmem:[%s543 + $0x34] sm:$0xf]
      %v554 = vld [vmem:[%s543 + $0x3c] sm:$0xf]
      %v555 = vld [vmem:[%s543 + $0x40] sm:$0xf]
      %v556 = vld [vmem:[%s543 + $0x48] sm:$0xf]
      %v557 = vld [vmem:[%s543 + $0x4c] sm:$0xf]
      %v558 = vld [vmem:[%s543 + $0x54] sm:$0xf]
      %v559 = vld [vmem:[%s543 + $0x58] sm:$0xf]
      %v560 = vld [vmem:[%s543 + $0x60] sm:$0xf]
      %v561 = vld [vmem:[%s543 + $0x64] sm:$0xf]
      %v562 = vld [vmem:[%s543 + $0x6c] sm:$0xf]
      %v563 = vld [vmem:[%s543 + $0x70] sm:$0xf]
      %v564 = vld [vmem:[%s543 + $0x78] sm:$0xf]
      %v565 = vld [vmem:[%s543 + $0x7c] sm:$0xf]
      %v566 = vld [vmem:[%s543 + $0x84] sm:$0xf]
      %v567 = vld [vmem:[%s543 + $0x88] sm:$0xf]
      %v568 = vld [vmem:[%s543 + $0x90] sm:$0xf]
      %v569 = vld [vmem:[%s543 + $0x94] sm:$0xf]
      %v570 = vld [vmem:[%s543 + $0x9c] sm:$0xf]
      %v571 = vld [vmem:[%s543 + $0xa0] sm:$0xf]
      %v572 = vld [vmem:[%s543 + $0xa8] sm:$0xf]
      %v573 = vld [vmem:[%s543 + $0xac] sm:$0xf]
      %v574 = vld [vmem:[%s543 + $0xb4] sm:$0xf]
      %v575 = vld [vmem:[%s543 + $0xb8] sm:$0xf]
      %v576 = vld [vmem:[%s509 + $0x8] sm:$0x1]
      %v577 = vld [vmem:[%s509 + $0x14] sm:$0x1]
      %v578 = vld [vmem:[%s509 + $0x20] sm:$0x1]
      %v579 = vld [vmem:[%s509 + $0x2c] sm:$0x1]
      %v580 = vld [vmem:[%s509 + $0x38] sm:$0x1]
      %v581 = vld [vmem:[%s509 + $0x44] sm:$0x1]
      %v582 = vld [vmem:[%s509 + $0x50] sm:$0x1]
      %v583 = vld [vmem:[%s509 + $0x5c] sm:$0x1]
      %v584 = vld [vmem:[%s509 + $0x68] sm:$0x1]
      %v585 = vld [vmem:[%s509 + $0x74] sm:$0x1]
      %v586 = vld [vmem:[%s509 + $0x80] sm:$0x1]
      %v587 = vld [vmem:[%s509 + $0x8c] sm:$0x1]
      %v588 = vld [vmem:[%s509 + $0x98] sm:$0x1]
      %v589 = vld [vmem:[%s509 + $0xa4] sm:$0x1]
      %v590 = vld [vmem:[%s509 + $0xb0] sm:$0x1]
      %v591 = vld [vmem:[%s509 + $0xbc] sm:$0x1]
      %v624 = vunpack.c.l.b16 %v340
      %v625 = vunpack.c.l.b16 %v341
      %v626 = vunpack.c.l.b16 %v342
      %v627 = vunpack.c.l.b16 %v343
      %v628 = vunpack.c.l.b16 %v344
      %v629 = vunpack.c.l.b16 %v345
      %v630 = vunpack.c.l.b16 %v346
      %v631 = vunpack.c.l.b16 %v347
      %v632 = vunpack.c.l.b16 %v348
      %v633 = vunpack.c.l.b16 %v349
      %v634 = vunpack.c.l.b16 %v350
      %v635 = vunpack.c.l.b16 %v351
      %v636 = vunpack.c.l.b16 %v352
      %v637 = vunpack.c.l.b16 %v353
      %v638 = vunpack.c.l.b16 %v354
      %v639 = vunpack.c.l.b16 %v355
      %v640 = vunpack.c.l.b16 %v356
      %v641 = vunpack.c.l.b16 %v357
      %v642 = vunpack.c.l.b16 %v358
      %v643 = vunpack.c.l.b16 %v359
      %v644 = vunpack.c.l.b16 %v360
      %v645 = vunpack.c.l.b16 %v361
      %v646 = vunpack.c.l.b16 %v362
      %v647 = vunpack.c.l.b16 %v363
      %v648 = vunpack.c.l.b16 %v364
      %v649 = vunpack.c.l.b16 %v365
      %v650 = vunpack.c.l.b16 %v366
      %v651 = vunpack.c.l.b16 %v367
      %v652 = vunpack.c.l.b16 %v368
      %v653 = vunpack.c.l.b16 %v369
      %v654 = vunpack.c.l.b16 %v370
      %v655 = vunpack.c.l.b16 %v371
      %v656 = vpack.c.b16 %v625, %v624
      %v657 = vpack.c.b16 %v627, %v626
      %v658 = vpack.c.b16 %v629, %v628
      %v659 = vpack.c.b16 %v631, %v630
      %v660 = vpack.c.b16 %v633, %v632
      %v661 = vpack.c.b16 %v635, %v634
      %v662 = vpack.c.b16 %v637, %v636
      %v663 = vpack.c.b16 %v639, %v638
      %v664 = vpack.c.b16 %v641, %v640
      %v665 = vpack.c.b16 %v643, %v642
      %v666 = vpack.c.b16 %v645, %v644
      %v667 = vpack.c.b16 %v647, %v646
      %v668 = vpack.c.b16 %v649, %v648
      %v669 = vpack.c.b16 %v651, %v650
      %v670 = vpack.c.b16 %v653, %v652
      %v671 = vpack.c.b16 %v655, %v654
      %v704 = vunpack.c.l.b16 %v374
      %v705 = vunpack.c.l.b16 %v375
      %v706 = vunpack.c.l.b16 %v376
      %v707 = vunpack.c.l.b16 %v377
      %v708 = vunpack.c.l.b16 %v378
      %v709 = vunpack.c.l.b16 %v379
      %v710 = vunpack.c.l.b16 %v380
      %v711 = vunpack.c.l.b16 %v381
      %v712 = vunpack.c.l.b16 %v382
      %v713 = vunpack.c.l.b16 %v383
      %v714 = vunpack.c.l.b16 %v384
      %v715 = vunpack.c.l.b16 %v385
      %v716 = vunpack.c.l.b16 %v386
      %v717 = vunpack.c.l.b16 %v387
      %v718 = vunpack.c.l.b16 %v388
      %v719 = vunpack.c.l.b16 %v389
      %v720 = vunpack.c.l.b16 %v390
      %v721 = vunpack.c.l.b16 %v391
      %v722 = vunpack.c.l.b16 %v392
      %v723 = vunpack.c.l.b16 %v393
      %v724 = vunpack.c.l.b16 %v394
      %v725 = vunpack.c.l.b16 %v395
      %v726 = vunpack.c.l.b16 %v396
      %v727 = vunpack.c.l.b16 %v397
      %v728 = vunpack.c.l.b16 %v398
      %v729 = vunpack.c.l.b16 %v399
      %v730 = vunpack.c.l.b16 %v400
      %v731 = vunpack.c.l.b16 %v401
      %v732 = vunpack.c.l.b16 %v402
      %v733 = vunpack.c.l.b16 %v403
      %v734 = vunpack.c.l.b16 %v404
      %v735 = vunpack.c.l.b16 %v405
      %v736 = vpack.c.b16 %v705, %v704
      %v737 = vpack.c.b16 %v707, %v706
      %v738 = vpack.c.b16 %v709, %v708
      %v739 = vpack.c.b16 %v711, %v710
      %v740 = vpack.c.b16 %v713, %v712
      %v741 = vpack.c.b16 %v715, %v714
      %v742 = vpack.c.b16 %v717, %v716
      %v743 = vpack.c.b16 %v719, %v718
      %v744 = vpack.c.b16 %v721, %v720
      %v745 = vpack.c.b16 %v723, %v722
      %v746 = vpack.c.b16 %v725, %v724
      %v747 = vpack.c.b16 %v727, %v726
      %v748 = vpack.c.b16 %v729, %v728
      %v749 = vpack.c.b16 %v731, %v730
      %v750 = vpack.c.b16 %v733, %v732
      %v751 = vpack.c.b16 %v735, %v734
      %752 = vrot.lane.b32.xlu0 %v736, 3
      %v753 = vpop.permute.xlu0 %752
      %754 = vrot.lane.b32.xlu0 %v737, 3
      %v755 = vpop.permute.xlu0 %754
      %756 = vrot.lane.b32.xlu0 %v738, 3
      %v757 = vpop.permute.xlu0 %756
      %758 = vrot.lane.b32.xlu0 %v739, 3
      %v759 = vpop.permute.xlu0 %758
      %760 = vrot.lane.b32.xlu0 %v740, 3
      %v761 = vpop.permute.xlu0 %760
      %762 = vrot.lane.b32.xlu0 %v741, 3
      %v763 = vpop.permute.xlu0 %762
      %764 = vrot.lane.b32.xlu0 %v742, 3
      %v765 = vpop.permute.xlu0 %764
      %766 = vrot.lane.b32.xlu0 %v743, 3
      %v767 = vpop.permute.xlu0 %766
      %768 = vrot.lane.b32.xlu0 %v744, 3
      %v769 = vpop.permute.xlu0 %768
      %770 = vrot.lane.b32.xlu0 %v745, 3
      %v771 = vpop.permute.xlu0 %770
      %772 = vrot.lane.b32.xlu0 %v746, 3
      %v773 = vpop.permute.xlu0 %772
      %774 = vrot.lane.b32.xlu0 %v747, 3
      %v775 = vpop.permute.xlu0 %774
      %776 = vrot.lane.b32.xlu0 %v748, 3
      %v777 = vpop.permute.xlu0 %776
      %778 = vrot.lane.b32.xlu0 %v749, 3
      %v779 = vpop.permute.xlu0 %778
      %780 = vrot.lane.b32.xlu0 %v750, 3
      %v781 = vpop.permute.xlu0 %780
      %782 = vrot.lane.b32.xlu0 %v751, 3
      %v783 = vpop.permute.xlu0 %782
      %v800 = vunpack.c.l.b16 %v406
      %v801 = vunpack.c.l.b16 %v407
      %v802 = vunpack.c.l.b16 %v408
      %v803 = vunpack.c.l.b16 %v409
      %v804 = vunpack.c.l.b16 %v410
      %v805 = vunpack.c.l.b16 %v411
      %v806 = vunpack.c.l.b16 %v412
      %v807 = vunpack.c.l.b16 %v413
      %v808 = vunpack.c.l.b16 %v414
      %v809 = vunpack.c.l.b16 %v415
      %v810 = vunpack.c.l.b16 %v416
      %v811 = vunpack.c.l.b16 %v417
      %v812 = vunpack.c.l.b16 %v418
      %v813 = vunpack.c.l.b16 %v419
      %v814 = vunpack.c.l.b16 %v420
      %v815 = vunpack.c.l.b16 %v421
      %v816 = vpack.c.b16 %v800, %v800
      %v817 = vpack.c.b16 %v801, %v801
      %v818 = vpack.c.b16 %v802, %v802
      %v819 = vpack.c.b16 %v803, %v803
      %v820 = vpack.c.b16 %v804, %v804
      %v821 = vpack.c.b16 %v805, %v805
      %v822 = vpack.c.b16 %v806, %v806
      %v823 = vpack.c.b16 %v807, %v807
      %v824 = vpack.c.b16 %v808, %v808
      %v825 = vpack.c.b16 %v809, %v809
      %v826 = vpack.c.b16 %v810, %v810
      %v827 = vpack.c.b16 %v811, %v811
      %v828 = vpack.c.b16 %v812, %v812
      %v829 = vpack.c.b16 %v813, %v813
      %v830 = vpack.c.b16 %v814, %v814
      %v831 = vpack.c.b16 %v815, %v815
      %vm832 = vsmask.f32 7424
      %v834 = vshrl.u32 %v656, 16
      %v836 = vshll.u32 %v656, 16
      %v838 = vrot.slane %v836, 1
      %v839 = vor.u32 %v834, %v838
      %v841 = vshll.u32 %v816, 16
      %v843 = vrot.slane %v841, 1
      %v844 = vsel %vm832, %v839, %v843
      %v846 = vshrl.u32 %v657, 16
      %v848 = vshll.u32 %v657, 16
      %v850 = vrot.slane %v848, 1
      %v851 = vor.u32 %v846, %v850
      %v853 = vshll.u32 %v817, 16
      %v855 = vrot.slane %v853, 1
      %v856 = vsel %vm832, %v851, %v855
      %v858 = vshrl.u32 %v658, 16
      %v860 = vshll.u32 %v658, 16
      %v862 = vrot.slane %v860, 1
      %v863 = vor.u32 %v858, %v862
      %v865 = vshll.u32 %v818, 16
      %v867 = vrot.slane %v865, 1
      %v868 = vsel %vm832, %v863, %v867
      %v870 = vshrl.u32 %v659, 16
      %v872 = vshll.u32 %v659, 16
      %v874 = vrot.slane %v872, 1
      %v875 = vor.u32 %v870, %v874
      %v877 = vshll.u32 %v819, 16
      %v879 = vrot.slane %v877, 1
      %v880 = vsel %vm832, %v875, %v879
      %v882 = vshrl.u32 %v660, 16
      %v884 = vshll.u32 %v660, 16
      %v886 = vrot.slane %v884, 1
      %v887 = vor.u32 %v882, %v886
      %v889 = vshll.u32 %v820, 16
      %v891 = vrot.slane %v889, 1
      %v892 = vsel %vm832, %v887, %v891
      %v894 = vshrl.u32 %v661, 16
      %v896 = vshll.u32 %v661, 16
      %v898 = vrot.slane %v896, 1
      %v899 = vor.u32 %v894, %v898
      %v901 = vshll.u32 %v821, 16
      %v903 = vrot.slane %v901, 1
      %v904 = vsel %vm832, %v899, %v903
      %v906 = vshrl.u32 %v662, 16
      %v908 = vshll.u32 %v662, 16
      %v910 = vrot.slane %v908, 1
      %v911 = vor.u32 %v906, %v910
      %v913 = vshll.u32 %v822, 16
      %v915 = vrot.slane %v913, 1
      %v916 = vsel %vm832, %v911, %v915
      %v918 = vshrl.u32 %v663, 16
      %v920 = vshll.u32 %v663, 16
      %v922 = vrot.slane %v920, 1
      %v923 = vor.u32 %v918, %v922
      %v925 = vshll.u32 %v823, 16
      %v927 = vrot.slane %v925, 1
      %v928 = vsel %vm832, %v923, %v927
      %v930 = vshrl.u32 %v664, 16
      %v932 = vshll.u32 %v664, 16
      %v934 = vrot.slane %v932, 1
      %v935 = vor.u32 %v930, %v934
      %v937 = vshll.u32 %v824, 16
      %v939 = vrot.slane %v937, 1
      %v940 = vsel %vm832, %v935, %v939
      %v942 = vshrl.u32 %v665, 16
      %v944 = vshll.u32 %v665, 16
      %v946 = vrot.slane %v944, 1
      %v947 = vor.u32 %v942, %v946
      %v949 = vshll.u32 %v825, 16
      %v951 = vrot.slane %v949, 1
      %v952 = vsel %vm832, %v947, %v951
      %v954 = vshrl.u32 %v666, 16
      %v956 = vshll.u32 %v666, 16
      %v958 = vrot.slane %v956, 1
      %v959 = vor.u32 %v954, %v958
      %v961 = vshll.u32 %v826, 16
      %v963 = vrot.slane %v961, 1
      %v964 = vsel %vm832, %v959, %v963
      %v966 = vshrl.u32 %v667, 16
      %v968 = vshll.u32 %v667, 16
      %v970 = vrot.slane %v968, 1
      %v971 = vor.u32 %v966, %v970
      %v973 = vshll.u32 %v827, 16
      %v975 = vrot.slane %v973, 1
      %v976 = vsel %vm832, %v971, %v975
      %v978 = vshrl.u32 %v668, 16
      %v980 = vshll.u32 %v668, 16
      %v982 = vrot.slane %v980, 1
      %v983 = vor.u32 %v978, %v982
      %v985 = vshll.u32 %v828, 16
      %v987 = vrot.slane %v985, 1
      %v988 = vsel %vm832, %v983, %v987
      %v990 = vshrl.u32 %v669, 16
      %v992 = vshll.u32 %v669, 16
      %v994 = vrot.slane %v992, 1
      %v995 = vor.u32 %v990, %v994
      %v997 = vshll.u32 %v829, 16
      %v999 = vrot.slane %v997, 1
      %v1000 = vsel %vm832, %v995, %v999
      %v1002 = vshrl.u32 %v670, 16
      %v1004 = vshll.u32 %v670, 16
      %v1006 = vrot.slane %v1004, 1
      %v1007 = vor.u32 %v1002, %v1006
      %v1009 = vshll.u32 %v830, 16
      %v1011 = vrot.slane %v1009, 1
      %v1012 = vsel %vm832, %v1007, %v1011
      %v1014 = vshrl.u32 %v671, 16
      %v1016 = vshll.u32 %v671, 16
      %v1018 = vrot.slane %v1016, 1
      %v1019 = vor.u32 %v1014, %v1018
      %v1021 = vshll.u32 %v831, 16
      %v1023 = vrot.slane %v1021, 1
      %v1024 = vsel %vm832, %v1019, %v1023
      %1025 = vrot.lane.b32.xlu0 %v844, 6
      %v1026 = vpop.permute.xlu0 %1025
      %1027 = vrot.lane.b32.xlu0 %v856, 6
      %v1028 = vpop.permute.xlu0 %1027
      %1029 = vrot.lane.b32.xlu0 %v868, 6
      %v1030 = vpop.permute.xlu0 %1029
      %1031 = vrot.lane.b32.xlu0 %v880, 6
      %v1032 = vpop.permute.xlu0 %1031
      %1033 = vrot.lane.b32.xlu0 %v892, 6
      %v1034 = vpop.permute.xlu0 %1033
      %1035 = vrot.lane.b32.xlu0 %v904, 6
      %v1036 = vpop.permute.xlu0 %1035
      %1037 = vrot.lane.b32.xlu0 %v916, 6
      %v1038 = vpop.permute.xlu0 %1037
      %1039 = vrot.lane.b32.xlu0 %v928, 6
      %v1040 = vpop.permute.xlu0 %1039
      %1041 = vrot.lane.b32.xlu0 %v940, 6
      %v1042 = vpop.permute.xlu0 %1041
      %1043 = vrot.lane.b32.xlu0 %v952, 6
      %v1044 = vpop.permute.xlu0 %1043
      %1045 = vrot.lane.b32.xlu0 %v964, 6
      %v1046 = vpop.permute.xlu0 %1045
      %1047 = vrot.lane.b32.xlu0 %v976, 6
      %v1048 = vpop.permute.xlu0 %1047
      %1049 = vrot.lane.b32.xlu0 %v988, 6
      %v1050 = vpop.permute.xlu0 %1049
      %1051 = vrot.lane.b32.xlu0 %v1000, 6
      %v1052 = vpop.permute.xlu0 %1051
      %1053 = vrot.lane.b32.xlu0 %v1012, 6
      %v1054 = vpop.permute.xlu0 %1053
      %1055 = vrot.lane.b32.xlu0 %v1024, 6
      %v1056 = vpop.permute.xlu0 %1055
      %v1089 = vunpack.c.l.b16 %v424
      %v1090 = vunpack.c.l.b16 %v425
      %v1091 = vunpack.c.l.b16 %v426
      %v1092 = vunpack.c.l.b16 %v427
      %v1093 = vunpack.c.l.b16 %v428
      %v1094 = vunpack.c.l.b16 %v429
      %v1095 = vunpack.c.l.b16 %v430
      %v1096 = vunpack.c.l.b16 %v431
      %v1097 = vunpack.c.l.b16 %v432
      %v1098 = vunpack.c.l.b16 %v433
      %v1099 = vunpack.c.l.b16 %v434
      %v1100 = vunpack.c.l.b16 %v435
      %v1101 = vunpack.c.l.b16 %v436
      %v1102 = vunpack.c.l.b16 %v437
      %v1103 = vunpack.c.l.b16 %v438
      %v1104 = vunpack.c.l.b16 %v439
      %v1105 = vunpack.c.l.b16 %v440
      %v1106 = vunpack.c.l.b16 %v441
      %v1107 = vunpack.c.l.b16 %v442
      %v1108 = vunpack.c.l.b16 %v443
      %v1109 = vunpack.c.l.b16 %v444
      %v1110 = vunpack.c.l.b16 %v445
      %v1111 = vunpack.c.l.b16 %v446
      %v1112 = vunpack.c.l.b16 %v447
      %v1113 = vunpack.c.l.b16 %v448
      %v1114 = vunpack.c.l.b16 %v449
      %v1115 = vunpack.c.l.b16 %v450
      %v1116 = vunpack.c.l.b16 %v451
      %v1117 = vunpack.c.l.b16 %v452
      %v1118 = vunpack.c.l.b16 %v453
      %v1119 = vunpack.c.l.b16 %v454
      %v1120 = vunpack.c.l.b16 %v455
      %v1121 = vpack.c.b16 %v1090, %v1089
      %v1122 = vpack.c.b16 %v1092, %v1091
      %v1123 = vpack.c.b16 %v1094, %v1093
      %v1124 = vpack.c.b16 %v1096, %v1095
      %v1125 = vpack.c.b16 %v1098, %v1097
      %v1126 = vpack.c.b16 %v1100, %v1099
      %v1127 = vpack.c.b16 %v1102, %v1101
      %v1128 = vpack.c.b16 %v1104, %v1103
      %v1129 = vpack.c.b16 %v1106, %v1105
      %v1130 = vpack.c.b16 %v1108, %v1107
      %v1131 = vpack.c.b16 %v1110, %v1109
      %v1132 = vpack.c.b16 %v1112, %v1111
      %v1133 = vpack.c.b16 %v1114, %v1113
      %v1134 = vpack.c.b16 %v1116, %v1115
      %v1135 = vpack.c.b16 %v1118, %v1117
      %v1136 = vpack.c.b16 %v1120, %v1119
      %1137 = vrot.lane.b32.xlu0 %v1121, 9
      %v1138 = vpop.permute.xlu0 %1137
      %1139 = vrot.lane.b32.xlu0 %v1122, 9
      %v1140 = vpop.permute.xlu0 %1139
      %1141 = vrot.lane.b32.xlu0 %v1123, 9
      %v1142 = vpop.permute.xlu0 %1141
      %1143 = vrot.lane.b32.xlu0 %v1124, 9
      %v1144 = vpop.permute.xlu0 %1143
      %1145 = vrot.lane.b32.xlu0 %v1125, 9
      %v1146 = vpop.permute.xlu0 %1145
      %1147 = vrot.lane.b32.xlu0 %v1126, 9
      %v1148 = vpop.permute.xlu0 %1147
      %1149 = vrot.lane.b32.xlu0 %v1127, 9
      %v1150 = vpop.permute.xlu0 %1149
      %1151 = vrot.lane.b32.xlu0 %v1128, 9
      %v1152 = vpop.permute.xlu0 %1151
      %1153 = vrot.lane.b32.xlu0 %v1129, 9
      %v1154 = vpop.permute.xlu0 %1153
      %1155 = vrot.lane.b32.xlu0 %v1130, 9
      %v1156 = vpop.permute.xlu0 %1155
      %1157 = vrot.lane.b32.xlu0 %v1131, 9
      %v1158 = vpop.permute.xlu0 %1157
      %1159 = vrot.lane.b32.xlu0 %v1132, 9
      %v1160 = vpop.permute.xlu0 %1159
      %1161 = vrot.lane.b32.xlu0 %v1133, 9
      %v1162 = vpop.permute.xlu0 %1161
      %1163 = vrot.lane.b32.xlu0 %v1134, 9
      %v1164 = vpop.permute.xlu0 %1163
      %1165 = vrot.lane.b32.xlu0 %v1135, 9
      %v1166 = vpop.permute.xlu0 %1165
      %1167 = vrot.lane.b32.xlu0 %v1136, 9
      %v1168 = vpop.permute.xlu0 %1167
      %v1201 = vunpack.c.l.b16 %v458
      %v1202 = vunpack.c.l.b16 %v459
      %v1203 = vunpack.c.l.b16 %v460
      %v1204 = vunpack.c.l.b16 %v461
      %v1205 = vunpack.c.l.b16 %v462
      %v1206 = vunpack.c.l.b16 %v463
      %v1207 = vunpack.c.l.b16 %v464
      %v1208 = vunpack.c.l.b16 %v465
      %v1209 = vunpack.c.l.b16 %v466
      %v1210 = vunpack.c.l.b16 %v467
      %v1211 = vunpack.c.l.b16 %v468
      %v1212 = vunpack.c.l.b16 %v469
      %v1213 = vunpack.c.l.b16 %v470
      %v1214 = vunpack.c.l.b16 %v471
      %v1215 = vunpack.c.l.b16 %v472
      %v1216 = vunpack.c.l.b16 %v473
      %v1217 = vunpack.c.l.b16 %v474
      %v1218 = vunpack.c.l.b16 %v475
      %v1219 = vunpack.c.l.b16 %v476
      %v1220 = vunpack.c.l.b16 %v477
      %v1221 = vunpack.c.l.b16 %v478
      %v1222 = vunpack.c.l.b16 %v479
      %v1223 = vunpack.c.l.b16 %v480
      %v1224 = vunpack.c.l.b16 %v481
      %v1225 = vunpack.c.l.b16 %v482
      %v1226 = vunpack.c.l.b16 %v483
      %v1227 = vunpack.c.l.b16 %v484
      %v1228 = vunpack.c.l.b16 %v485
      %v1229 = vunpack.c.l.b16 %v486
      %v1230 = vunpack.c.l.b16 %v487
      %v1231 = vunpack.c.l.b16 %v488
      %v1232 = vunpack.c.l.b16 %v489
      %v1233 = vpack.c.b16 %v1202, %v1201
      %v1234 = vpack.c.b16 %v1204, %v1203
      %v1235 = vpack.c.b16 %v1206, %v1205
      %v1236 = vpack.c.b16 %v1208, %v1207
      %v1237 = vpack.c.b16 %v1210, %v1209
      %v1238 = vpack.c.b16 %v1212, %v1211
      %v1239 = vpack.c.b16 %v1214, %v1213
      %v1240 = vpack.c.b16 %v1216, %v1215
      %v1241 = vpack.c.b16 %v1218, %v1217
      %v1242 = vpack.c.b16 %v1220, %v1219
      %v1243 = vpack.c.b16 %v1222, %v1221
      %v1244 = vpack.c.b16 %v1224, %v1223
      %v1245 = vpack.c.b16 %v1226, %v1225
      %v1246 = vpack.c.b16 %v1228, %v1227
      %v1247 = vpack.c.b16 %v1230, %v1229
      %v1248 = vpack.c.b16 %v1232, %v1231
      %1249 = vrot.lane.b32.xlu0 %v1233, 12
      %v1250 = vpop.permute.xlu0 %1249
      %1251 = vrot.lane.b32.xlu0 %v1234, 12
      %v1252 = vpop.permute.xlu0 %1251
      %1253 = vrot.lane.b32.xlu0 %v1235, 12
      %v1254 = vpop.permute.xlu0 %1253
      %1255 = vrot.lane.b32.xlu0 %v1236, 12
      %v1256 = vpop.permute.xlu0 %1255
      %1257 = vrot.lane.b32.xlu0 %v1237, 12
      %v1258 = vpop.permute.xlu0 %1257
      %1259 = vrot.lane.b32.xlu0 %v1238, 12
      %v1260 = vpop.permute.xlu0 %1259
      %1261 = vrot.lane.b32.xlu0 %v1239, 12
      %v1262 = vpop.permute.xlu0 %1261
      %1263 = vrot.lane.b32.xlu0 %v1240, 12
      %v1264 = vpop.permute.xlu0 %1263
      %1265 = vrot.lane.b32.xlu0 %v1241, 12
      %v1266 = vpop.permute.xlu0 %1265
      %1267 = vrot.lane.b32.xlu0 %v1242, 12
      %v1268 = vpop.permute.xlu0 %1267
      %1269 = vrot.lane.b32.xlu0 %v1243, 12
      %v1270 = vpop.permute.xlu0 %1269
      %1271 = vrot.lane.b32.xlu0 %v1244, 12
      %v1272 = vpop.permute.xlu0 %1271
      %1273 = vrot.lane.b32.xlu0 %v1245, 12
      %v1274 = vpop.permute.xlu0 %1273
      %1275 = vrot.lane.b32.xlu0 %v1246, 12
      %v1276 = vpop.permute.xlu0 %1275
      %1277 = vrot.lane.b32.xlu0 %v1247, 12
      %v1278 = vpop.permute.xlu0 %1277
      %1279 = vrot.lane.b32.xlu0 %v1248, 12
      %v1280 = vpop.permute.xlu0 %1279
      %v1297 = vunpack.c.l.b16 %v490
      %v1298 = vunpack.c.l.b16 %v491
      %v1299 = vunpack.c.l.b16 %v492
      %v1300 = vunpack.c.l.b16 %v493
      %v1301 = vunpack.c.l.b16 %v494
      %v1302 = vunpack.c.l.b16 %v495
      %v1303 = vunpack.c.l.b16 %v496
      %v1304 = vunpack.c.l.b16 %v497
      %v1305 = vunpack.c.l.b16 %v498
      %v1306 = vunpack.c.l.b16 %v499
      %v1307 = vunpack.c.l.b16 %v500
      %v1308 = vunpack.c.l.b16 %v501
      %v1309 = vunpack.c.l.b16 %v502
      %v1310 = vunpack.c.l.b16 %v503
      %v1311 = vunpack.c.l.b16 %v504
      %v1312 = vunpack.c.l.b16 %v505
      %v1313 = vpack.c.b16 %v1297, %v1297
      %v1314 = vpack.c.b16 %v1298, %v1298
      %v1315 = vpack.c.b16 %v1299, %v1299
      %v1316 = vpack.c.b16 %v1300, %v1300
      %v1317 = vpack.c.b16 %v1301, %v1301
      %v1318 = vpack.c.b16 %v1302, %v1302
      %v1319 = vpack.c.b16 %v1303, %v1303
      %v1320 = vpack.c.b16 %v1304, %v1304
      %v1321 = vpack.c.b16 %v1305, %v1305
      %v1322 = vpack.c.b16 %v1306, %v1306
      %v1323 = vpack.c.b16 %v1307, %v1307
      %v1324 = vpack.c.b16 %v1308, %v1308
      %v1325 = vpack.c.b16 %v1309, %v1309
      %v1326 = vpack.c.b16 %v1310, %v1310
      %v1327 = vpack.c.b16 %v1311, %v1311
      %v1328 = vpack.c.b16 %v1312, %v1312
      %v1330 = vshrl.u32 %v1121, 16
      %v1332 = vshll.u32 %v1121, 16
      %v1334 = vrot.slane %v1332, 1
      %v1335 = vor.u32 %v1330, %v1334
      %v1337 = vshll.u32 %v1313, 16
      %v1339 = vrot.slane %v1337, 1
      %v1340 = vsel %vm832, %v1335, %v1339
      %v1342 = vshrl.u32 %v1122, 16
      %v1344 = vshll.u32 %v1122, 16
      %v1346 = vrot.slane %v1344, 1
      %v1347 = vor.u32 %v1342, %v1346
      %v1349 = vshll.u32 %v1314, 16
      %v1351 = vrot.slane %v1349, 1
      %v1352 = vsel %vm832, %v1347, %v1351
      %v1354 = vshrl.u32 %v1123, 16
      %v1356 = vshll.u32 %v1123, 16
      %v1358 = vrot.slane %v1356, 1
      %v1359 = vor.u32 %v1354, %v1358
      %v1361 = vshll.u32 %v1315, 16
      %v1363 = vrot.slane %v1361, 1
      %v1364 = vsel %vm832, %v1359, %v1363
      %v1366 = vshrl.u32 %v1124, 16
      %v1368 = vshll.u32 %v1124, 16
      %v1370 = vrot.slane %v1368, 1
      %v1371 = vor.u32 %v1366, %v1370
      %v1373 = vshll.u32 %v1316, 16
      %v1375 = vrot.slane %v1373, 1
      %v1376 = vsel %vm832, %v1371, %v1375
      %v1378 = vshrl.u32 %v1125, 16
      %v1380 = vshll.u32 %v1125, 16
      %v1382 = vrot.slane %v1380, 1
      %v1383 = vor.u32 %v1378, %v1382
      %v1385 = vshll.u32 %v1317, 16
      %v1387 = vrot.slane %v1385, 1
      %v1388 = vsel %vm832, %v1383, %v1387
      %v1390 = vshrl.u32 %v1126, 16
      %v1392 = vshll.u32 %v1126, 16
      %v1394 = vrot.slane %v1392, 1
      %v1395 = vor.u32 %v1390, %v1394
      %v1397 = vshll.u32 %v1318, 16
      %v1399 = vrot.slane %v1397, 1
      %v1400 = vsel %vm832, %v1395, %v1399
      %v1402 = vshrl.u32 %v1127, 16
      %v1404 = vshll.u32 %v1127, 16
      %v1406 = vrot.slane %v1404, 1
      %v1407 = vor.u32 %v1402, %v1406
      %v1409 = vshll.u32 %v1319, 16
      %v1411 = vrot.slane %v1409, 1
      %v1412 = vsel %vm832, %v1407, %v1411
      %v1414 = vshrl.u32 %v1128, 16
      %v1416 = vshll.u32 %v1128, 16
      %v1418 = vrot.slane %v1416, 1
      %v1419 = vor.u32 %v1414, %v1418
      %v1421 = vshll.u32 %v1320, 16
      %v1423 = vrot.slane %v1421, 1
      %v1424 = vsel %vm832, %v1419, %v1423
      %v1426 = vshrl.u32 %v1129, 16
      %v1428 = vshll.u32 %v1129, 16
      %v1430 = vrot.slane %v1428, 1
      %v1431 = vor.u32 %v1426, %v1430
      %v1433 = vshll.u32 %v1321, 16
      %v1435 = vrot.slane %v1433, 1
      %v1436 = vsel %vm832, %v1431, %v1435
      %v1438 = vshrl.u32 %v1130, 16
      %v1440 = vshll.u32 %v1130, 16
      %v1442 = vrot.slane %v1440, 1
      %v1443 = vor.u32 %v1438, %v1442
      %v1445 = vshll.u32 %v1322, 16
      %v1447 = vrot.slane %v1445, 1
      %v1448 = vsel %vm832, %v1443, %v1447
      %v1450 = vshrl.u32 %v1131, 16
      %v1452 = vshll.u32 %v1131, 16
      %v1454 = vrot.slane %v1452, 1
      %v1455 = vor.u32 %v1450, %v1454
      %v1457 = vshll.u32 %v1323, 16
      %v1459 = vrot.slane %v1457, 1
      %v1460 = vsel %vm832, %v1455, %v1459
      %v1462 = vshrl.u32 %v1132, 16
      %v1464 = vshll.u32 %v1132, 16
      %v1466 = vrot.slane %v1464, 1
      %v1467 = vor.u32 %v1462, %v1466
      %v1469 = vshll.u32 %v1324, 16
      %v1471 = vrot.slane %v1469, 1
      %v1472 = vsel %vm832, %v1467, %v1471
      %v1474 = vshrl.u32 %v1133, 16
      %v1476 = vshll.u32 %v1133, 16
      %v1478 = vrot.slane %v1476, 1
      %v1479 = vor.u32 %v1474, %v1478
      %v1481 = vshll.u32 %v1325, 16
      %v1483 = vrot.slane %v1481, 1
      %v1484 = vsel %vm832, %v1479, %v1483
      %v1486 = vshrl.u32 %v1134, 16
      %v1488 = vshll.u32 %v1134, 16
      %v1490 = vrot.slane %v1488, 1
      %v1491 = vor.u32 %v1486, %v1490
      %v1493 = vshll.u32 %v1326, 16
      %v1495 = vrot.slane %v1493, 1
      %v1496 = vsel %vm832, %v1491, %v1495
      %v1498 = vshrl.u32 %v1135, 16
      %v1500 = vshll.u32 %v1135, 16
      %v1502 = vrot.slane %v1500, 1
      %v1503 = vor.u32 %v1498, %v1502
      %v1505 = vshll.u32 %v1327, 16
      %v1507 = vrot.slane %v1505, 1
      %v1508 = vsel %vm832, %v1503, %v1507
      %v1510 = vshrl.u32 %v1136, 16
      %v1512 = vshll.u32 %v1136, 16
      %v1514 = vrot.slane %v1512, 1
      %v1515 = vor.u32 %v1510, %v1514
      %v1517 = vshll.u32 %v1328, 16
      %v1519 = vrot.slane %v1517, 1
      %v1520 = vsel %vm832, %v1515, %v1519
      %1521 = vrot.lane.b32.xlu0 %v1340, 15
      %v1522 = vpop.permute.xlu0 %1521
      %1523 = vrot.lane.b32.xlu0 %v1352, 15
      %v1524 = vpop.permute.xlu0 %1523
      %1525 = vrot.lane.b32.xlu0 %v1364, 15
      %v1526 = vpop.permute.xlu0 %1525
      %1527 = vrot.lane.b32.xlu0 %v1376, 15
      %v1528 = vpop.permute.xlu0 %1527
      %1529 = vrot.lane.b32.xlu0 %v1388, 15
      %v1530 = vpop.permute.xlu0 %1529
      %1531 = vrot.lane.b32.xlu0 %v1400, 15
      %v1532 = vpop.permute.xlu0 %1531
      %1533 = vrot.lane.b32.xlu0 %v1412, 15
      %v1534 = vpop.permute.xlu0 %1533
      %1535 = vrot.lane.b32.xlu0 %v1424, 15
      %v1536 = vpop.permute.xlu0 %1535
      %1537 = vrot.lane.b32.xlu0 %v1436, 15
      %v1538 = vpop.permute.xlu0 %1537
      %1539 = vrot.lane.b32.xlu0 %v1448, 15
      %v1540 = vpop.permute.xlu0 %1539
      %1541 = vrot.lane.b32.xlu0 %v1460, 15
      %v1542 = vpop.permute.xlu0 %1541
      %1543 = vrot.lane.b32.xlu0 %v1472, 15
      %v1544 = vpop.permute.xlu0 %1543
      %1545 = vrot.lane.b32.xlu0 %v1484, 15
      %v1546 = vpop.permute.xlu0 %1545
      %1547 = vrot.lane.b32.xlu0 %v1496, 15
      %v1548 = vpop.permute.xlu0 %1547
      %1549 = vrot.lane.b32.xlu0 %v1508, 15
      %v1550 = vpop.permute.xlu0 %1549
      %1551 = vrot.lane.b32.xlu0 %v1520, 15
      %v1552 = vpop.permute.xlu0 %1551
      %v1585 = vunpack.c.l.b16 %v510
      %v1586 = vunpack.c.l.b16 %v511
      %v1587 = vunpack.c.l.b16 %v512
      %v1588 = vunpack.c.l.b16 %v513
      %v1589 = vunpack.c.l.b16 %v514
      %v1590 = vunpack.c.l.b16 %v515
      %v1591 = vunpack.c.l.b16 %v516
      %v1592 = vunpack.c.l.b16 %v517
      %v1593 = vunpack.c.l.b16 %v518
      %v1594 = vunpack.c.l.b16 %v519
      %v1595 = vunpack.c.l.b16 %v520
      %v1596 = vunpack.c.l.b16 %v521
      %v1597 = vunpack.c.l.b16 %v522
      %v1598 = vunpack.c.l.b16 %v523
      %v1599 = vunpack.c.l.b16 %v524
      %v1600 = vunpack.c.l.b16 %v525
      %v1601 = vunpack.c.l.b16 %v526
      %v1602 = vunpack.c.l.b16 %v527
      %v1603 = vunpack.c.l.b16 %v528
      %v1604 = vunpack.c.l.b16 %v529
      %v1605 = vunpack.c.l.b16 %v530
      %v1606 = vunpack.c.l.b16 %v531
      %v1607 = vunpack.c.l.b16 %v532
      %v1608 = vunpack.c.l.b16 %v533
      %v1609 = vunpack.c.l.b16 %v534
      %v1610 = vunpack.c.l.b16 %v535
      %v1611 = vunpack.c.l.b16 %v536
      %v1612 = vunpack.c.l.b16 %v537
      %v1613 = vunpack.c.l.b16 %v538
      %v1614 = vunpack.c.l.b16 %v539
      %v1615 = vunpack.c.l.b16 %v540
      %v1616 = vunpack.c.l.b16 %v541
      %v1617 = vpack.c.b16 %v1586, %v1585
      %v1618 = vpack.c.b16 %v1588, %v1587
      %v1619 = vpack.c.b16 %v1590, %v1589
      %v1620 = vpack.c.b16 %v1592, %v1591
      %v1621 = vpack.c.b16 %v1594, %v1593
      %v1622 = vpack.c.b16 %v1596, %v1595
      %v1623 = vpack.c.b16 %v1598, %v1597
      %v1624 = vpack.c.b16 %v1600, %v1599
      %v1625 = vpack.c.b16 %v1602, %v1601
      %v1626 = vpack.c.b16 %v1604, %v1603
      %v1627 = vpack.c.b16 %v1606, %v1605
      %v1628 = vpack.c.b16 %v1608, %v1607
      %v1629 = vpack.c.b16 %v1610, %v1609
      %v1630 = vpack.c.b16 %v1612, %v1611
      %v1631 = vpack.c.b16 %v1614, %v1613
      %v1632 = vpack.c.b16 %v1616, %v1615
      %1633 = vrot.lane.b32.xlu0 %v1617, 18
      %v1634 = vpop.permute.xlu0 %1633
      %1635 = vrot.lane.b32.xlu0 %v1618, 18
      %v1636 = vpop.permute.xlu0 %1635
      %1637 = vrot.lane.b32.xlu0 %v1619, 18
      %v1638 = vpop.permute.xlu0 %1637
      %1639 = vrot.lane.b32.xlu0 %v1620, 18
      %v1640 = vpop.permute.xlu0 %1639
      %1641 = vrot.lane.b32.xlu0 %v1621, 18
      %v1642 = vpop.permute.xlu0 %1641
      %1643 = vrot.lane.b32.xlu0 %v1622, 18
      %v1644 = vpop.permute.xlu0 %1643
      %1645 = vrot.lane.b32.xlu0 %v1623, 18
      %v1646 = vpop.permute.xlu0 %1645
      %1647 = vrot.lane.b32.xlu0 %v1624, 18
      %v1648 = vpop.permute.xlu0 %1647
      %1649 = vrot.lane.b32.xlu0 %v1625, 18
      %v1650 = vpop.permute.xlu0 %1649
      %1651 = vrot.lane.b32.xlu0 %v1626, 18
      %v1652 = vpop.permute.xlu0 %1651
      %1653 = vrot.lane.b32.xlu0 %v1627, 18
      %v1654 = vpop.permute.xlu0 %1653
      %1655 = vrot.lane.b32.xlu0 %v1628, 18
      %v1656 = vpop.permute.xlu0 %1655
      %1657 = vrot.lane.b32.xlu0 %v1629, 18
      %v1658 = vpop.permute.xlu0 %1657
      %1659 = vrot.lane.b32.xlu0 %v1630, 18
      %v1660 = vpop.permute.xlu0 %1659
      %1661 = vrot.lane.b32.xlu0 %v1631, 18
      %v1662 = vpop.permute.xlu0 %1661
      %1663 = vrot.lane.b32.xlu0 %v1632, 18
      %v1664 = vpop.permute.xlu0 %1663
      %v1697 = vunpack.c.l.b16 %v544
      %v1698 = vunpack.c.l.b16 %v545
      %v1699 = vunpack.c.l.b16 %v546
      %v1700 = vunpack.c.l.b16 %v547
      %v1701 = vunpack.c.l.b16 %v548
      %v1702 = vunpack.c.l.b16 %v549
      %v1703 = vunpack.c.l.b16 %v550
      %v1704 = vunpack.c.l.b16 %v551
      %v1705 = vunpack.c.l.b16 %v552
      %v1706 = vunpack.c.l.b16 %v553
      %v1707 = vunpack.c.l.b16 %v554
      %v1708 = vunpack.c.l.b16 %v555
      %v1709 = vunpack.c.l.b16 %v556
      %v1710 = vunpack.c.l.b16 %v557
      %v1711 = vunpack.c.l.b16 %v558
      %v1712 = vunpack.c.l.b16 %v559
      %v1713 = vunpack.c.l.b16 %v560
      %v1714 = vunpack.c.l.b16 %v561
      %v1715 = vunpack.c.l.b16 %v562
      %v1716 = vunpack.c.l.b16 %v563
      %v1717 = vunpack.c.l.b16 %v564
      %v1718 = vunpack.c.l.b16 %v565
      %v1719 = vunpack.c.l.b16 %v566
      %v1720 = vunpack.c.l.b16 %v567
      %v1721 = vunpack.c.l.b16 %v568
      %v1722 = vunpack.c.l.b16 %v569
      %v1723 = vunpack.c.l.b16 %v570
      %v1724 = vunpack.c.l.b16 %v571
      %v1725 = vunpack.c.l.b16 %v572
      %v1726 = vunpack.c.l.b16 %v573
      %v1727 = vunpack.c.l.b16 %v574
      %v1728 = vunpack.c.l.b16 %v575
      %v1729 = vpack.c.b16 %v1698, %v1697
      %v1730 = vpack.c.b16 %v1700, %v1699
      %v1731 = vpack.c.b16 %v1702, %v1701
      %v1732 = vpack.c.b16 %v1704, %v1703
      %v1733 = vpack.c.b16 %v1706, %v1705
      %v1734 = vpack.c.b16 %v1708, %v1707
      %v1735 = vpack.c.b16 %v1710, %v1709
      %v1736 = vpack.c.b16 %v1712, %v1711
      %v1737 = vpack.c.b16 %v1714, %v1713
      %v1738 = vpack.c.b16 %v1716, %v1715
      %v1739 = vpack.c.b16 %v1718, %v1717
      %v1740 = vpack.c.b16 %v1720, %v1719
      %v1741 = vpack.c.b16 %v1722, %v1721
      %v1742 = vpack.c.b16 %v1724, %v1723
      %v1743 = vpack.c.b16 %v1726, %v1725
      %v1744 = vpack.c.b16 %v1728, %v1727
      %1745 = vrot.lane.b32.xlu0 %v1729, 21
      %v1746 = vpop.permute.xlu0 %1745
      %1747 = vrot.lane.b32.xlu0 %v1730, 21
      %v1748 = vpop.permute.xlu0 %1747
      %1749 = vrot.lane.b32.xlu0 %v1731, 21
      %v1750 = vpop.permute.xlu0 %1749
      %1751 = vrot.lane.b32.xlu0 %v1732, 21
      %v1752 = vpop.permute.xlu0 %1751
      %1753 = vrot.lane.b32.xlu0 %v1733, 21
      %v1754 = vpop.permute.xlu0 %1753
      %1755 = vrot.lane.b32.xlu0 %v1734, 21
      %v1756 = vpop.permute.xlu0 %1755
      %1757 = vrot.lane.b32.xlu0 %v1735, 21
      %v1758 = vpop.permute.xlu0 %1757
      %1759 = vrot.lane.b32.xlu0 %v1736, 21
      %v1760 = vpop.permute.xlu0 %1759
      %1761 = vrot.lane.b32.xlu0 %v1737, 21
      %v1762 = vpop.permute.xlu0 %1761
      %1763 = vrot.lane.b32.xlu0 %v1738, 21
      %v1764 = vpop.permute.xlu0 %1763
      %1765 = vrot.lane.b32.xlu0 %v1739, 21
      %v1766 = vpop.permute.xlu0 %1765
      %1767 = vrot.lane.b32.xlu0 %v1740, 21
      %v1768 = vpop.permute.xlu0 %1767
      %1769 = vrot.lane.b32.xlu0 %v1741, 21
      %v1770 = vpop.permute.xlu0 %1769
      %1771 = vrot.lane.b32.xlu0 %v1742, 21
      %v1772 = vpop.permute.xlu0 %1771
      %1773 = vrot.lane.b32.xlu0 %v1743, 21
      %v1774 = vpop.permute.xlu0 %1773
      %1775 = vrot.lane.b32.xlu0 %v1744, 21
      %v1776 = vpop.permute.xlu0 %1775
      %v1793 = vunpack.c.l.b16 %v576
      %v1794 = vunpack.c.l.b16 %v577
      %v1795 = vunpack.c.l.b16 %v578
      %v1796 = vunpack.c.l.b16 %v579
      %v1797 = vunpack.c.l.b16 %v580
      %v1798 = vunpack.c.l.b16 %v581
      %v1799 = vunpack.c.l.b16 %v582
      %v1800 = vunpack.c.l.b16 %v583
      %v1801 = vunpack.c.l.b16 %v584
      %v1802 = vunpack.c.l.b16 %v585
      %v1803 = vunpack.c.l.b16 %v586
      %v1804 = vunpack.c.l.b16 %v587
      %v1805 = vunpack.c.l.b16 %v588
      %v1806 = vunpack.c.l.b16 %v589
      %v1807 = vunpack.c.l.b16 %v590
      %v1808 = vunpack.c.l.b16 %v591
      %v1809 = vpack.c.b16 %v1793, %v1793
      %v1810 = vpack.c.b16 %v1794, %v1794
      %v1811 = vpack.c.b16 %v1795, %v1795
      %v1812 = vpack.c.b16 %v1796, %v1796
      %v1813 = vpack.c.b16 %v1797, %v1797
      %v1814 = vpack.c.b16 %v1798, %v1798
      %v1815 = vpack.c.b16 %v1799, %v1799
      %v1816 = vpack.c.b16 %v1800, %v1800
      %v1817 = vpack.c.b16 %v1801, %v1801
      %v1818 = vpack.c.b16 %v1802, %v1802
      %v1819 = vpack.c.b16 %v1803, %v1803
      %v1820 = vpack.c.b16 %v1804, %v1804
      %v1821 = vpack.c.b16 %v1805, %v1805
      %v1822 = vpack.c.b16 %v1806, %v1806
      %v1823 = vpack.c.b16 %v1807, %v1807
      %v1824 = vpack.c.b16 %v1808, %v1808
      %v1826 = vshrl.u32 %v1617, 16
      %v1828 = vshll.u32 %v1617, 16
      %v1830 = vrot.slane %v1828, 1
      %v1831 = vor.u32 %v1826, %v1830
      %v1833 = vshll.u32 %v1809, 16
      %v1835 = vrot.slane %v1833, 1
      %v1836 = vsel %vm832, %v1831, %v1835
      %v1838 = vshrl.u32 %v1618, 16
      %v1840 = vshll.u32 %v1618, 16
      %v1842 = vrot.slane %v1840, 1
      %v1843 = vor.u32 %v1838, %v1842
      %v1845 = vshll.u32 %v1810, 16
      %v1847 = vrot.slane %v1845, 1
      %v1848 = vsel %vm832, %v1843, %v1847
      %v1850 = vshrl.u32 %v1619, 16
      %v1852 = vshll.u32 %v1619, 16
      %v1854 = vrot.slane %v1852, 1
      %v1855 = vor.u32 %v1850, %v1854
      %v1857 = vshll.u32 %v1811, 16
      %v1859 = vrot.slane %v1857, 1
      %v1860 = vsel %vm832, %v1855, %v1859
      %v1862 = vshrl.u32 %v1620, 16
      %v1864 = vshll.u32 %v1620, 16
      %v1866 = vrot.slane %v1864, 1
      %v1867 = vor.u32 %v1862, %v1866
      %v1869 = vshll.u32 %v1812, 16
      %v1871 = vrot.slane %v1869, 1
      %v1872 = vsel %vm832, %v1867, %v1871
      %v1874 = vshrl.u32 %v1621, 16
      %v1876 = vshll.u32 %v1621, 16
      %v1878 = vrot.slane %v1876, 1
      %v1879 = vor.u32 %v1874, %v1878
      %v1881 = vshll.u32 %v1813, 16
      %v1883 = vrot.slane %v1881, 1
      %v1884 = vsel %vm832, %v1879, %v1883
      %v1886 = vshrl.u32 %v1622, 16
      %v1888 = vshll.u32 %v1622, 16
      %v1890 = vrot.slane %v1888, 1
      %v1891 = vor.u32 %v1886, %v1890
      %v1893 = vshll.u32 %v1814, 16
      %v1895 = vrot.slane %v1893, 1
      %v1896 = vsel %vm832, %v1891, %v1895
      %v1898 = vshrl.u32 %v1623, 16
      %v1900 = vshll.u32 %v1623, 16
      %v1902 = vrot.slane %v1900, 1
      %v1903 = vor.u32 %v1898, %v1902
      %v1905 = vshll.u32 %v1815, 16
      %v1907 = vrot.slane %v1905, 1
      %v1908 = vsel %vm832, %v1903, %v1907
      %v1910 = vshrl.u32 %v1624, 16
      %v1912 = vshll.u32 %v1624, 16
      %v1914 = vrot.slane %v1912, 1
      %v1915 = vor.u32 %v1910, %v1914
      %v1917 = vshll.u32 %v1816, 16
      %v1919 = vrot.slane %v1917, 1
      %v1920 = vsel %vm832, %v1915, %v1919
      %v1922 = vshrl.u32 %v1625, 16
      %v1924 = vshll.u32 %v1625, 16
      %v1926 = vrot.slane %v1924, 1
      %v1927 = vor.u32 %v1922, %v1926
      %v1929 = vshll.u32 %v1817, 16
      %v1931 = vrot.slane %v1929, 1
      %v1932 = vsel %vm832, %v1927, %v1931
      %v1934 = vshrl.u32 %v1626, 16
      %v1936 = vshll.u32 %v1626, 16
      %v1938 = vrot.slane %v1936, 1
      %v1939 = vor.u32 %v1934, %v1938
      %v1941 = vshll.u32 %v1818, 16
      %v1943 = vrot.slane %v1941, 1
      %v1944 = vsel %vm832, %v1939, %v1943
      %v1946 = vshrl.u32 %v1627, 16
      %v1948 = vshll.u32 %v1627, 16
      %v1950 = vrot.slane %v1948, 1
      %v1951 = vor.u32 %v1946, %v1950
      %v1953 = vshll.u32 %v1819, 16
      %v1955 = vrot.slane %v1953, 1
      %v1956 = vsel %vm832, %v1951, %v1955
      %v1958 = vshrl.u32 %v1628, 16
      %v1960 = vshll.u32 %v1628, 16
      %v1962 = vrot.slane %v1960, 1
      %v1963 = vor.u32 %v1958, %v1962
      %v1965 = vshll.u32 %v1820, 16
      %v1967 = vrot.slane %v1965, 1
      %v1968 = vsel %vm832, %v1963, %v1967
      %v1970 = vshrl.u32 %v1629, 16
      %v1972 = vshll.u32 %v1629, 16
      %v1974 = vrot.slane %v1972, 1
      %v1975 = vor.u32 %v1970, %v1974
      %v1977 = vshll.u32 %v1821, 16
      %v1979 = vrot.slane %v1977, 1
      %v1980 = vsel %vm832, %v1975, %v1979
      %v1982 = vshrl.u32 %v1630, 16
      %v1984 = vshll.u32 %v1630, 16
      %v1986 = vrot.slane %v1984, 1
      %v1987 = vor.u32 %v1982, %v1986
      %v1989 = vshll.u32 %v1822, 16
      %v1991 = vrot.slane %v1989, 1
      %v1992 = vsel %vm832, %v1987, %v1991
      %v1994 = vshrl.u32 %v1631, 16
      %v1996 = vshll.u32 %v1631, 16
      %v1998 = vrot.slane %v1996, 1
      %v1999 = vor.u32 %v1994, %v1998
      %v2001 = vshll.u32 %v1823, 16
      %v2003 = vrot.slane %v2001, 1
      %v2004 = vsel %vm832, %v1999, %v2003
      %v2006 = vshrl.u32 %v1632, 16
      %v2008 = vshll.u32 %v1632, 16
      %v2010 = vrot.slane %v2008, 1
      %v2011 = vor.u32 %v2006, %v2010
      %v2013 = vshll.u32 %v1824, 16
      %v2015 = vrot.slane %v2013, 1
      %v2016 = vsel %vm832, %v2011, %v2015
      %2017 = vrot.lane.b32.xlu0 %v1836, 24
      %v2018 = vpop.permute.xlu0 %2017
      %2019 = vrot.lane.b32.xlu0 %v1848, 24
      %v2020 = vpop.permute.xlu0 %2019
      %2021 = vrot.lane.b32.xlu0 %v1860, 24
      %v2022 = vpop.permute.xlu0 %2021
      %2023 = vrot.lane.b32.xlu0 %v1872, 24
      %v2024 = vpop.permute.xlu0 %2023
      %2025 = vrot.lane.b32.xlu0 %v1884, 24
      %v2026 = vpop.permute.xlu0 %2025
      %2027 = vrot.lane.b32.xlu0 %v1896, 24
      %v2028 = vpop.permute.xlu0 %2027
      %2029 = vrot.lane.b32.xlu0 %v1908, 24
      %v2030 = vpop.permute.xlu0 %2029
      %2031 = vrot.lane.b32.xlu0 %v1920, 24
      %v2032 = vpop.permute.xlu0 %2031
      %2033 = vrot.lane.b32.xlu0 %v1932, 24
      %v2034 = vpop.permute.xlu0 %2033
      %2035 = vrot.lane.b32.xlu0 %v1944, 24
      %v2036 = vpop.permute.xlu0 %2035
      %2037 = vrot.lane.b32.xlu0 %v1956, 24
      %v2038 = vpop.permute.xlu0 %2037
      %2039 = vrot.lane.b32.xlu0 %v1968, 24
      %v2040 = vpop.permute.xlu0 %2039
      %2041 = vrot.lane.b32.xlu0 %v1980, 24
      %v2042 = vpop.permute.xlu0 %2041
      %2043 = vrot.lane.b32.xlu0 %v1992, 24
      %v2044 = vpop.permute.xlu0 %2043
      %2045 = vrot.lane.b32.xlu0 %v2004, 24
      %v2046 = vpop.permute.xlu0 %2045
      %2047 = vrot.lane.b32.xlu0 %v2016, 24
      %v2048 = vpop.permute.xlu0 %2047
      %vm2049 = vcmask 23552
      %v2051 = vsel %vm2049, %v656, %v753
      %v2053 = vsel %vm2049, %v657, %v755
      %v2055 = vsel %vm2049, %v658, %v757
      %v2057 = vsel %vm2049, %v659, %v759
      %v2059 = vsel %vm2049, %v660, %v761
      %v2061 = vsel %vm2049, %v661, %v763
      %v2063 = vsel %vm2049, %v662, %v765
      %v2065 = vsel %vm2049, %v663, %v767
      %v2067 = vsel %vm2049, %v664, %v769
      %v2069 = vsel %vm2049, %v665, %v771
      %v2071 = vsel %vm2049, %v666, %v773
      %v2073 = vsel %vm2049, %v667, %v775
      %v2075 = vsel %vm2049, %v668, %v777
      %v2077 = vsel %vm2049, %v669, %v779
      %v2079 = vsel %vm2049, %v670, %v781
      %v2081 = vsel %vm2049, %v671, %v783
      %vm2082 = vcmask 48128
      %v2084 = vsel %vm2082, %v2051, %v1026
      %v2086 = vsel %vm2082, %v2053, %v1028
      %v2088 = vsel %vm2082, %v2055, %v1030
      %v2090 = vsel %vm2082, %v2057, %v1032
      %v2092 = vsel %vm2082, %v2059, %v1034
      %v2094 = vsel %vm2082, %v2061, %v1036
      %v2096 = vsel %vm2082, %v2063, %v1038
      %v2098 = vsel %vm2082, %v2065, %v1040
      %v2100 = vsel %vm2082, %v2067, %v1042
      %v2102 = vsel %vm2082, %v2069, %v1044
      %v2104 = vsel %vm2082, %v2071, %v1046
      %v2106 = vsel %vm2082, %v2073, %v1048
      %v2108 = vsel %vm2082, %v2075, %v1050
      %v2110 = vsel %vm2082, %v2077, %v1052
      %v2112 = vsel %vm2082, %v2079, %v1054
      %v2114 = vsel %vm2082, %v2081, %v1056
      %vm2115 = vcmask 72704
      %v2117 = vsel %vm2115, %v2084, %v1138
      %v2119 = vsel %vm2115, %v2086, %v1140
      %v2121 = vsel %vm2115, %v2088, %v1142
      %v2123 = vsel %vm2115, %v2090, %v1144
      %v2125 = vsel %vm2115, %v2092, %v1146
      %v2127 = vsel %vm2115, %v2094, %v1148
      %v2129 = vsel %vm2115, %v2096, %v1150
      %v2131 = vsel %vm2115, %v2098, %v1152
      %v2133 = vsel %vm2115, %v2100, %v1154
      %v2135 = vsel %vm2115, %v2102, %v1156
      %v2137 = vsel %vm2115, %v2104, %v1158
      %v2139 = vsel %vm2115, %v2106, %v1160
      %v2141 = vsel %vm2115, %v2108, %v1162
      %v2143 = vsel %vm2115, %v2110, %v1164
      %v2145 = vsel %vm2115, %v2112, %v1166
      %v2147 = vsel %vm2115, %v2114, %v1168
      %vm2148 = vcmask 97280
      %v2150 = vsel %vm2148, %v2117, %v1250
      %v2152 = vsel %vm2148, %v2119, %v1252
      %v2154 = vsel %vm2148, %v2121, %v1254
      %v2156 = vsel %vm2148, %v2123, %v1256
      %v2158 = vsel %vm2148, %v2125, %v1258
      %v2160 = vsel %vm2148, %v2127, %v1260
      %v2162 = vsel %vm2148, %v2129, %v1262
      %v2164 = vsel %vm2148, %v2131, %v1264
      %v2166 = vsel %vm2148, %v2133, %v1266
      %v2168 = vsel %vm2148, %v2135, %v1268
      %v2170 = vsel %vm2148, %v2137, %v1270
      %v2172 = vsel %vm2148, %v2139, %v1272
      %v2174 = vsel %vm2148, %v2141, %v1274
      %v2176 = vsel %vm2148, %v2143, %v1276
      %v2178 = vsel %vm2148, %v2145, %v1278
      %v2180 = vsel %vm2148, %v2147, %v1280
      %vm2181 = vcmask 121856
      %v2183 = vsel %vm2181, %v2150, %v1522
      %v2185 = vsel %vm2181, %v2152, %v1524
      %v2187 = vsel %vm2181, %v2154, %v1526
      %v2189 = vsel %vm2181, %v2156, %v1528
      %v2191 = vsel %vm2181, %v2158, %v1530
      %v2193 = vsel %vm2181, %v2160, %v1532
      %v2195 = vsel %vm2181, %v2162, %v1534
      %v2197 = vsel %vm2181, %v2164, %v1536
      %v2199 = vsel %vm2181, %v2166, %v1538
      %v2201 = vsel %vm2181, %v2168, %v1540
      %v2203 = vsel %vm2181, %v2170, %v1542
      %v2205 = vsel %vm2181, %v2172, %v1544
      %v2207 = vsel %vm2181, %v2174, %v1546
      %v2209 = vsel %vm2181, %v2176, %v1548
      %v2211 = vsel %vm2181, %v2178, %v1550
      %v2213 = vsel %vm2181, %v2180, %v1552
      %vm2214 = vcmask 146432
      %v2216 = vsel %vm2214, %v2183, %v1634
      %v2218 = vsel %vm2214, %v2185, %v1636
      %v2220 = vsel %vm2214, %v2187, %v1638
      %v2222 = vsel %vm2214, %v2189, %v1640
      %v2224 = vsel %vm2214, %v2191, %v1642
      %v2226 = vsel %vm2214, %v2193, %v1644
      %v2228 = vsel %vm2214, %v2195, %v1646
      %v2230 = vsel %vm2214, %v2197, %v1648
      %v2232 = vsel %vm2214, %v2199, %v1650
      %v2234 = vsel %vm2214, %v2201, %v1652
      %v2236 = vsel %vm2214, %v2203, %v1654
      %v2238 = vsel %vm2214, %v2205, %v1656
      %v2240 = vsel %vm2214, %v2207, %v1658
      %v2242 = vsel %vm2214, %v2209, %v1660
      %v2244 = vsel %vm2214, %v2211, %v1662
      %v2246 = vsel %vm2214, %v2213, %v1664
      %vm2247 = vcmask 171008
      %v2249 = vsel %vm2247, %v2216, %v1746
      %v2251 = vsel %vm2247, %v2218, %v1748
      %v2253 = vsel %vm2247, %v2220, %v1750
      %v2255 = vsel %vm2247, %v2222, %v1752
      %v2257 = vsel %vm2247, %v2224, %v1754
      %v2259 = vsel %vm2247, %v2226, %v1756
      %v2261 = vsel %vm2247, %v2228, %v1758
      %v2263 = vsel %vm2247, %v2230, %v1760
      %v2265 = vsel %vm2247, %v2232, %v1762
      %v2267 = vsel %vm2247, %v2234, %v1764
      %v2269 = vsel %vm2247, %v2236, %v1766
      %v2271 = vsel %vm2247, %v2238, %v1768
      %v2273 = vsel %vm2247, %v2240, %v1770
      %v2275 = vsel %vm2247, %v2242, %v1772
      %v2277 = vsel %vm2247, %v2244, %v1774
      %v2279 = vsel %vm2247, %v2246, %v1776
      %vm2280 = vcmask 195584
      %v2282 = vsel %vm2280, %v2249, %v2018
      %v2284 = vsel %vm2280, %v2251, %v2020
      %v2286 = vsel %vm2280, %v2253, %v2022
      %v2288 = vsel %vm2280, %v2255, %v2024
      %v2290 = vsel %vm2280, %v2257, %v2026
      %v2292 = vsel %vm2280, %v2259, %v2028
      %v2294 = vsel %vm2280, %v2261, %v2030
      %v2296 = vsel %vm2280, %v2263, %v2032
      %v2298 = vsel %vm2280, %v2265, %v2034
      %v2300 = vsel %vm2280, %v2267, %v2036
      %v2302 = vsel %vm2280, %v2269, %v2038
      %v2304 = vsel %vm2280, %v2271, %v2040
      %v2306 = vsel %vm2280, %v2273, %v2042
      %v2308 = vsel %vm2280, %v2275, %v2044
      %v2310 = vsel %vm2280, %v2277, %v2046
      %v2312 = vsel %vm2280, %v2279, %v2048
      %v2313 = vld [vmem:[%s4] sm:$0xf]
      %v2314 = vld [vmem:[%s4 + $0x4] sm:$0xf]
      %v2315 = vld [vmem:[%s4 + $0x8] sm:$0xf]
      %v2316 = vld [vmem:[%s4 + $0xc] sm:$0x3]
      %v2317 = vld [vmem:[%s5] sm:$0x1]
      %v2319 = vperm.slane %v2317, 0
      %v2325 = vunpack.c.l.b16 %v2313
      %v2326 = vunpack.c.l.b16 %v2314
      %v2327 = vunpack.c.l.b16 %v2315
      %v2328 = vunpack.c.l.b16 %v2316
      %v2329 = vpack.c.b16 %v2326, %v2325
      %v2330 = vpack.c.b16 %v2328, %v2327
      %vm2332 = vcmask 220160
      %v2333 = vsel %vm2332, %v2282, 0
      %v2335 = vsel %vm2332, %v2284, 0
      %v2337 = vsel %vm2332, %v2286, 0
      %v2339 = vsel %vm2332, %v2288, 0
      %v2341 = vsel %vm2332, %v2290, 0
      %v2343 = vsel %vm2332, %v2292, 0
      %v2345 = vsel %vm2332, %v2294, 0
      %v2347 = vsel %vm2332, %v2296, 0
      %v2349 = vsel %vm2332, %v2298, 0
      %v2351 = vsel %vm2332, %v2300, 0
      %v2353 = vsel %vm2332, %v2302, 0
      %v2355 = vsel %vm2332, %v2304, 0
      %v2357 = vsel %vm2332, %v2306, 0
      %v2359 = vsel %vm2332, %v2308, 0
      %v2361 = vsel %vm2332, %v2310, 0
      %v2363 = vsel %vm2332, %v2312, 0
      %vm2365 = vcmask 1044480
      %vm2366 = vcmask 1045504
      %v2367 = vsel %vm2365, 4294967295, 65535
      %v2368 = vsel %vm2366, %v2367, 0
      %v2370 = vand.u32 %v2330, %v2368
      %2372 = vmatpush.bf16.msra.mxu0 0
      %2373 = vmatpush.bf16.msra.mxu0 0
      %2374 = vmatpush.bf16.msra.mxu0 0
      %2375 = vmatpush.bf16.msra.mxu0 0
      %2376 = vmatpush.bf16.msra.mxu0 0
      %2377 = vmatpush.bf16.msra.mxu0 0
      %2378 = vmatpush.bf16.msra.mxu0 %v2370
      %2379 = vmatpush.bf16.msra.mxu0 %v2329
      %2380 = vmatmul.bf16.gmra.mxu0 %v2333
      %v2381 = vpop.f32.mrf.mxu0
      %v2382 = vadd.f32 %v2319, %v2381
      %v2383 = vpop.f32.mrf.mxu0
      %v2384 = vadd.f32 %v2319, %v2383
      %2385 = vmatmul.bf16.gmra.mxu0 %v2335
      %v2386 = vpop.f32.mrf.mxu0
      %v2387 = vadd.f32 %v2319, %v2386
      %v2388 = vpop.f32.mrf.mxu0
      %v2389 = vadd.f32 %v2319, %v2388
      %2390 = vmatmul.bf16.gmra.mxu0 %v2337
      %v2391 = vpop.f32.mrf.mxu0
      %v2392 = vadd.f32 %v2319, %v2391
      %v2393 = vpop.f32.mrf.mxu0
      %v2394 = vadd.f32 %v2319, %v2393
      %2395 = vmatmul.bf16.gmra.mxu0 %v2339
      %v2396 = vpop.f32.mrf.mxu0
      %v2397 = vadd.f32 %v2319, %v2396
      %v2398 = vpop.f32.mrf.mxu0
      %v2399 = vadd.f32 %v2319, %v2398
      %2400 = vmatmul.bf16.gmra.mxu0 %v2341
      %v2401 = vpop.f32.mrf.mxu0
      %v2402 = vadd.f32 %v2319, %v2401
      %v2403 = vpop.f32.mrf.mxu0
      %v2404 = vadd.f32 %v2319, %v2403
      %2405 = vmatmul.bf16.gmra.mxu0 %v2343
      %v2406 = vpop.f32.mrf.mxu0
      %v2407 = vadd.f32 %v2319, %v2406
      %v2408 = vpop.f32.mrf.mxu0
      %v2409 = vadd.f32 %v2319, %v2408
      %2410 = vmatmul.bf16.gmra.mxu0 %v2345
      %v2411 = vpop.f32.mrf.mxu0
      %v2412 = vadd.f32 %v2319, %v2411
      %v2413 = vpop.f32.mrf.mxu0
      %v2414 = vadd.f32 %v2319, %v2413
      %2415 = vmatmul.bf16.gmra.mxu0 %v2347
      %v2416 = vpop.f32.mrf.mxu0
      %v2417 = vadd.f32 %v2319, %v2416
      %v2418 = vpop.f32.mrf.mxu0
      %v2419 = vadd.f32 %v2319, %v2418
      %2420 = vmatmul.bf16.gmra.mxu0 %v2349
      %v2421 = vpop.f32.mrf.mxu0
      %v2422 = vadd.f32 %v2319, %v2421
      %v2423 = vpop.f32.mrf.mxu0
      %v2424 = vadd.f32 %v2319, %v2423
      %2425 = vmatmul.bf16.gmra.mxu0 %v2351
      %v2426 = vpop.f32.mrf.mxu0
      %v2427 = vadd.f32 %v2319, %v2426
      %v2428 = vpop.f32.mrf.mxu0
      %v2429 = vadd.f32 %v2319, %v2428
      %2430 = vmatmul.bf16.gmra.mxu0 %v2353
      %v2431 = vpop.f32.mrf.mxu0
      %v2432 = vadd.f32 %v2319, %v2431
      %v2433 = vpop.f32.mrf.mxu0
      %v2434 = vadd.f32 %v2319, %v2433
      %2435 = vmatmul.bf16.gmra.mxu0 %v2355
      %v2436 = vpop.f32.mrf.mxu0
      %v2437 = vadd.f32 %v2319, %v2436
      %v2438 = vpop.f32.mrf.mxu0
      %v2439 = vadd.f32 %v2319, %v2438
      %2440 = vmatmul.bf16.gmra.mxu0 %v2357
      %v2441 = vpop.f32.mrf.mxu0
      %v2442 = vadd.f32 %v2319, %v2441
      %v2443 = vpop.f32.mrf.mxu0
      %v2444 = vadd.f32 %v2319, %v2443
      %2445 = vmatmul.bf16.gmra.mxu0 %v2359
      %v2446 = vpop.f32.mrf.mxu0
      %v2447 = vadd.f32 %v2319, %v2446
      %v2448 = vpop.f32.mrf.mxu0
      %v2449 = vadd.f32 %v2319, %v2448
      %2450 = vmatmul.bf16.gmra.mxu0 %v2361
      %v2451 = vpop.f32.mrf.mxu0
      %v2452 = vadd.f32 %v2319, %v2451
      %v2453 = vpop.f32.mrf.mxu0
      %v2454 = vadd.f32 %v2319, %v2453
      %2455 = vmatmul.bf16.gmra.mxu0 %v2363
      %v2456 = vpop.f32.mrf.mxu0
      %v2457 = vadd.f32 %v2319, %v2456
      %v2458 = vpop.f32.mrf.mxu0
      %v2459 = vadd.f32 %v2319, %v2458
      %2460 = vdwg.mxu0
      %v2461 = vmul.f32 %v2382, 0.5
      %v2462 = vmul.f32 %v2384, 0.5
      %v2463 = vmul.f32 %v2387, 0.5
      %v2464 = vmul.f32 %v2389, 0.5
      %v2465 = vmul.f32 %v2392, 0.5
      %v2466 = vmul.f32 %v2394, 0.5
      %v2467 = vmul.f32 %v2397, 0.5
      %v2468 = vmul.f32 %v2399, 0.5
      %v2469 = vmul.f32 %v2402, 0.5
      %v2470 = vmul.f32 %v2404, 0.5
      %v2471 = vmul.f32 %v2407, 0.5
      %v2472 = vmul.f32 %v2409, 0.5
      %v2473 = vmul.f32 %v2412, 0.5
      %v2474 = vmul.f32 %v2414, 0.5
      %v2475 = vmul.f32 %v2417, 0.5
      %v2476 = vmul.f32 %v2419, 0.5
      %v2477 = vmul.f32 %v2422, 0.5
      %v2478 = vmul.f32 %v2424, 0.5
      %v2479 = vmul.f32 %v2427, 0.5
      %v2480 = vmul.f32 %v2429, 0.5
      %v2481 = vmul.f32 %v2432, 0.5
      %v2482 = vmul.f32 %v2434, 0.5
      %v2483 = vmul.f32 %v2437, 0.5
      %v2484 = vmul.f32 %v2439, 0.5
      %v2485 = vmul.f32 %v2442, 0.5
      %v2486 = vmul.f32 %v2444, 0.5
      %v2487 = vmul.f32 %v2447, 0.5
      %v2488 = vmul.f32 %v2449, 0.5
      %v2489 = vmul.f32 %v2452, 0.5
      %v2490 = vmul.f32 %v2454, 0.5
      %v2491 = vmul.f32 %v2457, 0.5
      %v2492 = vmul.f32 %v2459, 0.5
      %v2493 = vmul.f32 %v2382, 0.044715
      %v2494 = vmul.f32 %v2384, 0.044715
      %v2495 = vmul.f32 %v2387, 0.044715
      %v2496 = vmul.f32 %v2389, 0.044715
      %v2497 = vmul.f32 %v2392, 0.044715
      %v2498 = vmul.f32 %v2394, 0.044715
      %v2499 = vmul.f32 %v2397, 0.044715
      %v2500 = vmul.f32 %v2399, 0.044715
      %v2501 = vmul.f32 %v2402, 0.044715
      %v2502 = vmul.f32 %v2404, 0.044715
      %v2503 = vmul.f32 %v2407, 0.044715
      %v2504 = vmul.f32 %v2409, 0.044715
      %v2505 = vmul.f32 %v2412, 0.044715
      %v2506 = vmul.f32 %v2414, 0.044715
      %v2507 = vmul.f32 %v2417, 0.044715
      %v2508 = vmul.f32 %v2419, 0.044715
      %v2509 = vmul.f32 %v2422, 0.044715
      %v2510 = vmul.f32 %v2424, 0.044715
      %v2511 = vmul.f32 %v2427, 0.044715
      %v2512 = vmul.f32 %v2429, 0.044715
      %v2513 = vmul.f32 %v2432, 0.044715
      %v2514 = vmul.f32 %v2434, 0.044715
      %v2515 = vmul.f32 %v2437, 0.044715
      %v2516 = vmul.f32 %v2439, 0.044715
      %v2517 = vmul.f32 %v2442, 0.044715
      %v2518 = vmul.f32 %v2444, 0.044715
      %v2519 = vmul.f32 %v2447, 0.044715
      %v2520 = vmul.f32 %v2449, 0.044715
      %v2521 = vmul.f32 %v2452, 0.044715
      %v2522 = vmul.f32 %v2454, 0.044715
      %v2523 = vmul.f32 %v2457, 0.044715
      %v2524 = vmul.f32 %v2459, 0.044715
      %v2525 = vmul.f32 %v2493, %v2382
      %v2526 = vmul.f32 %v2494, %v2384
      %v2527 = vmul.f32 %v2495, %v2387
      %v2528 = vmul.f32 %v2496, %v2389
      %v2529 = vmul.f32 %v2497, %v2392
      %v2530 = vmul.f32 %v2498, %v2394
      %v2531 = vmul.f32 %v2499, %v2397
      %v2532 = vmul.f32 %v2500, %v2399
      %v2533 = vmul.f32 %v2501, %v2402
      %v2534 = vmul.f32 %v2502, %v2404
      %v2535 = vmul.f32 %v2503, %v2407
      %v2536 = vmul.f32 %v2504, %v2409
      %v2537 = vmul.f32 %v2505, %v2412
      %v2538 = vmul.f32 %v2506, %v2414
      %v2539 = vmul.f32 %v2507, %v2417
      %v2540 = vmul.f32 %v2508, %v2419
      %v2541 = vmul.f32 %v2509, %v2422
      %v2542 = vmul.f32 %v2510, %v2424
      %v2543 = vmul.f32 %v2511, %v2427
      %v2544 = vmul.f32 %v2512, %v2429
      %v2545 = vmul.f32 %v2513, %v2432
      %v2546 = vmul.f32 %v2514, %v2434
      %v2547 = vmul.f32 %v2515, %v2437
      %v2548 = vmul.f32 %v2516, %v2439
      %v2549 = vmul.f32 %v2517, %v2442
      %v2550 = vmul.f32 %v2518, %v2444
      %v2551 = vmul.f32 %v2519, %v2447
      %v2552 = vmul.f32 %v2520, %v2449
      %v2553 = vmul.f32 %v2521, %v2452
      %v2554 = vmul.f32 %v2522, %v2454
      %v2555 = vmul.f32 %v2523, %v2457
      %v2556 = vmul.f32 %v2524, %v2459
      %v2557 = vmul.f32 %v2525, %v2382
      %v2558 = vmul.f32 %v2526, %v2384
      %v2559 = vmul.f32 %v2527, %v2387
      %v2560 = vmul.f32 %v2528, %v2389
      %v2561 = vmul.f32 %v2529, %v2392
      %v2562 = vmul.f32 %v2530, %v2394
      %v2563 = vmul.f32 %v2531, %v2397
      %v2564 = vmul.f32 %v2532, %v2399
      %v2565 = vmul.f32 %v2533, %v2402
      %v2566 = vmul.f32 %v2534, %v2404
      %v2567 = vmul.f32 %v2535, %v2407
      %v2568 = vmul.f32 %v2536, %v2409
      %v2569 = vmul.f32 %v2537, %v2412
      %v2570 = vmul.f32 %v2538, %v2414
      %v2571 = vmul.f32 %v2539, %v2417
      %v2572 = vmul.f32 %v2540, %v2419
      %v2573 = vmul.f32 %v2541, %v2422
      %v2574 = vmul.f32 %v2542, %v2424
      %v2575 = vmul.f32 %v2543, %v2427
      %v2576 = vmul.f32 %v2544, %v2429
      %v2577 = vmul.f32 %v2545, %v2432
      %v2578 = vmul.f32 %v2546, %v2434
      %v2579 = vmul.f32 %v2547, %v2437
      %v2580 = vmul.f32 %v2548, %v2439
      %v2581 = vmul.f32 %v2549, %v2442
      %v2582 = vmul.f32 %v2550, %v2444
      %v2583 = vmul.f32 %v2551, %v2447
      %v2584 = vmul.f32 %v2552, %v2449
      %v2585 = vmul.f32 %v2553, %v2452
      %v2586 = vmul.f32 %v2554, %v2454
      %v2587 = vmul.f32 %v2555, %v2457
      %v2588 = vmul.f32 %v2556, %v2459
      %v2589 = vadd.f32 %v2382, %v2557
      %v2590 = vadd.f32 %v2384, %v2558
      %v2591 = vadd.f32 %v2387, %v2559
      %v2592 = vadd.f32 %v2389, %v2560
      %v2593 = vadd.f32 %v2392, %v2561
      %v2594 = vadd.f32 %v2394, %v2562
      %v2595 = vadd.f32 %v2397, %v2563
      %v2596 = vadd.f32 %v2399, %v2564
      %v2597 = vadd.f32 %v2402, %v2565
      %v2598 = vadd.f32 %v2404, %v2566
      %v2599 = vadd.f32 %v2407, %v2567
      %v2600 = vadd.f32 %v2409, %v2568
      %v2601 = vadd.f32 %v2412, %v2569
      %v2602 = vadd.f32 %v2414, %v2570
      %v2603 = vadd.f32 %v2417, %v2571
      %v2604 = vadd.f32 %v2419, %v2572
      %v2605 = vadd.f32 %v2422, %v2573
      %v2606 = vadd.f32 %v2424, %v2574
      %v2607 = vadd.f32 %v2427, %v2575
      %v2608 = vadd.f32 %v2429, %v2576
      %v2609 = vadd.f32 %v2432, %v2577
      %v2610 = vadd.f32 %v2434, %v2578
      %v2611 = vadd.f32 %v2437, %v2579
      %v2612 = vadd.f32 %v2439, %v2580
      %v2613 = vadd.f32 %v2442, %v2581
      %v2614 = vadd.f32 %v2444, %v2582
      %v2615 = vadd.f32 %v2447, %v2583
      %v2616 = vadd.f32 %v2449, %v2584
      %v2617 = vadd.f32 %v2452, %v2585
      %v2618 = vadd.f32 %v2454, %v2586
      %v2619 = vadd.f32 %v2457, %v2587
      %v2620 = vadd.f32 %v2459, %v2588
      %v2621 = vmul.f32 %v2589, 0.7978846
      %v2622 = vmul.f32 %v2590, 0.7978846
      %v2623 = vmul.f32 %v2591, 0.7978846
      %v2624 = vmul.f32 %v2592, 0.7978846
      %v2625 = vmul.f32 %v2593, 0.7978846
      %v2626 = vmul.f32 %v2594, 0.7978846
      %v2627 = vmul.f32 %v2595, 0.7978846
      %v2628 = vmul.f32 %v2596, 0.7978846
      %v2629 = vmul.f32 %v2597, 0.7978846
      %v2630 = vmul.f32 %v2598, 0.7978846
      %v2631 = vmul.f32 %v2599, 0.7978846
      %v2632 = vmul.f32 %v2600, 0.7978846
      %v2633 = vmul.f32 %v2601, 0.7978846
      %v2634 = vmul.f32 %v2602, 0.7978846
      %v2635 = vmul.f32 %v2603, 0.7978846
      %v2636 = vmul.f32 %v2604, 0.7978846
      %v2637 = vmul.f32 %v2605, 0.7978846
      %v2638 = vmul.f32 %v2606, 0.7978846
      %v2639 = vmul.f32 %v2607, 0.7978846
      %v2640 = vmul.f32 %v2608, 0.7978846
      %v2641 = vmul.f32 %v2609, 0.7978846
      %v2642 = vmul.f32 %v2610, 0.7978846
      %v2643 = vmul.f32 %v2611, 0.7978846
      %v2644 = vmul.f32 %v2612, 0.7978846
      %v2645 = vmul.f32 %v2613, 0.7978846
      %v2646 = vmul.f32 %v2614, 0.7978846
      %v2647 = vmul.f32 %v2615, 0.7978846
      %v2648 = vmul.f32 %v2616, 0.7978846
      %v2649 = vmul.f32 %v2617, 0.7978846
      %v2650 = vmul.f32 %v2618, 0.7978846
      %v2651 = vmul.f32 %v2619, 0.7978846
      %v2652 = vmul.f32 %v2620, 0.7978846
      %v2653 = vtanh.pop %v2621
      %v2654 = vtanh.pop %v2622
      %v2655 = vtanh.pop %v2623
      %v2656 = vtanh.pop %v2624
      %v2657 = vtanh.pop %v2625
      %v2658 = vtanh.pop %v2626
      %v2659 = vtanh.pop %v2627
      %v2660 = vtanh.pop %v2628
      %v2661 = vtanh.pop %v2629
      %v2662 = vtanh.pop %v2630
      %v2663 = vtanh.pop %v2631
      %v2664 = vtanh.pop %v2632
      %v2665 = vtanh.pop %v2633
      %v2666 = vtanh.pop %v2634
      %v2667 = vtanh.pop %v2635
      %v2668 = vtanh.pop %v2636
      %v2669 = vtanh.pop %v2637
      %v2670 = vtanh.pop %v2638
      %v2671 = vtanh.pop %v2639
      %v2672 = vtanh.pop %v2640
      %v2673 = vtanh.pop %v2641
      %v2674 = vtanh.pop %v2642
      %v2675 = vtanh.pop %v2643
      %v2676 = vtanh.pop %v2644
      %v2677 = vtanh.pop %v2645
      %v2678 = vtanh.pop %v2646
      %v2679 = vtanh.pop %v2647
      %v2680 = vtanh.pop %v2648
      %v2681 = vtanh.pop %v2649
      %v2682 = vtanh.pop %v2650
      %v2683 = vtanh.pop %v2651
      %v2684 = vtanh.pop %v2652
      %v2685 = vadd.f32 %v2653, 1.0
      %v2686 = vadd.f32 %v2654, 1.0
      %v2687 = vadd.f32 %v2655, 1.0
      %v2688 = vadd.f32 %v2656, 1.0
      %v2689 = vadd.f32 %v2657, 1.0
      %v2690 = vadd.f32 %v2658, 1.0
      %v2691 = vadd.f32 %v2659, 1.0
      %v2692 = vadd.f32 %v2660, 1.0
      %v2693 = vadd.f32 %v2661, 1.0
      %v2694 = vadd.f32 %v2662, 1.0
      %v2695 = vadd.f32 %v2663, 1.0
      %v2696 = vadd.f32 %v2664, 1.0
      %v2697 = vadd.f32 %v2665, 1.0
      %v2698 = vadd.f32 %v2666, 1.0
      %v2699 = vadd.f32 %v2667, 1.0
      %v2700 = vadd.f32 %v2668, 1.0
      %v2701 = vadd.f32 %v2669, 1.0
      %v2702 = vadd.f32 %v2670, 1.0
      %v2703 = vadd.f32 %v2671, 1.0
      %v2704 = vadd.f32 %v2672, 1.0
      %v2705 = vadd.f32 %v2673, 1.0
      %v2706 = vadd.f32 %v2674, 1.0
      %v2707 = vadd.f32 %v2675, 1.0
      %v2708 = vadd.f32 %v2676, 1.0
      %v2709 = vadd.f32 %v2677, 1.0
      %v2710 = vadd.f32 %v2678, 1.0
      %v2711 = vadd.f32 %v2679, 1.0
      %v2712 = vadd.f32 %v2680, 1.0
      %v2713 = vadd.f32 %v2681, 1.0
      %v2714 = vadd.f32 %v2682, 1.0
      %v2715 = vadd.f32 %v2683, 1.0
      %v2716 = vadd.f32 %v2684, 1.0
      %v2717 = vmul.f32 %v2461, %v2685
      %v2718 = vmul.f32 %v2462, %v2686
      %v2719 = vmul.f32 %v2463, %v2687
      %v2720 = vmul.f32 %v2464, %v2688
      %v2721 = vmul.f32 %v2465, %v2689
      %v2722 = vmul.f32 %v2466, %v2690
      %v2723 = vmul.f32 %v2467, %v2691
      %v2724 = vmul.f32 %v2468, %v2692
      %v2725 = vmul.f32 %v2469, %v2693
      %v2726 = vmul.f32 %v2470, %v2694
      %v2727 = vmul.f32 %v2471, %v2695
      %v2728 = vmul.f32 %v2472, %v2696
      %v2729 = vmul.f32 %v2473, %v2697
      %v2730 = vmul.f32 %v2474, %v2698
      %v2731 = vmul.f32 %v2475, %v2699
      %v2732 = vmul.f32 %v2476, %v2700
      %v2733 = vmul.f32 %v2477, %v2701
      %v2734 = vmul.f32 %v2478, %v2702
      %v2735 = vmul.f32 %v2479, %v2703
      %v2736 = vmul.f32 %v2480, %v2704
      %v2737 = vmul.f32 %v2481, %v2705
      %v2738 = vmul.f32 %v2482, %v2706
      %v2739 = vmul.f32 %v2483, %v2707
      %v2740 = vmul.f32 %v2484, %v2708
      %v2741 = vmul.f32 %v2485, %v2709
      %v2742 = vmul.f32 %v2486, %v2710
      %v2743 = vmul.f32 %v2487, %v2711
      %v2744 = vmul.f32 %v2488, %v2712
      %v2745 = vmul.f32 %v2489, %v2713
      %v2746 = vmul.f32 %v2490, %v2714
      %v2747 = vmul.f32 %v2491, %v2715
      %v2748 = vmul.f32 %v2492, %v2716
      %v2749 = vpack.c.bf16 %v2717, %v2717
      %v2750 = vpack.c.bf16 %v2718, %v2718
      %v2751 = vpack.c.bf16 %v2719, %v2719
      %v2752 = vpack.c.bf16 %v2720, %v2720
      %v2753 = vpack.c.bf16 %v2721, %v2721
      %v2754 = vpack.c.bf16 %v2722, %v2722
      %v2755 = vpack.c.bf16 %v2723, %v2723
      %v2756 = vpack.c.bf16 %v2724, %v2724
      %v2757 = vpack.c.bf16 %v2725, %v2725
      %v2758 = vpack.c.bf16 %v2726, %v2726
      %v2759 = vpack.c.bf16 %v2727, %v2727
      %v2760 = vpack.c.bf16 %v2728, %v2728
      %v2761 = vpack.c.bf16 %v2729, %v2729
      %v2762 = vpack.c.bf16 %v2730, %v2730
      %v2763 = vpack.c.bf16 %v2731, %v2731
      %v2764 = vpack.c.bf16 %v2732, %v2732
      %v2765 = vpack.c.bf16 %v2733, %v2733
      %v2766 = vpack.c.bf16 %v2734, %v2734
      %v2767 = vpack.c.bf16 %v2735, %v2735
      %v2768 = vpack.c.bf16 %v2736, %v2736
      %v2769 = vpack.c.bf16 %v2737, %v2737
      %v2770 = vpack.c.bf16 %v2738, %v2738
      %v2771 = vpack.c.bf16 %v2739, %v2739
      %v2772 = vpack.c.bf16 %v2740, %v2740
      %v2773 = vpack.c.bf16 %v2741, %v2741
      %v2774 = vpack.c.bf16 %v2742, %v2742
      %v2775 = vpack.c.bf16 %v2743, %v2743
      %v2776 = vpack.c.bf16 %v2744, %v2744
      %v2777 = vpack.c.bf16 %v2745, %v2745
      %v2778 = vpack.c.bf16 %v2746, %v2746
      %v2779 = vpack.c.bf16 %v2747, %v2747
      %v2780 = vpack.c.bf16 %v2748, %v2748
      %vm2781 = vcmask 125952
      %2782 = vst.msk [vmem:[%s333] sm:$0xf] %vm2781, %v2749
      %2783 = vst.msk [vmem:[%s333 + $0x4] sm:$0xf] %vm2781, %v2750
      %2784 = vst.msk [vmem:[%s333 + $0x8] sm:$0xf] %vm2781, %v2751
      %2785 = vst.msk [vmem:[%s333 + $0xc] sm:$0xf] %vm2781, %v2752
      %2786 = vst.msk [vmem:[%s333 + $0x10] sm:$0xf] %vm2781, %v2753
      %2787 = vst.msk [vmem:[%s333 + $0x14] sm:$0xf] %vm2781, %v2754
      %2788 = vst.msk [vmem:[%s333 + $0x18] sm:$0xf] %vm2781, %v2755
      %2789 = vst.msk [vmem:[%s333 + $0x1c] sm:$0xf] %vm2781, %v2756
      %2790 = vst.msk [vmem:[%s333 + $0x20] sm:$0xf] %vm2781, %v2757
      %2791 = vst.msk [vmem:[%s333 + $0x24] sm:$0xf] %vm2781, %v2758
      %2792 = vst.msk [vmem:[%s333 + $0x28] sm:$0xf] %vm2781, %v2759
      %2793 = vst.msk [vmem:[%s333 + $0x2c] sm:$0xf] %vm2781, %v2760
      %2794 = vst.msk [vmem:[%s333 + $0x30] sm:$0xf] %vm2781, %v2761
      %2795 = vst.msk [vmem:[%s333 + $0x34] sm:$0xf] %vm2781, %v2762
      %2796 = vst.msk [vmem:[%s333 + $0x38] sm:$0xf] %vm2781, %v2763
      %2797 = vst.msk [vmem:[%s333 + $0x3c] sm:$0xf] %vm2781, %v2764
      %2798 = vst.msk [vmem:[%s333 + $0x40] sm:$0xf] %vm2781, %v2765
      %2799 = vst.msk [vmem:[%s333 + $0x44] sm:$0xf] %vm2781, %v2766
      %2800 = vst.msk [vmem:[%s333 + $0x48] sm:$0xf] %vm2781, %v2767
      %2801 = vst.msk [vmem:[%s333 + $0x4c] sm:$0xf] %vm2781, %v2768
      %2802 = vst.msk [vmem:[%s333 + $0x50] sm:$0xf] %vm2781, %v2769
      %2803 = vst.msk [vmem:[%s333 + $0x54] sm:$0xf] %vm2781, %v2770
      %2804 = vst.msk [vmem:[%s333 + $0x58] sm:$0xf] %vm2781, %v2771
      %2805 = vst.msk [vmem:[%s333 + $0x5c] sm:$0xf] %vm2781, %v2772
      %2806 = vst.msk [vmem:[%s333 + $0x60] sm:$0xf] %vm2781, %v2773
      %2807 = vst.msk [vmem:[%s333 + $0x64] sm:$0xf] %vm2781, %v2774
      %2808 = vst.msk [vmem:[%s333 + $0x68] sm:$0xf] %vm2781, %v2775
      %2809 = vst.msk [vmem:[%s333 + $0x6c] sm:$0xf] %vm2781, %v2776
      %2810 = vst.msk [vmem:[%s333 + $0x70] sm:$0xf] %vm2781, %v2777
      %2811 = vst.msk [vmem:[%s333 + $0x74] sm:$0xf] %vm2781, %v2778
      %2812 = vst.msk [vmem:[%s333 + $0x78] sm:$0xf] %vm2781, %v2779
      %2813 = vst.msk [vmem:[%s333 + $0x7c] sm:$0xf] %vm2781, %v2780
      %s2814 = smul.u32 32, %s22
      %p2815 = scmp.lt.s32.totalorder %s21, 1
      %s2816 = scalar_select %p2815, %s21, 1
      %p2817 = scmp.lt.s32.totalorder %s2814, 31
      %s2818 = scalar_select %p2817, %s2814, 31
      %s2819 = smul.addr %s2816, 32
      %s2820 = sadd.s32 %s2818, %s2819
      %s2821 = smul.addr %s2820, 4
      %s2822 = scalar_lea.vmem %s6, %s2821
      // Predicated region
      $region45: #{stem_forward.2} parent=43 // pred_check
        %p2823 = pneg %p195
      $region46: #{stem_forward.2} parent=43 // pred_check_branch
        %2825 = sbr.rel (%p2823) target = $region48
      $region47: #{stem_forward.2} parent=43 // pred_region
        %s2826 = smul.u32 32, %s22
      $region48: #{stem_forward.2} parent=43 // pred_fallthru
        _
    $region44: #{stem_forward.2} parent=5 // pred_fallthru
      _
    %p2827 = scmp.le.s32.totalorder 2, %s12
    // Predicated region
    $region49: #{stem_forward.2} parent=5 // pred_check
      %p2828 = pneg %p2827
    $region50: #{stem_forward.2} parent=5 // pred_check_branch
      %2830 = sbr.rel (%p2828) target = $region52
    $region51: #{stem_forward.2} parent=5 // pred_region
      %s2831 = ssub.s32 %s12, 2
      // Predicated region
      $region53: #{stem_forward.2} parent=51 // pred_check
        %p2832 = pneg %p201
      $region54: #{stem_forward.2} parent=51 // pred_check_branch
        %2834 = sbr.rel (%p2832) target = $region56
      $region55: #{stem_forward.2} parent=51 // pred_region
        %s2835 = smul.u32 32, %s24
        %p2836 = scmp.lt.s32.totalorder %s23, 1
        %s2837 = scalar_select %p2836, %s23, 1
        %p2838 = scmp.lt.s32.totalorder %s2835, 31
        %s2839 = scalar_select %p2838, %s2835, 31
        %s2840 = smul.addr %s2837, 32
        %s2841 = sadd.s32 %s2839, %s2840
        %s2842 = smul.addr %s2841, 4
        %s2843 = scalar_lea.vmem %s6, %s2842
      $region56: #{stem_forward.2} parent=51 // pred_fallthru
        _
    $region52: #{stem_forward.2} parent=5 // pred_fallthru
      _
  $region6: #{stem_forward.2} parent=0 // loop_footer
    %s16 = sadd.s32 1, %s12
  $region7: #{stem_forward.2} parent=0 // loop_footer_branch
    %11 = sbr.rel target = $region3
  $region8: #{stem_forward.2} parent=0 // loop_exit
    _

</llo_original>
